<compile_context>
chip_gen: v5e
topology: v5e:2x2
jax: 0.10.0
libtpu: 0.0.40
codegen_flags: <defaults>
</compile_context>

<pallas_src>
import functools

import jax
import jax.numpy as jnp
from jax.experimental import pallas as pl
from jax.experimental.pallas import tpu as pltpu


def _round_up(x, m):
    return (x + m - 1) // m * m


def _bottleneck_kernel(x_ref, w1_ref, b1_ref, w2_ref, b2_ref, w3_ref, b3_ref,
                       o_ref, mid_ref, *, H, W, Wp, Cin, Wd, Cout):
    # x_ref:   (1, H*W, Cin)   bf16  input (NHWC, spatial flattened) == identity
    # w1_ref:  (Cin, Wd)       bf16  conv1 1x1 weights, BN1 scale folded
    # b1_ref:  (1, Wd)         f32   BN1 bias
    # w2_ref:  (3, 3*Wd, Wd)   bf16  conv2 3x3 as (ky, kx*cin, cout), BN2 folded
    # b2_ref:  (1, Wd)         f32   BN2 bias
    # w3_ref:  (Wd, Cout)      bf16  conv3 1x1 weights, BN3 scale folded
    # b3_ref:  (1, Cout)       f32   BN3 bias
    # o_ref:   (1, H*W, Cout)  bf16  output
    # mid_ref: VMEM (H+2, Wp, Wd) bf16 scratch: zero-bordered conv1 activation,
    #          Wp = round_up(W+2, 16) so row stores/loads are sublane-tile wide.

    # ---- conv1 (1x1) + bn1 (scale folded into w1) + relu1 ----
    h1 = jnp.dot(x_ref[0], w1_ref[...], preferred_element_type=jnp.float32)
    h1 = jnp.maximum(h1 + b1_ref[0], 0.0)              # (H*W, Wd) f32

    # ---- stage h1 into the zero-bordered scratch for the 3x3 conv ----
    # Only the thin frame (plus the alignment padding columns) is zeroed each
    # step, so the kernel is correct regardless of how the "parallel" batch
    # axis is split across TensorCores (scratch is uninitialized per core).
    mid_ref[0:1, :, :] = jnp.zeros((1, Wp, Wd), jnp.bfloat16)
    mid_ref[H + 1:H + 2, :, :] = jnp.zeros((1, Wp, Wd), jnp.bfloat16)
    mid_ref[1:H + 1, 0:1, :] = jnp.zeros((H, 1, Wd), jnp.bfloat16)
    mid_ref[1:H + 1, W + 1:Wp, :] = jnp.zeros((H, Wp - W - 1, Wd), jnp.bfloat16)
    mid_ref[1:H + 1, 1:W + 1, :] = h1.astype(jnp.bfloat16).reshape(H, W, Wd)

    # ---- conv2 (3x3, pad=1): 3 matmuls with K = 3*Wd (kx taps merged) ----
    acc2 = None
    for ky in range(3):
        slab = mid_ref[ky:ky + H, :, :]                # (H, Wp, Wd) bf16
        im2col = jnp.concatenate(
            [slab[:, kx:kx + W, :] for kx in range(3)], axis=-1)
        im2col = im2col.reshape(H * W, 3 * Wd)         # (H*W, 3*Wd) bf16
        d = jnp.dot(im2col, w2_ref[ky], preferred_element_type=jnp.float32)
        acc2 = d if acc2 is None else acc2 + d
    h2 = jnp.maximum(acc2 + b2_ref[0], 0.0)            # (H*W, Wd) f32

    # ---- conv3 (1x1) + bn3 + residual add (re-read x_ref) + relu3 ----
    h3 = jnp.dot(h2.astype(jnp.bfloat16), w3_ref[...],
                 preferred_element_type=jnp.float32)
    out = jnp.maximum(h3 + b3_ref[0] + x_ref[0].astype(jnp.float32), 0.0)
    o_ref[0] = out.astype(o_ref.dtype)


def bottleneck_forward_nhwc(x_nhwc,
                            w1, g1, beta1, mean1, var1,
                            w2, g2, beta2, mean2, var2,
                            w3, g3, beta3, mean3, var3,
                            eps=1e-5):
    """Channels-last hot-path entry. x_nhwc: (N, H, W, Cin); convs in OIHW."""
    N, H, W, Cin = x_nhwc.shape
    width = w1.shape[0]          # conv1: (width, Cin, 1, 1)
    Cout = w3.shape[0]           # conv3: (Cout, width, 1, 1)
    assert Cin == Cout, "downsample=None path requires inplanes == planes*expansion"

    # bf16 activations in HBM; MXU operands are bf16, accumulation stays f32.
    x = x_nhwc.astype(jnp.bfloat16).reshape(N, H * W, Cin)

    # Fold inference BatchNorm: scale goes into the conv weights, bias stays f32.
    s1 = g1 / jnp.sqrt(var1 + eps)
    s2 = g2 / jnp.sqrt(var2 + eps)
    s3 = g3 / jnp.sqrt(var3 + eps)
    b1 = (beta1 - mean1 * s1).reshape(1, width).astype(jnp.float32)
    b2 = (beta2 - mean2 * s2).reshape(1, width).astype(jnp.float32)
    b3 = (beta3 - mean3 * s3).reshape(1, Cout).astype(jnp.float32)

    # conv1 (width, Cin, 1, 1) -> (Cin, width); conv3 (Cout, width, 1, 1) -> (width, Cout)
    w1_k = (jnp.transpose(w1[:, :, 0, 0], (1, 0)) * s1[None, :]).astype(jnp.bfloat16)
    w3_k = (jnp.transpose(w3[:, :, 0, 0], (1, 0)) * s3[None, :]).astype(jnp.bfloat16)
    # conv2 OIHW -> (kh, kw, cin, cout), scale cout, merge (kw, cin) along K.
    w2_hwio = jnp.transpose(w2, (2, 3, 1, 0)) * s2[None, None, None, :]
    w2_k = w2_hwio.reshape(3, 3 * width, width).astype(jnp.bfloat16)

    Wp = _round_up(W + 2, 16)    # bf16 sublane tile

    kernel = functools.partial(_bottleneck_kernel, H=H, W=W, Wp=Wp,
                               Cin=Cin, Wd=width, Cout=Cout)

    out = pl.pallas_call(
        kernel,
        out_shape=jax.ShapeDtypeStruct((N, H * W, Cout), jnp.bfloat16),
        grid=(N,),
        in_specs=[
            pl.BlockSpec((1, H * W, Cin), lambda n: (n, 0, 0)),
            pl.BlockSpec((Cin, width), lambda n: (0, 0)),
            pl.BlockSpec((1, width), lambda n: (0, 0)),
            pl.BlockSpec((3, 3 * width, width), lambda n: (0, 0, 0)),
            pl.BlockSpec((1, width), lambda n: (0, 0)),
            pl.BlockSpec((width, Cout), lambda n: (0, 0)),
            pl.BlockSpec((1, Cout), lambda n: (0, 0)),
        ],
        out_specs=pl.BlockSpec((1, H * W, Cout), lambda n: (n, 0, 0)),
        scratch_shapes=[pltpu.VMEM((H + 2, Wp, width), jnp.bfloat16)],
        compiler_params=pltpu.CompilerParams(
            dimension_semantics=("parallel",),
            vmem_limit_bytes=64 * 1024 * 1024),
    )(x, w1_k, b1, w2_k, b2, w3_k, b3)

    return out.reshape(N, H, W, Cout)


def bottleneck_forward(x_nchw, *params, eps=1e-5):
    """NCHW adapter matching the PyTorch module contract.

    The relayout is done in bf16 and lives outside the kernel; when chaining
    blocks, call `bottleneck_forward_nhwc` directly and keep activations
    channels-last end-to-end.
    """
    x_nhwc = jnp.transpose(x_nchw.astype(jnp.bfloat16), (0, 2, 3, 1))
    out = bottleneck_forward_nhwc(x_nhwc, *params, eps=eps)
    return jnp.transpose(out, (0, 3, 1, 2))


def _reference(x, w1, g1, be1, m1, v1, w2, g2, be2, m2, v2,
               w3, g3, be3, m3, v3, eps=1e-5):
    """Pure-JAX f32 reference (lax conv) mirroring PyTorch Bottleneck semantics."""
    def conv(x, w, pad):
        return jax.lax.conv_general_dilated(
            x, w, window_strides=(1, 1), padding=((pad, pad), (pad, pad)),
            dimension_numbers=("NCHW", "OIHW", "NCHW"))

    def bn(x, g, b, m, v):
        sh = (1, -1, 1, 1)
        return ((x - m.reshape(sh)) / jnp.sqrt(v.reshape(sh) + eps)
                * g.reshape(sh) + b.reshape(sh))

    out = jax.nn.relu(bn(conv(x, w1, 0), g1, be1, m1, v1))
    out = jax.nn.relu(bn(conv(out, w2, 1), g2, be2, m2, v2))
    out = bn(conv(out, w3, 0), g3, be3, m3, v3)
    return jax.nn.relu(out + x)


if __name__ == "__main__":
    key = jax.random.PRNGKey(0)
    # Bottleneck(inplanes=16, planes=4): width=4, out=planes*4=16 == inplanes,
    # stride=1, downsample=None.
    N, planes, H, W = 2, 4, 16, 16
    width = planes
    Cout = planes * 4
    Cin = Cout

    keys = jax.random.split(key, 12)
    x = jax.random.normal(keys[0], (N, Cin, H, W), jnp.float32)

    # conv weights (PyTorch OIHW, bias=False)
    w1 = jax.random.normal(keys[1], (width, Cin, 1, 1), jnp.float32) * 0.1
    w2 = jax.random.normal(keys[2], (width, width, 3, 3), jnp.float32) * 0.1
    w3 = jax.random.normal(keys[3], (Cout, width, 1, 1), jnp.float32) * 0.1

    # BatchNorm parameters / running stats (inference mode), deterministic.
    g1 = 1.0 + 0.1 * jax.random.normal(keys[4], (width,), jnp.float32)
    beta1 = 0.1 * jax.random.normal(keys[5], (width,), jnp.float32)
    mean1 = 0.05 * jnp.arange(width, dtype=jnp.float32)
    var1 = 1.0 + 0.1 * jnp.arange(width, dtype=jnp.float32)

    g2 = 1.0 + 0.1 * jax.random.normal(keys[6], (width,), jnp.float32)
    beta2 = 0.1 * jax.random.normal(keys[7], (width,), jnp.float32)
    mean2 = -0.03 * jnp.arange(width, dtype=jnp.float32)
    var2 = 1.0 + 0.2 * jnp.arange(width, dtype=jnp.float32)

    g3 = 1.0 + 0.1 * jax.random.normal(keys[8], (Cout,), jnp.float32)
    beta3 = 0.1 * jax.random.normal(keys[9], (Cout,), jnp.float32)
    mean3 = 0.02 * jnp.arange(Cout, dtype=jnp.float32)
    var3 = 1.0 + 0.05 * jnp.arange(Cout, dtype=jnp.float32)

    out = bottleneck_forward(x, w1, g1, beta1, mean1, var1,
                             w2, g2, beta2, mean2, var2,
                             w3, g3, beta3, mean3, var3)
    out = jax.block_until_ready(out)

    ref = _reference(x, w1, g1, beta1, mean1, var1,
                     w2, g2, beta2, mean2, var2,
                     w3, g3, beta3, mean3, var3)
    assert out.shape == (N, Cout, H, W)
    # bf16 input / bf16 MXU operands / bf16 output vs. f32 reference.
    out_f32 = out.astype(jnp.float32)
    assert jnp.allclose(out_f32, ref, atol=4e-2, rtol=4e-2), (
        float(jnp.max(jnp.abs(out_f32 - ref))))

    print("KERNEL_OK")
</pallas_src>

<mosaic_0001>
module attributes {stable_mosaic.version = 11 : i64} {
  func.func @_bottleneck_kernel(%arg0: i32, %arg1: memref<1x256x16xbf16, #tpu.memory_space<vmem>>, %arg2: memref<16x4xbf16, #tpu.memory_space<vmem>>, %arg3: memref<1x4xf32, #tpu.memory_space<vmem>>, %arg4: memref<3x12x4xbf16, #tpu.memory_space<vmem>>, %arg5: memref<1x4xf32, #tpu.memory_space<vmem>>, %arg6: memref<4x16xbf16, #tpu.memory_space<vmem>>, %arg7: memref<1x16xf32, #tpu.memory_space<vmem>>, %arg8: memref<1x256x16xbf16, #tpu.memory_space<vmem>>, %arg9: memref<18x32x4xbf16, #tpu.memory_space<vmem>>) attributes {dimension_semantics = [#tpu.dimension_semantics<parallel>], iteration_bounds = array<i64: 2>, scalar_prefetch = 0 : i64, scratch_operands = 1 : i64, tpu.core_type = #tpu.core_type<tc>, window_params = [{transform_indices = @transform_0, window_bounds = array<i64: 1, 256, 16>}, {pipeline_mode = #tpu.pipeline_mode<synchronous>, transform_indices = @transform_1, window_bounds = array<i64: 16, 4>}, {pipeline_mode = #tpu.pipeline_mode<synchronous>, transform_indices = @transform_2, window_bounds = array<i64: 1, 4>}, {pipeline_mode = #tpu.pipeline_mode<synchronous>, transform_indices = @transform_3, window_bounds = array<i64: 3, 12, 4>}, {pipeline_mode = #tpu.pipeline_mode<synchronous>, transform_indices = @transform_4, window_bounds = array<i64: 1, 4>}, {pipeline_mode = #tpu.pipeline_mode<synchronous>, transform_indices = @transform_5, window_bounds = array<i64: 4, 16>}, {pipeline_mode = #tpu.pipeline_mode<synchronous>, transform_indices = @transform_6, window_bounds = array<i64: 1, 16>}, {transform_indices = @transform_7, window_bounds = array<i64: 1, 256, 16>}]} {
    %c0 = arith.constant 0 : index
    %c0_0 = arith.constant 0 : index
    %c0_1 = arith.constant 0 : index
    %0 = vector.load %arg1[%c0, %c0_0, %c0_1] : memref<1x256x16xbf16, #tpu.memory_space<vmem>>, vector<1x256x16xbf16>
    %1 = vector.shape_cast %0 : vector<1x256x16xbf16> to vector<256x16xbf16>
    %c0_2 = arith.constant 0 : index
    %c0_3 = arith.constant 0 : index
    %2 = vector.load %arg2[%c0_2, %c0_3] : memref<16x4xbf16, #tpu.memory_space<vmem>>, vector<16x4xbf16>
    %cst = arith.constant dense<0.000000e+00> : vector<256x4xf32>
    %3 = tpu.matmul %1, %2, %cst {dimension_numbers = #tpu.dot_dimension_numbers<[1], [0], [0], [1], [0, 0, 1, 1], [], []>} : vector<256x16xbf16>, vector<16x4xbf16>, vector<256x4xf32> -> vector<256x4xf32>
    %c0_4 = arith.constant 0 : index
    %c0_5 = arith.constant 0 : index
    %4 = vector.load %arg3[%c0_4, %c0_5] : memref<1x4xf32, #tpu.memory_space<vmem>>, vector<1x4xf32>
    %5 = vector.shape_cast %4 : vector<1x4xf32> to vector<4xf32>
    %6 = vector.shape_cast %5 : vector<4xf32> to vector<1x4xf32>
    %7 = vector.broadcast %6 : vector<1x4xf32> to vector<256x4xf32>
    %8 = arith.addf %3, %7 : vector<256x4xf32>
    %cst_6 = arith.constant 0.000000e+00 : f32
    %9 = vector.broadcast %cst_6 : f32 to vector<256x4xf32>
    %10 = arith.maximumf %8, %9 : vector<256x4xf32>
    %cst_7 = arith.constant 0.000000e+00 : bf16
    %11 = vector.broadcast %cst_7 : bf16 to vector<1x32x4xbf16>
    %c0_8 = arith.constant 0 : index
    %c0_9 = arith.constant 0 : index
    %c0_10 = arith.constant 0 : index
    %12 = vector.load %arg9[%c0_8, %c0_9, %c0_10] : memref<18x32x4xbf16, #tpu.memory_space<vmem>>, vector<1x32x4xbf16>
    tpu.vector_store %arg9[%c0_8, %c0_9, %c0_10], %11 {strides = array<i32>} : memref<18x32x4xbf16, #tpu.memory_space<vmem>>, vector<1x32x4xbf16>,
    %cst_11 = arith.constant 0.000000e+00 : bf16
    %13 = vector.broadcast %cst_11 : bf16 to vector<1x32x4xbf16>
    %c17 = arith.constant 17 : index
    %c0_12 = arith.constant 0 : index
    %c0_13 = arith.constant 0 : index
    %14 = vector.load %arg9[%c17, %c0_12, %c0_13] : memref<18x32x4xbf16, #tpu.memory_space<vmem>>, vector<1x32x4xbf16>
    tpu.vector_store %arg9[%c17, %c0_12, %c0_13], %13 {strides = array<i32>} : memref<18x32x4xbf16, #tpu.memory_space<vmem>>, vector<1x32x4xbf16>,
    %cst_14 = arith.constant 0.000000e+00 : bf16
    %15 = vector.broadcast %cst_14 : bf16 to vector<16x1x4xbf16>
    %c1 = arith.constant 1 : index
    %c0_15 = arith.constant 0 : index
    %c0_16 = arith.constant 0 : index
    %16 = vector.load %arg9[%c1, %c0_15, %c0_16] : memref<18x32x4xbf16, #tpu.memory_space<vmem>>, vector<16x1x4xbf16>
    tpu.vector_store %arg9[%c1, %c0_15, %c0_16], %15 {strides = array<i32>} : memref<18x32x4xbf16, #tpu.memory_space<vmem>>, vector<16x1x4xbf16>,
    %cst_17 = arith.constant 0.000000e+00 : bf16
    %17 = vector.broadcast %cst_17 : bf16 to vector<16x15x4xbf16>
    %c1_18 = arith.constant 1 : index
    %c17_19 = arith.constant 17 : index
    %c0_20 = arith.constant 0 : index
    %18 = vector.load %arg9[%c1_18, %c17_19, %c0_20] : memref<18x32x4xbf16, #tpu.memory_space<vmem>>, vector<16x15x4xbf16>
    tpu.vector_store %arg9[%c1_18, %c17_19, %c0_20], %17 {strides = array<i32>} : memref<18x32x4xbf16, #tpu.memory_space<vmem>>, vector<16x15x4xbf16>,
    %19 = arith.truncf %10 : vector<256x4xf32> to vector<256x4xbf16>
    %20 = vector.shape_cast %19 : vector<256x4xbf16> to vector<16x16x4xbf16>
    %c1_21 = arith.constant 1 : index
    %c1_22 = arith.constant 1 : index
    %c0_23 = arith.constant 0 : index
    %21 = vector.load %arg9[%c1_21, %c1_22, %c0_23] : memref<18x32x4xbf16, #tpu.memory_space<vmem>>, vector<16x16x4xbf16>
    tpu.vector_store %arg9[%c1_21, %c1_22, %c0_23], %20 {strides = array<i32>} : memref<18x32x4xbf16, #tpu.memory_space<vmem>>, vector<16x16x4xbf16>,
    %c0_24 = arith.constant 0 : index
    %c0_25 = arith.constant 0 : index
    %c0_26 = arith.constant 0 : index
    %22 = vector.load %arg9[%c0_24, %c0_25, %c0_26] : memref<18x32x4xbf16, #tpu.memory_space<vmem>>, vector<16x32x4xbf16>
    %23 = vector.extract_strided_slice %22 {offsets = [0, 0, 0], sizes = [16, 16, 4], strides = [1, 1, 1]} : vector<16x32x4xbf16> to vector<16x16x4xbf16>
    %24 = vector.extract_strided_slice %22 {offsets = [0, 1, 0], sizes = [16, 16, 4], strides = [1, 1, 1]} : vector<16x32x4xbf16> to vector<16x16x4xbf16>
    %25 = vector.extract_strided_slice %22 {offsets = [0, 2, 0], sizes = [16, 16, 4], strides = [1, 1, 1]} : vector<16x32x4xbf16> to vector<16x16x4xbf16>
    %26 = tpu.concatenate %23, %24, %25 in 2 : vector<16x16x4xbf16>, vector<16x16x4xbf16>, vector<16x16x4xbf16> -> vector<16x16x12xbf16>
    %27 = vector.shape_cast %26 : vector<16x16x12xbf16> to vector<256x12xbf16>
    %c0_27 = arith.constant 0 : index
    %c0_28 = arith.constant 0 : index
    %c0_29 = arith.constant 0 : index
    %28 = vector.load %arg4[%c0_27, %c0_28, %c0_29] : memref<3x12x4xbf16, #tpu.memory_space<vmem>>, vector<1x12x4xbf16>
    %29 = vector.shape_cast %28 : vector<1x12x4xbf16> to vector<12x4xbf16>
    %cst_30 = arith.constant dense<0.000000e+00> : vector<256x4xf32>
    %30 = tpu.matmul %27, %29, %cst_30 {dimension_numbers = #tpu.dot_dimension_numbers<[1], [0], [0], [1], [0, 0, 1, 1], [], []>} : vector<256x12xbf16>, vector<12x4xbf16>, vector<256x4xf32> -> vector<256x4xf32>
    %c1_31 = arith.constant 1 : index
    %c0_32 = arith.constant 0 : index
    %c0_33 = arith.constant 0 : index
    %31 = vector.load %arg9[%c1_31, %c0_32, %c0_33] : memref<18x32x4xbf16, #tpu.memory_space<vmem>>, vector<16x32x4xbf16>
    %32 = vector.extract_strided_slice %31 {offsets = [0, 0, 0], sizes = [16, 16, 4], strides = [1, 1, 1]} : vector<16x32x4xbf16> to vector<16x16x4xbf16>
    %33 = vector.extract_strided_slice %31 {offsets = [0, 1, 0], sizes = [16, 16, 4], strides = [1, 1, 1]} : vector<16x32x4xbf16> to vector<16x16x4xbf16>
    %34 = vector.extract_strided_slice %31 {offsets = [0, 2, 0], sizes = [16, 16, 4], strides = [1, 1, 1]} : vector<16x32x4xbf16> to vector<16x16x4xbf16>
    %35 = tpu.concatenate %32, %33, %34 in 2 : vector<16x16x4xbf16>, vector<16x16x4xbf16>, vector<16x16x4xbf16> -> vector<16x16x12xbf16>
    %36 = vector.shape_cast %35 : vector<16x16x12xbf16> to vector<256x12xbf16>
    %c1_34 = arith.constant 1 : index
    %c0_35 = arith.constant 0 : index
    %c0_36 = arith.constant 0 : index
    %37 = vector.load %arg4[%c1_34, %c0_35, %c0_36] : memref<3x12x4xbf16, #tpu.memory_space<vmem>>, vector<1x12x4xbf16>
    %38 = vector.shape_cast %37 : vector<1x12x4xbf16> to vector<12x4xbf16>
    %cst_37 = arith.constant dense<0.000000e+00> : vector<256x4xf32>
    %39 = tpu.matmul %36, %38, %cst_37 {dimension_numbers = #tpu.dot_dimension_numbers<[1], [0], [0], [1], [0, 0, 1, 1], [], []>} : vector<256x12xbf16>, vector<12x4xbf16>, vector<256x4xf32> -> vector<256x4xf32>
    %40 = arith.addf %30, %39 : vector<256x4xf32>
    %c2 = arith.constant 2 : index
    %c0_38 = arith.constant 0 : index
    %c0_39 = arith.constant 0 : index
    %41 = vector.load %arg9[%c2, %c0_38, %c0_39] : memref<18x32x4xbf16, #tpu.memory_space<vmem>>, vector<16x32x4xbf16>
    %42 = vector.extract_strided_slice %41 {offsets = [0, 0, 0], sizes = [16, 16, 4], strides = [1, 1, 1]} : vector<16x32x4xbf16> to vector<16x16x4xbf16>
    %43 = vector.extract_strided_slice %41 {offsets = [0, 1, 0], sizes = [16, 16, 4], strides = [1, 1, 1]} : vector<16x32x4xbf16> to vector<16x16x4xbf16>
    %44 = vector.extract_strided_slice %41 {offsets = [0, 2, 0], sizes = [16, 16, 4], strides = [1, 1, 1]} : vector<16x32x4xbf16> to vector<16x16x4xbf16>
    %45 = tpu.concatenate %42, %43, %44 in 2 : vector<16x16x4xbf16>, vector<16x16x4xbf16>, vector<16x16x4xbf16> -> vector<16x16x12xbf16>
    %46 = vector.shape_cast %45 : vector<16x16x12xbf16> to vector<256x12xbf16>
    %c2_40 = arith.constant 2 : index
    %c0_41 = arith.constant 0 : index
    %c0_42 = arith.constant 0 : index
    %47 = vector.load %arg4[%c2_40, %c0_41, %c0_42] : memref<3x12x4xbf16, #tpu.memory_space<vmem>>, vector<1x12x4xbf16>
    %48 = vector.shape_cast %47 : vector<1x12x4xbf16> to vector<12x4xbf16>
    %cst_43 = arith.constant dense<0.000000e+00> : vector<256x4xf32>
    %49 = tpu.matmul %46, %48, %cst_43 {dimension_numbers = #tpu.dot_dimension_numbers<[1], [0], [0], [1], [0, 0, 1, 1], [], []>} : vector<256x12xbf16>, vector<12x4xbf16>, vector<256x4xf32> -> vector<256x4xf32>
    %50 = arith.addf %40, %49 : vector<256x4xf32>
    %c0_44 = arith.constant 0 : index
    %c0_45 = arith.constant 0 : index
    %51 = vector.load %arg5[%c0_44, %c0_45] : memref<1x4xf32, #tpu.memory_space<vmem>>, vector<1x4xf32>
    %52 = vector.shape_cast %51 : vector<1x4xf32> to vector<4xf32>
    %53 = vector.shape_cast %52 : vector<4xf32> to vector<1x4xf32>
    %54 = vector.broadcast %53 : vector<1x4xf32> to vector<256x4xf32>
    %55 = arith.addf %50, %54 : vector<256x4xf32>
    %cst_46 = arith.constant 0.000000e+00 : f32
    %56 = vector.broadcast %cst_46 : f32 to vector<256x4xf32>
    %57 = arith.maximumf %55, %56 : vector<256x4xf32>
    %58 = arith.truncf %57 : vector<256x4xf32> to vector<256x4xbf16>
    %c0_47 = arith.constant 0 : index
    %c0_48 = arith.constant 0 : index
    %59 = vector.load %arg6[%c0_47, %c0_48] : memref<4x16xbf16, #tpu.memory_space<vmem>>, vector<4x16xbf16>
    %cst_49 = arith.constant dense<0.000000e+00> : vector<256x16xf32>
    %60 = tpu.matmul %58, %59, %cst_49 {dimension_numbers = #tpu.dot_dimension_numbers<[1], [0], [0], [1], [0, 0, 1, 1], [], []>} : vector<256x4xbf16>, vector<4x16xbf16>, vector<256x16xf32> -> vector<256x16xf32>
    %c0_50 = arith.constant 0 : index
    %c0_51 = arith.constant 0 : index
    %61 = vector.load %arg7[%c0_50, %c0_51] : memref<1x16xf32, #tpu.memory_space<vmem>>, vector<1x16xf32>
    %62 = vector.shape_cast %61 : vector<1x16xf32> to vector<16xf32>
    %63 = vector.shape_cast %62 : vector<16xf32> to vector<1x16xf32>
    %64 = vector.broadcast %63 : vector<1x16xf32> to vector<256x16xf32>
    %65 = arith.addf %60, %64 : vector<256x16xf32>
    %c0_52 = arith.constant 0 : index
    %c0_53 = arith.constant 0 : index
    %c0_54 = arith.constant 0 : index
    %66 = vector.load %arg1[%c0_52, %c0_53, %c0_54] : memref<1x256x16xbf16, #tpu.memory_space<vmem>>, vector<1x256x16xbf16>
    %67 = vector.shape_cast %66 : vector<1x256x16xbf16> to vector<256x16xbf16>
    %68 = arith.extf %67 : vector<256x16xbf16> to vector<256x16xf32>
    %69 = arith.addf %65, %68 : vector<256x16xf32>
    %cst_55 = arith.constant 0.000000e+00 : f32
    %70 = vector.broadcast %cst_55 : f32 to vector<256x16xf32>
    %71 = arith.maximumf %69, %70 : vector<256x16xf32>
    %72 = arith.truncf %71 : vector<256x16xf32> to vector<256x16xbf16>
    %c0_56 = arith.constant 0 : index
    %c0_57 = arith.constant 0 : index
    %c0_58 = arith.constant 0 : index
    %73 = vector.load %arg8[%c0_56, %c0_57, %c0_58] : memref<1x256x16xbf16, #tpu.memory_space<vmem>>, vector<1x256x16xbf16>
    %74 = vector.shape_cast %73 : vector<1x256x16xbf16> to vector<256x16xbf16>
    %75 = vector.shape_cast %72 : vector<256x16xbf16> to vector<1x256x16xbf16>
    tpu.vector_store %arg8[%c0_56, %c0_57, %c0_58], %75 {strides = array<i32>} : memref<1x256x16xbf16, #tpu.memory_space<vmem>>, vector<1x256x16xbf16>,
    return
  }
  func.func @transform_0(%arg0: i32) -> (i32, i32, i32) {
    %c0_i32 = arith.constant 0 : i32
    %c0_i32_0 = arith.constant 0 : i32
    %c0_i32_1 = arith.constant 0 : i32
    return %arg0, %c0_i32, %c0_i32_0 : i32, i32, i32
  }
  func.func @transform_1(%arg0: i32) -> (i32, i32) {
    %c0_i32 = arith.constant 0 : i32
    %c0_i32_0 = arith.constant 0 : i32
    %c0_i32_1 = arith.constant 0 : i32
    return %c0_i32, %c0_i32_0 : i32, i32
  }
  func.func @transform_2(%arg0: i32) -> (i32, i32) {
    %c0_i32 = arith.constant 0 : i32
    %c0_i32_0 = arith.constant 0 : i32
    %c0_i32_1 = arith.constant 0 : i32
    return %c0_i32, %c0_i32_0 : i32, i32
  }
  func.func @transform_3(%arg0: i32) -> (i32, i32, i32) {
    %c0_i32 = arith.constant 0 : i32
    %c0_i32_0 = arith.constant 0 : i32
    %c0_i32_1 = arith.constant 0 : i32
    %c0_i32_2 = arith.constant 0 : i32
    return %c0_i32, %c0_i32_0, %c0_i32_1 : i32, i32, i32
  }
  func.func @transform_4(%arg0: i32) -> (i32, i32) {
    %c0_i32 = arith.constant 0 : i32
    %c0_i32_0 = arith.constant 0 : i32
    %c0_i32_1 = arith.constant 0 : i32
    return %c0_i32, %c0_i32_0 : i32, i32
  }
  func.func @transform_5(%arg0: i32) -> (i32, i32) {
    %c0_i32 = arith.constant 0 : i32
    %c0_i32_0 = arith.constant 0 : i32
    %c0_i32_1 = arith.constant 0 : i32
    return %c0_i32, %c0_i32_0 : i32, i32
  }
  func.func @transform_6(%arg0: i32) -> (i32, i32) {
    %c0_i32 = arith.constant 0 : i32
    %c0_i32_0 = arith.constant 0 : i32
    %c0_i32_1 = arith.constant 0 : i32
    return %c0_i32, %c0_i32_0 : i32, i32
  }
  func.func @transform_7(%arg0: i32) -> (i32, i32, i32) {
    %c0_i32 = arith.constant 0 : i32
    %c0_i32_0 = arith.constant 0 : i32
    %c0_i32_1 = arith.constant 0 : i32
    return %arg0, %c0_i32, %c0_i32_0 : i32, i32, i32
  }
}

</mosaic_0001>

<llo_original>
// kernel: tpu_custom_call.1
$region0: #{tpu_custom_call.1}
  #allocation0 [shape = 'u32[]', space=smem, size = 0x4, offset = 0x4, fixed_abs, tag = 'smem constant byte address 0x4 - core index']
  #allocation1 [shape = 'u32[72,128]{1,0:T(1,128)}', space=vmem, size = 0x9000, scoped, tag = 'internal scratch']
  #allocation2 [shape = 'bf16[18,32,4]{2,1,0:T(8,128)(2,1)}', space=vmem, size = 0x24000, scoped, tag = 'scratch operand']
  %s0 = inlined_call_operand.vmem [shape: bf16[2,256,16], index: 0, kind: input, shape index: {}]
  %s1 = inlined_call_operand.vmem [shape: bf16[16,4], index: 1, kind: input, shape index: {}]
  %s2 = inlined_call_operand.vmem [shape: f32[1,4], index: 2, kind: input, shape index: {}]
  %s3 = inlined_call_operand.vmem [shape: bf16[3,12,4], index: 3, kind: input, shape index: {}]
  %s4 = inlined_call_operand.vmem [shape: f32[1,4], index: 4, kind: input, shape index: {}]
  %s5 = inlined_call_operand.vmem [shape: bf16[4,16], index: 5, kind: input, shape index: {}]
  %s6 = inlined_call_operand.vmem [shape: f32[1,16], index: 6, kind: input, shape index: {}]
  %s7 = inlined_call_operand.vmem [shape: bf16[2,256,16], index: 7, kind: output, shape index: {}]
  %s8 = sld [smem:[#allocation0]]
  $region61: #{tpu_custom_call.1} parent=0
    _
  %s10 = ssub.s32 1, %s8
  %s11 = scalar_select 0, %s10, %s8
  loop: start=0, step=1, limit=4
  $region2: #{tpu_custom_call.1} parent=0 // loop_pre_header
    _
  $region3: #{tpu_custom_call.1} parent=0 // loop_header
    %s13 = sphi 0, %s17
    %p14 = scmp.ge.s32.totalorder %s13, 4
    %s23 = sphi 0, %s25
    %s26 = sphi 0, %s23
    %s27 = sphi 0, %s26
    %s43 = sphi 0, %s27
    %s47 = sphi 0, %s47
    %s49 = sphi 0, %s47
    %s50 = sphi 0, %s49
    %s64 = sphi 0, %s50
    %s68 = sphi 0, %s68
    %s70 = sphi 0, %s68
    %s71 = sphi 0, %s70
    %s85 = sphi 0, %s71
    %s89 = sphi 0, %s89
    %s91 = sphi 0, %s89
    %s92 = sphi 0, %s91
    %s106 = sphi 0, %s92
    %s110 = sphi 0, %s110
    %s112 = sphi 0, %s110
    %s113 = sphi 0, %s112
    %s127 = sphi 0, %s113
    %s131 = sphi 0, %s131
    %s133 = sphi 0, %s131
    %s134 = sphi 0, %s133
    %s148 = sphi 0, %s134
    %s152 = sphi 0, %s152
    %s154 = sphi 0, %s152
    %s155 = sphi 0, %s154
    %s169 = sphi 0, %s155
    %s175 = sphi 0, %s177
    %s178 = sphi 0, %s175
    %s179 = sphi 0, %s178
    %s195 = sphi 0, %s179
  $region4: #{tpu_custom_call.1} parent=0 // loop_header_branch
    %16 = sbr.rel (%p14) target = $region8
  $region5: #{tpu_custom_call.1} parent=0 // loop_body
    %s18 = ssub.s32 %s13, 1
    %s19 = ssub.s32 %s13, 2
    %s20 = sadd.s32 %s13, 1
    %s21 = ssub.s32 %s13, %s20
    %p22 = scmp.eq.s32.totalorder %s21, 0
    %s24 = sadd.s32 %s23, 1
    %s25 = scalar_select %p22, %s23, %s24
    %p28 = pneg %p22
    %p29 = scmp.eq.s32.totalorder %s13, 1
    %p30 = por %p28, %p29
    %p31 = scmp.ne.s32.totalorder %s23, %s26
    %p32 = scmp.eq.s32.totalorder %s13, 0
    %p33 = por %p31, %p32
    %p34 = scmp.ne.s32.totalorder %s23, %s26
    %p35 = scmp.eq.s32.totalorder %s18, 1
    %p36 = por %p34, %p35
    %p37 = scmp.ne.s32.totalorder %s26, %s27
    %p38 = scmp.eq.s32.totalorder %s18, 0
    %p39 = por %p37, %p38
    %p40 = scmp.ne.s32.totalorder %s26, %s27
    %p41 = scmp.eq.s32.totalorder %s19, 1
    %p42 = por %p40, %p41
    %p44 = scmp.ne.s32.totalorder %s27, %s43
    %p45 = scmp.eq.s32.totalorder %s19, 0
    %p46 = por %p44, %p45
    %s48 = sadd.s32 %s47, 1
    %p51 = scmp.eq.s32.totalorder %s13, 1
    %p52 = scmp.ne.s32.totalorder %s47, %s49
    %p53 = scmp.eq.s32.totalorder %s13, 0
    %p54 = por %p52, %p53
    %p55 = scmp.ne.s32.totalorder %s47, %s49
    %p56 = scmp.eq.s32.totalorder %s18, 1
    %p57 = por %p55, %p56
    %p58 = scmp.ne.s32.totalorder %s49, %s50
    %p59 = scmp.eq.s32.totalorder %s18, 0
    %p60 = por %p58, %p59
    %p61 = scmp.ne.s32.totalorder %s49, %s50
    %p62 = scmp.eq.s32.totalorder %s19, 1
    %p63 = por %p61, %p62
    %p65 = scmp.ne.s32.totalorder %s50, %s64
    %p66 = scmp.eq.s32.totalorder %s19, 0
    %p67 = por %p65, %p66
    %s69 = sadd.s32 %s68, 1
    %p72 = scmp.eq.s32.totalorder %s13, 1
    %p73 = scmp.ne.s32.totalorder %s68, %s70
    %p74 = scmp.eq.s32.totalorder %s13, 0
    %p75 = por %p73, %p74
    %p76 = scmp.ne.s32.totalorder %s68, %s70
    %p77 = scmp.eq.s32.totalorder %s18, 1
    %p78 = por %p76, %p77
    %p79 = scmp.ne.s32.totalorder %s70, %s71
    %p80 = scmp.eq.s32.totalorder %s18, 0
    %p81 = por %p79, %p80
    %p82 = scmp.ne.s32.totalorder %s70, %s71
    %p83 = scmp.eq.s32.totalorder %s19, 1
    %p84 = por %p82, %p83
    %p86 = scmp.ne.s32.totalorder %s71, %s85
    %p87 = scmp.eq.s32.totalorder %s19, 0
    %p88 = por %p86, %p87
    %s90 = sadd.s32 %s89, 1
    %p93 = scmp.eq.s32.totalorder %s13, 1
    %p94 = scmp.ne.s32.totalorder %s89, %s91
    %p95 = scmp.eq.s32.totalorder %s13, 0
    %p96 = por %p94, %p95
    %p97 = scmp.ne.s32.totalorder %s89, %s91
    %p98 = scmp.eq.s32.totalorder %s18, 1
    %p99 = por %p97, %p98
    %p100 = scmp.ne.s32.totalorder %s91, %s92
    %p101 = scmp.eq.s32.totalorder %s18, 0
    %p102 = por %p100, %p101
    %p103 = scmp.ne.s32.totalorder %s91, %s92
    %p104 = scmp.eq.s32.totalorder %s19, 1
    %p105 = por %p103, %p104
    %p107 = scmp.ne.s32.totalorder %s92, %s106
    %p108 = scmp.eq.s32.totalorder %s19, 0
    %p109 = por %p107, %p108
    %s111 = sadd.s32 %s110, 1
    %p114 = scmp.eq.s32.totalorder %s13, 1
    %p115 = scmp.ne.s32.totalorder %s110, %s112
    %p116 = scmp.eq.s32.totalorder %s13, 0
    %p117 = por %p115, %p116
    %p118 = scmp.ne.s32.totalorder %s110, %s112
    %p119 = scmp.eq.s32.totalorder %s18, 1
    %p120 = por %p118, %p119
    %p121 = scmp.ne.s32.totalorder %s112, %s113
    %p122 = scmp.eq.s32.totalorder %s18, 0
    %p123 = por %p121, %p122
    %p124 = scmp.ne.s32.totalorder %s112, %s113
    %p125 = scmp.eq.s32.totalorder %s19, 1
    %p126 = por %p124, %p125
    %p128 = scmp.ne.s32.totalorder %s113, %s127
    %p129 = scmp.eq.s32.totalorder %s19, 0
    %p130 = por %p128, %p129
    %s132 = sadd.s32 %s131, 1
    %p135 = scmp.eq.s32.totalorder %s13, 1
    %p136 = scmp.ne.s32.totalorder %s131, %s133
    %p137 = scmp.eq.s32.totalorder %s13, 0
    %p138 = por %p136, %p137
    %p139 = scmp.ne.s32.totalorder %s131, %s133
    %p140 = scmp.eq.s32.totalorder %s18, 1
    %p141 = por %p139, %p140
    %p142 = scmp.ne.s32.totalorder %s133, %s134
    %p143 = scmp.eq.s32.totalorder %s18, 0
    %p144 = por %p142, %p143
    %p145 = scmp.ne.s32.totalorder %s133, %s134
    %p146 = scmp.eq.s32.totalorder %s19, 1
    %p147 = por %p145, %p146
    %p149 = scmp.ne.s32.totalorder %s134, %s148
    %p150 = scmp.eq.s32.totalorder %s19, 0
    %p151 = por %p149, %p150
    %s153 = sadd.s32 %s152, 1
    %p156 = scmp.eq.s32.totalorder %s13, 1
    %p157 = scmp.ne.s32.totalorder %s152, %s154
    %p158 = scmp.eq.s32.totalorder %s13, 0
    %p159 = por %p157, %p158
    %p160 = scmp.ne.s32.totalorder %s152, %s154
    %p161 = scmp.eq.s32.totalorder %s18, 1
    %p162 = por %p160, %p161
    %p163 = scmp.ne.s32.totalorder %s154, %s155
    %p164 = scmp.eq.s32.totalorder %s18, 0
    %p165 = por %p163, %p164
    %p166 = scmp.ne.s32.totalorder %s154, %s155
    %p167 = scmp.eq.s32.totalorder %s19, 1
    %p168 = por %p166, %p167
    %p170 = scmp.ne.s32.totalorder %s155, %s169
    %p171 = scmp.eq.s32.totalorder %s19, 0
    %p172 = por %p170, %p171
    %s173 = ssub.s32 %s13, %s20
    %p174 = scmp.eq.s32.totalorder %s173, 0
    %s176 = sadd.s32 %s175, 1
    %s177 = scalar_select %p174, %s175, %s176
    %p180 = pneg %p174
    %p181 = scmp.eq.s32.totalorder %s13, 1
    %p182 = por %p180, %p181
    %p183 = scmp.ne.s32.totalorder %s175, %s178
    %p184 = scmp.eq.s32.totalorder %s13, 0
    %p185 = por %p183, %p184
    %p186 = scmp.ne.s32.totalorder %s175, %s178
    %p187 = scmp.eq.s32.totalorder %s18, 1
    %p188 = por %p186, %p187
    %p189 = scmp.ne.s32.totalorder %s178, %s179
    %p190 = scmp.eq.s32.totalorder %s18, 0
    %p191 = por %p189, %p190
    %p192 = scmp.ne.s32.totalorder %s178, %s179
    %p193 = scmp.eq.s32.totalorder %s19, 1
    %p194 = por %p192, %p193
    %p196 = scmp.ne.s32.totalorder %s179, %s195
    %p197 = scmp.eq.s32.totalorder %s19, 0
    %p198 = por %p196, %p197
    %p199 = scmp.le.s32.totalorder 1, %s13
    %p200 = scmp.lt.s32.totalorder %s13, 3
    %p201 = pnand %p199, %p200
    %p202 = pneg %p201
    // Predicated region
    $region9: #{tpu_custom_call.1} parent=5 // pred_check
      _
    $region10: #{tpu_custom_call.1} parent=5 // pred_check_branch
      %204 = sbr.rel (%p201) target = $region12
    $region11: #{tpu_custom_call.1} parent=5 // pred_region
      %s205 = ssub.s32 %s13, 1
      // Predicated region
      $region13: #{tpu_custom_call.1} parent=11 // pred_check
        %p206 = pneg %p60
      $region14: #{tpu_custom_call.1} parent=11 // pred_check_branch
        %208 = sbr.rel (%p206) target = $region16
      $region15: #{tpu_custom_call.1} parent=11 // pred_region
        _
      $region16: #{tpu_custom_call.1} parent=11 // pred_fallthru
        _
      // Predicated region
      $region17: #{tpu_custom_call.1} parent=11 // pred_check
        %p209 = pneg %p81
      $region18: #{tpu_custom_call.1} parent=11 // pred_check_branch
        %211 = sbr.rel (%p209) target = $region20
      $region19: #{tpu_custom_call.1} parent=11 // pred_region
        _
      $region20: #{tpu_custom_call.1} parent=11 // pred_fallthru
        _
      // Predicated region
      $region21: #{tpu_custom_call.1} parent=11 // pred_check
        %p212 = pneg %p102
      $region22: #{tpu_custom_call.1} parent=11 // pred_check_branch
        %214 = sbr.rel (%p212) target = $region24
      $region23: #{tpu_custom_call.1} parent=11 // pred_region
        _
      $region24: #{tpu_custom_call.1} parent=11 // pred_fallthru
        _
      // Predicated region
      $region25: #{tpu_custom_call.1} parent=11 // pred_check
        %p215 = pneg %p123
      $region26: #{tpu_custom_call.1} parent=11 // pred_check_branch
        %217 = sbr.rel (%p215) target = $region28
      $region27: #{tpu_custom_call.1} parent=11 // pred_region
        _
      $region28: #{tpu_custom_call.1} parent=11 // pred_fallthru
        _
      // Predicated region
      $region29: #{tpu_custom_call.1} parent=11 // pred_check
        %p218 = pneg %p144
      $region30: #{tpu_custom_call.1} parent=11 // pred_check_branch
        %220 = sbr.rel (%p218) target = $region32
      $region31: #{tpu_custom_call.1} parent=11 // pred_region
        _
      $region32: #{tpu_custom_call.1} parent=11 // pred_fallthru
        _
      // Predicated region
      $region33: #{tpu_custom_call.1} parent=11 // pred_check
        %p221 = pneg %p165
      $region34: #{tpu_custom_call.1} parent=11 // pred_check_branch
        %223 = sbr.rel (%p221) target = $region36
      $region35: #{tpu_custom_call.1} parent=11 // pred_region
        _
      $region36: #{tpu_custom_call.1} parent=11 // pred_fallthru
        _
    $region12: #{tpu_custom_call.1} parent=5 // pred_fallthru
      _
    %p224 = scmp.lt.s32.totalorder %s13, 2
    // Predicated region
    $region37: #{tpu_custom_call.1} parent=5 // pred_check
      %p225 = pneg %p224
    $region38: #{tpu_custom_call.1} parent=5 // pred_check_branch
      %227 = sbr.rel (%p225) target = $region40
    $region39: #{tpu_custom_call.1} parent=5 // pred_region
      // Predicated region
      $region41: #{tpu_custom_call.1} parent=39 // pred_check
        %p228 = pneg %p33
      $region42: #{tpu_custom_call.1} parent=39 // pred_check_branch
        %230 = sbr.rel (%p228) target = $region44
      $region43: #{tpu_custom_call.1} parent=39 // pred_region
        %p231 = scmp.lt.s32.totalorder %s13, 1
        %s232 = scalar_select %p231, %s13, 1
        %s233 = smul.addr %s232, 32
        %s234 = smul.addr %s233, 4
        %s235 = scalar_lea.vmem %s0, %s234
      $region44: #{tpu_custom_call.1} parent=39 // pred_fallthru
        _
    $region40: #{tpu_custom_call.1} parent=5 // pred_fallthru
      _
    %p236 = scmp.le.s32.totalorder 1, %s13
    %p237 = scmp.lt.s32.totalorder %s13, 3
    %p238 = pnand %p236, %p237
    %p239 = pneg %p238
    // Predicated region
    $region45: #{tpu_custom_call.1} parent=5 // pred_check
      _
    $region46: #{tpu_custom_call.1} parent=5 // pred_check_branch
      %241 = sbr.rel (%p238) target = $region48
    $region47: #{tpu_custom_call.1} parent=5 // pred_region
      %s242 = ssub.s32 %s13, 1
      %p243 = scmp.lt.s32.totalorder %s18, 1
      %s244 = scalar_select %p243, %s18, 1
      %s245 = smul.addr %s244, 32
      %s246 = smul.addr %s245, 4
      %s247 = scalar_lea.vmem %s0, %s246
      %p248 = pneg %p39
      %p249 = pneg %p36
      %p250 = pneg %p60
      %p251 = pneg %p57
      %p252 = pneg %p81
      %p253 = pneg %p78
      %p254 = pneg %p102
      %p255 = pneg %p99
      %p256 = pneg %p123
      %p257 = pneg %p120
      %p258 = pneg %p144
      %p259 = pneg %p141
      %p260 = pneg %p165
      %p261 = pneg %p162
      %p262 = pneg %p191
      %p263 = pneg %p188
      %p264 = scmp.lt.s32.totalorder %s18, 1
      %s265 = scalar_select %p264, %s18, 1
      %s266 = smul.addr %s265, 32
      %s267 = smul.addr %s266, 4
      %s268 = scalar_lea.vmem %s7, %s267
      %p269 = scmp.lt.s32.totalorder %s18, 1
      %s270 = scalar_select %p269, %s18, 1
      %s271 = smul.addr %s270, 32
      %s272 = smul.addr %s271, 4
      %s273 = scalar_lea.vmem %s0, %s272
      %p274 = scmp.lt.s32.totalorder %s18, 1
      %s275 = scalar_select %p274, %s18, 1
      %s276 = smul.addr %s275, 32
      %s277 = smul.addr %s276, 4
      %s278 = scalar_lea.vmem %s7, %s277
      %v280 = vld [vmem:[%s273] sm:$0xf]
      %v281 = vld [vmem:[%s273 + $0x4] sm:$0xf]
      %v282 = vld [vmem:[%s273 + $0x8] sm:$0xf]
      %v283 = vld [vmem:[%s273 + $0xc] sm:$0xf]
      %v284 = vld [vmem:[%s273 + $0x10] sm:$0xf]
      %v285 = vld [vmem:[%s273 + $0x14] sm:$0xf]
      %v286 = vld [vmem:[%s273 + $0x18] sm:$0xf]
      %v287 = vld [vmem:[%s273 + $0x1c] sm:$0xf]
      %v288 = vld [vmem:[%s273 + $0x20] sm:$0xf]
      %v289 = vld [vmem:[%s273 + $0x24] sm:$0xf]
      %v290 = vld [vmem:[%s273 + $0x28] sm:$0xf]
      %v291 = vld [vmem:[%s273 + $0x2c] sm:$0xf]
      %v292 = vld [vmem:[%s273 + $0x30] sm:$0xf]
      %v293 = vld [vmem:[%s273 + $0x34] sm:$0xf]
      %v294 = vld [vmem:[%s273 + $0x38] sm:$0xf]
      %v295 = vld [vmem:[%s273 + $0x3c] sm:$0xf]
      %v296 = vld [vmem:[%s273 + $0x40] sm:$0xf]
      %v297 = vld [vmem:[%s273 + $0x44] sm:$0xf]
      %v298 = vld [vmem:[%s273 + $0x48] sm:$0xf]
      %v299 = vld [vmem:[%s273 + $0x4c] sm:$0xf]
      %v300 = vld [vmem:[%s273 + $0x50] sm:$0xf]
      %v301 = vld [vmem:[%s273 + $0x54] sm:$0xf]
      %v302 = vld [vmem:[%s273 + $0x58] sm:$0xf]
      %v303 = vld [vmem:[%s273 + $0x5c] sm:$0xf]
      %v304 = vld [vmem:[%s273 + $0x60] sm:$0xf]
      %v305 = vld [vmem:[%s273 + $0x64] sm:$0xf]
      %v306 = vld [vmem:[%s273 + $0x68] sm:$0xf]
      %v307 = vld [vmem:[%s273 + $0x6c] sm:$0xf]
      %v308 = vld [vmem:[%s273 + $0x70] sm:$0xf]
      %v309 = vld [vmem:[%s273 + $0x74] sm:$0xf]
      %v310 = vld [vmem:[%s273 + $0x78] sm:$0xf]
      %v311 = vld [vmem:[%s273 + $0x7c] sm:$0xf]
      %v312 = vld [vmem:[%s1] sm:$0xf]
      %v313 = vld [vmem:[%s1 + $0x4] sm:$0xf]
      %v314 = vld [vmem:[%s2] sm:$0x1]
      %v316 = vperm.slane %v314, 0
      %v350 = vunpack.c.l.b16 %v280
      %v351 = vunpack.c.l.b16 %v281
      %v352 = vunpack.c.l.b16 %v282
      %v353 = vunpack.c.l.b16 %v283
      %v354 = vunpack.c.l.b16 %v284
      %v355 = vunpack.c.l.b16 %v285
      %v356 = vunpack.c.l.b16 %v286
      %v357 = vunpack.c.l.b16 %v287
      %v358 = vunpack.c.l.b16 %v288
      %v359 = vunpack.c.l.b16 %v289
      %v360 = vunpack.c.l.b16 %v290
      %v361 = vunpack.c.l.b16 %v291
      %v362 = vunpack.c.l.b16 %v292
      %v363 = vunpack.c.l.b16 %v293
      %v364 = vunpack.c.l.b16 %v294
      %v365 = vunpack.c.l.b16 %v295
      %v366 = vunpack.c.l.b16 %v296
      %v367 = vunpack.c.l.b16 %v297
      %v368 = vunpack.c.l.b16 %v298
      %v369 = vunpack.c.l.b16 %v299
      %v370 = vunpack.c.l.b16 %v300
      %v371 = vunpack.c.l.b16 %v301
      %v372 = vunpack.c.l.b16 %v302
      %v373 = vunpack.c.l.b16 %v303
      %v374 = vunpack.c.l.b16 %v304
      %v375 = vunpack.c.l.b16 %v305
      %v376 = vunpack.c.l.b16 %v306
      %v377 = vunpack.c.l.b16 %v307
      %v378 = vunpack.c.l.b16 %v308
      %v379 = vunpack.c.l.b16 %v309
      %v380 = vunpack.c.l.b16 %v310
      %v381 = vunpack.c.l.b16 %v311
      %v382 = vpack.c.b16 %v351, %v350
      %v383 = vpack.c.b16 %v353, %v352
      %v384 = vpack.c.b16 %v355, %v354
      %v385 = vpack.c.b16 %v357, %v356
      %v386 = vpack.c.b16 %v359, %v358
      %v387 = vpack.c.b16 %v361, %v360
      %v388 = vpack.c.b16 %v363, %v362
      %v389 = vpack.c.b16 %v365, %v364
      %v390 = vpack.c.b16 %v367, %v366
      %v391 = vpack.c.b16 %v369, %v368
      %v392 = vpack.c.b16 %v371, %v370
      %v393 = vpack.c.b16 %v373, %v372
      %v394 = vpack.c.b16 %v375, %v374
      %v395 = vpack.c.b16 %v377, %v376
      %v396 = vpack.c.b16 %v379, %v378
      %v397 = vpack.c.b16 %v381, %v380
      %v400 = vunpack.c.l.b16 %v312
      %v401 = vunpack.c.l.b16 %v313
      %v402 = vpack.c.b16 %v401, %v400
      %vm404 = vcmask 130048
      %v406 = vsel %vm404, %v382, 0
      %v409 = vsel %vm404, %v383, 0
      %v412 = vsel %vm404, %v384, 0
      %v415 = vsel %vm404, %v385, 0
      %v418 = vsel %vm404, %v386, 0
      %v421 = vsel %vm404, %v387, 0
      %v424 = vsel %vm404, %v388, 0
      %v427 = vsel %vm404, %v389, 0
      %v430 = vsel %vm404, %v390, 0
      %v433 = vsel %vm404, %v391, 0
      %v436 = vsel %vm404, %v392, 0
      %v439 = vsel %vm404, %v393, 0
      %v442 = vsel %vm404, %v394, 0
      %v445 = vsel %vm404, %v395, 0
      %v448 = vsel %vm404, %v396, 0
      %v451 = vsel %vm404, %v397, 0
      %453 = vmatpush.bf16.msra.mxu0 0
      %454 = vmatpush.bf16.msra.mxu0 0
      %455 = vmatpush.bf16.msra.mxu0 0
      %456 = vmatpush.bf16.msra.mxu0 0
      %457 = vmatpush.bf16.msra.mxu0 0
      %458 = vmatpush.bf16.msra.mxu0 0
      %459 = vmatpush.bf16.msra.mxu0 0
      %460 = vmatpush.bf16.msra.mxu0 %v402
      %461 = vmatmul.bf16.gmra.mxu0 %v406
      %v462 = vpop.f32.mrf.mxu0
      %v463 = vadd.f32 %v316, %v462
      %v464 = vpop.f32.mrf.mxu0
      %v465 = vadd.f32 %v316, %v464
      %466 = vmatmul.bf16.gmra.mxu0 %v409
      %v467 = vpop.f32.mrf.mxu0
      %v468 = vadd.f32 %v316, %v467
      %v469 = vpop.f32.mrf.mxu0
      %v470 = vadd.f32 %v316, %v469
      %471 = vmatmul.bf16.gmra.mxu0 %v412
      %v472 = vpop.f32.mrf.mxu0
      %v473 = vadd.f32 %v316, %v472
      %v474 = vpop.f32.mrf.mxu0
      %v475 = vadd.f32 %v316, %v474
      %476 = vmatmul.bf16.gmra.mxu0 %v415
      %v477 = vpop.f32.mrf.mxu0
      %v478 = vadd.f32 %v316, %v477
      %v479 = vpop.f32.mrf.mxu0
      %v480 = vadd.f32 %v316, %v479
      %481 = vmatmul.bf16.gmra.mxu0 %v418
      %v482 = vpop.f32.mrf.mxu0
      %v483 = vadd.f32 %v316, %v482
      %v484 = vpop.f32.mrf.mxu0
      %v485 = vadd.f32 %v316, %v484
      %486 = vmatmul.bf16.gmra.mxu0 %v421
      %v487 = vpop.f32.mrf.mxu0
      %v488 = vadd.f32 %v316, %v487
      %v489 = vpop.f32.mrf.mxu0
      %v490 = vadd.f32 %v316, %v489
      %491 = vmatmul.bf16.gmra.mxu0 %v424
      %v492 = vpop.f32.mrf.mxu0
      %v493 = vadd.f32 %v316, %v492
      %v494 = vpop.f32.mrf.mxu0
      %v495 = vadd.f32 %v316, %v494
      %496 = vmatmul.bf16.gmra.mxu0 %v427
      %v497 = vpop.f32.mrf.mxu0
      %v498 = vadd.f32 %v316, %v497
      %v499 = vpop.f32.mrf.mxu0
      %v500 = vadd.f32 %v316, %v499
      %501 = vmatmul.bf16.gmra.mxu0 %v430
      %v502 = vpop.f32.mrf.mxu0
      %v503 = vadd.f32 %v316, %v502
      %v504 = vpop.f32.mrf.mxu0
      %v505 = vadd.f32 %v316, %v504
      %506 = vmatmul.bf16.gmra.mxu0 %v433
      %v507 = vpop.f32.mrf.mxu0
      %v508 = vadd.f32 %v316, %v507
      %v509 = vpop.f32.mrf.mxu0
      %v510 = vadd.f32 %v316, %v509
      %511 = vmatmul.bf16.gmra.mxu0 %v436
      %v512 = vpop.f32.mrf.mxu0
      %v513 = vadd.f32 %v316, %v512
      %v514 = vpop.f32.mrf.mxu0
      %v515 = vadd.f32 %v316, %v514
      %516 = vmatmul.bf16.gmra.mxu0 %v439
      %v517 = vpop.f32.mrf.mxu0
      %v518 = vadd.f32 %v316, %v517
      %v519 = vpop.f32.mrf.mxu0
      %v520 = vadd.f32 %v316, %v519
      %521 = vmatmul.bf16.gmra.mxu0 %v442
      %v522 = vpop.f32.mrf.mxu0
      %v523 = vadd.f32 %v316, %v522
      %v524 = vpop.f32.mrf.mxu0
      %v525 = vadd.f32 %v316, %v524
      %526 = vmatmul.bf16.gmra.mxu0 %v445
      %v527 = vpop.f32.mrf.mxu0
      %v528 = vadd.f32 %v316, %v527
      %v529 = vpop.f32.mrf.mxu0
      %v530 = vadd.f32 %v316, %v529
      %531 = vmatmul.bf16.gmra.mxu0 %v448
      %v532 = vpop.f32.mrf.mxu0
      %v533 = vadd.f32 %v316, %v532
      %v534 = vpop.f32.mrf.mxu0
      %v535 = vadd.f32 %v316, %v534
      %536 = vmatmul.bf16.gmra.mxu0 %v451
      %v537 = vpop.f32.mrf.mxu0
      %v538 = vadd.f32 %v316, %v537
      %v539 = vpop.f32.mrf.mxu0
      %v540 = vadd.f32 %v316, %v539
      %541 = vdwg.mxu0
      %v542 = vmax.f32 %v463, 0.0
      %v543 = vmax.f32 %v465, 0.0
      %v544 = vmax.f32 %v468, 0.0
      %v545 = vmax.f32 %v470, 0.0
      %v546 = vmax.f32 %v473, 0.0
      %v547 = vmax.f32 %v475, 0.0
      %v548 = vmax.f32 %v478, 0.0
      %v549 = vmax.f32 %v480, 0.0
      %v550 = vmax.f32 %v483, 0.0
      %v551 = vmax.f32 %v485, 0.0
      %v552 = vmax.f32 %v488, 0.0
      %v553 = vmax.f32 %v490, 0.0
      %v554 = vmax.f32 %v493, 0.0
      %v555 = vmax.f32 %v495, 0.0
      %v556 = vmax.f32 %v498, 0.0
      %v557 = vmax.f32 %v500, 0.0
      %v558 = vmax.f32 %v503, 0.0
      %v559 = vmax.f32 %v505, 0.0
      %v560 = vmax.f32 %v508, 0.0
      %v561 = vmax.f32 %v510, 0.0
      %v562 = vmax.f32 %v513, 0.0
      %v563 = vmax.f32 %v515, 0.0
      %v564 = vmax.f32 %v518, 0.0
      %v565 = vmax.f32 %v520, 0.0
      %v566 = vmax.f32 %v523, 0.0
      %v567 = vmax.f32 %v525, 0.0
      %v568 = vmax.f32 %v528, 0.0
      %v569 = vmax.f32 %v530, 0.0
      %v570 = vmax.f32 %v533, 0.0
      %v571 = vmax.f32 %v535, 0.0
      %v572 = vmax.f32 %v538, 0.0
      %v573 = vmax.f32 %v540, 0.0
      %vm574 = vcmask 27648
      %575 = vst.msk [vmem:[#allocation2] sm:$0xf] %vm574, 0
      %576 = vst.msk [vmem:[#allocation2 + $0x4] sm:$0xf] %vm574, 0
      %577 = vst.msk [vmem:[#allocation2 + $0x8] sm:$0xf] %vm574, 0
      %578 = vst.msk [vmem:[#allocation2 + $0xc] sm:$0xf] %vm574, 0
      %s579 = scalar_lea.vmem [#allocation2], 272
      %580 = vst.msk [vmem:[%s579] sm:$0xf] %vm574, 0
      %581 = vst.msk [vmem:[%s579 + $0x4] sm:$0xf] %vm574, 0
      %582 = vst.msk [vmem:[%s579 + $0x8] sm:$0xf] %vm574, 0
      %583 = vst.msk [vmem:[%s579 + $0xc] sm:$0xf] %vm574, 0
      %s584 = scalar_lea.vmem [#allocation2], 16
      %vm585 = vcmask 24576
      %vm586 = vsmask.f32 256
      %vm587 = vmand %vm585, %vm586
      %v588 = vld [vmem:[%s584] sm:$0x1]
      %v589 = vsel %vm587, 0, %v588
      %590 = vst [vmem:[%s584] sm:$0x1] %v589
      %v591 = vld [vmem:[%s584 + $0x10] sm:$0x1]
      %v592 = vsel %vm587, 0, %v591
      %593 = vst [vmem:[%s584 + $0x10] sm:$0x1] %v592
      %v594 = vld [vmem:[%s584 + $0x20] sm:$0x1]
      %v595 = vsel %vm587, 0, %v594
      %596 = vst [vmem:[%s584 + $0x20] sm:$0x1] %v595
      %v597 = vld [vmem:[%s584 + $0x30] sm:$0x1]
      %v598 = vsel %vm587, 0, %v597
      %599 = vst [vmem:[%s584 + $0x30] sm:$0x1] %v598
      %v600 = vld [vmem:[%s584 + $0x40] sm:$0x1]
      %v601 = vsel %vm587, 0, %v600
      %602 = vst [vmem:[%s584 + $0x40] sm:$0x1] %v601
      %v603 = vld [vmem:[%s584 + $0x50] sm:$0x1]
      %v604 = vsel %vm587, 0, %v603
      %605 = vst [vmem:[%s584 + $0x50] sm:$0x1] %v604
      %v606 = vld [vmem:[%s584 + $0x60] sm:$0x1]
      %v607 = vsel %vm587, 0, %v606
      %608 = vst [vmem:[%s584 + $0x60] sm:$0x1] %v607
      %v609 = vld [vmem:[%s584 + $0x70] sm:$0x1]
      %v610 = vsel %vm587, 0, %v609
      %611 = vst [vmem:[%s584 + $0x70] sm:$0x1] %v610
      %v612 = vld [vmem:[%s584 + $0x80] sm:$0x1]
      %v613 = vsel %vm587, 0, %v612
      %614 = vst [vmem:[%s584 + $0x80] sm:$0x1] %v613
      %v615 = vld [vmem:[%s584 + $0x90] sm:$0x1]
      %v616 = vsel %vm587, 0, %v615
      %617 = vst [vmem:[%s584 + $0x90] sm:$0x1] %v616
      %v618 = vld [vmem:[%s584 + $0xa0] sm:$0x1]
      %v619 = vsel %vm587, 0, %v618
      %620 = vst [vmem:[%s584 + $0xa0] sm:$0x1] %v619
      %v621 = vld [vmem:[%s584 + $0xb0] sm:$0x1]
      %v622 = vsel %vm587, 0, %v621
      %623 = vst [vmem:[%s584 + $0xb0] sm:$0x1] %v622
      %v624 = vld [vmem:[%s584 + $0xc0] sm:$0x1]
      %v625 = vsel %vm587, 0, %v624
      %626 = vst [vmem:[%s584 + $0xc0] sm:$0x1] %v625
      %v627 = vld [vmem:[%s584 + $0xd0] sm:$0x1]
      %v628 = vsel %vm587, 0, %v627
      %629 = vst [vmem:[%s584 + $0xd0] sm:$0x1] %v628
      %v630 = vld [vmem:[%s584 + $0xe0] sm:$0x1]
      %v631 = vsel %vm587, 0, %v630
      %632 = vst [vmem:[%s584 + $0xe0] sm:$0x1] %v631
      %v633 = vld [vmem:[%s584 + $0xf0] sm:$0x1]
      %v634 = vsel %vm587, 0, %v633
      %635 = vst [vmem:[%s584 + $0xf0] sm:$0x1] %v634
      %vm636 = vcmask 27648
      %vm637 = vsmask.f32 7938
      %vm638 = vmand %vm636, %vm637
      %v639 = vld [vmem:[%s584 + $0x8] sm:$0xf]
      %v640 = vsel %vm638, 0, %v639
      %641 = vst [vmem:[%s584 + $0x8] sm:$0xf] %v640
      %642 = vst.msk [vmem:[%s584 + $0xc] sm:$0xf] %vm574, 0
      %v643 = vld [vmem:[%s584 + $0x18] sm:$0xf]
      %v644 = vsel %vm638, 0, %v643
      %645 = vst [vmem:[%s584 + $0x18] sm:$0xf] %v644
      %646 = vst.msk [vmem:[%s584 + $0x1c] sm:$0xf] %vm574, 0
      %v647 = vld [vmem:[%s584 + $0x28] sm:$0xf]
      %v648 = vsel %vm638, 0, %v647
      %649 = vst [vmem:[%s584 + $0x28] sm:$0xf] %v648
      %650 = vst.msk [vmem:[%s584 + $0x2c] sm:$0xf] %vm574, 0
      %v651 = vld [vmem:[%s584 + $0x38] sm:$0xf]
      %v652 = vsel %vm638, 0, %v651
      %653 = vst [vmem:[%s584 + $0x38] sm:$0xf] %v652
      %654 = vst.msk [vmem:[%s584 + $0x3c] sm:$0xf] %vm574, 0
      %v655 = vld [vmem:[%s584 + $0x48] sm:$0xf]
      %v656 = vsel %vm638, 0, %v655
      %657 = vst [vmem:[%s584 + $0x48] sm:$0xf] %v656
      %658 = vst.msk [vmem:[%s584 + $0x4c] sm:$0xf] %vm574, 0
      %v659 = vld [vmem:[%s584 + $0x58] sm:$0xf]
      %v660 = vsel %vm638, 0, %v659
      %661 = vst [vmem:[%s584 + $0x58] sm:$0xf] %v660
      %662 = vst.msk [vmem:[%s584 + $0x5c] sm:$0xf] %vm574, 0
      %v663 = vld [vmem:[%s584 + $0x68] sm:$0xf]
      %v664 = vsel %vm638, 0, %v663
      %665 = vst [vmem:[%s584 + $0x68] sm:$0xf] %v664
      %666 = vst.msk [vmem:[%s584 + $0x6c] sm:$0xf] %vm574, 0
      %v667 = vld [vmem:[%s584 + $0x78] sm:$0xf]
      %v668 = vsel %vm638, 0, %v667
      %669 = vst [vmem:[%s584 + $0x78] sm:$0xf] %v668
      %670 = vst.msk [vmem:[%s584 + $0x7c] sm:$0xf] %vm574, 0
      %v671 = vld [vmem:[%s584 + $0x88] sm:$0xf]
      %v672 = vsel %vm638, 0, %v671
      %673 = vst [vmem:[%s584 + $0x88] sm:$0xf] %v672
      %674 = vst.msk [vmem:[%s584 + $0x8c] sm:$0xf] %vm574, 0
      %v675 = vld [vmem:[%s584 + $0x98] sm:$0xf]
      %v676 = vsel %vm638, 0, %v675
      %677 = vst [vmem:[%s584 + $0x98] sm:$0xf] %v676
      %678 = vst.msk [vmem:[%s584 + $0x9c] sm:$0xf] %vm574, 0
      %v679 = vld [vmem:[%s584 + $0xa8] sm:$0xf]
      %v680 = vsel %vm638, 0, %v679
      %681 = vst [vmem:[%s584 + $0xa8] sm:$0xf] %v680
      %682 = vst.msk [vmem:[%s584 + $0xac] sm:$0xf] %vm574, 0
      %v683 = vld [vmem:[%s584 + $0xb8] sm:$0xf]
      %v684 = vsel %vm638, 0, %v683
      %685 = vst [vmem:[%s584 + $0xb8] sm:$0xf] %v684
      %686 = vst.msk [vmem:[%s584 + $0xbc] sm:$0xf] %vm574, 0
      %v687 = vld [vmem:[%s584 + $0xc8] sm:$0xf]
      %v688 = vsel %vm638, 0, %v687
      %689 = vst [vmem:[%s584 + $0xc8] sm:$0xf] %v688
      %690 = vst.msk [vmem:[%s584 + $0xcc] sm:$0xf] %vm574, 0
      %v691 = vld [vmem:[%s584 + $0xd8] sm:$0xf]
      %v692 = vsel %vm638, 0, %v691
      %693 = vst [vmem:[%s584 + $0xd8] sm:$0xf] %v692
      %694 = vst.msk [vmem:[%s584 + $0xdc] sm:$0xf] %vm574, 0
      %v695 = vld [vmem:[%s584 + $0xe8] sm:$0xf]
      %v696 = vsel %vm638, 0, %v695
      %697 = vst [vmem:[%s584 + $0xe8] sm:$0xf] %v696
      %698 = vst.msk [vmem:[%s584 + $0xec] sm:$0xf] %vm574, 0
      %v699 = vld [vmem:[%s584 + $0xf8] sm:$0xf]
      %v700 = vsel %vm638, 0, %v699
      %701 = vst [vmem:[%s584 + $0xf8] sm:$0xf] %v700
      %702 = vst.msk [vmem:[%s584 + $0xfc] sm:$0xf] %vm574, 0
      %v703 = vpack.c.bf16 %v542, %v542
      %v704 = vpack.c.bf16 %v543, %v543
      %v705 = vpack.c.bf16 %v544, %v544
      %v706 = vpack.c.bf16 %v545, %v545
      %v707 = vpack.c.bf16 %v546, %v546
      %v708 = vpack.c.bf16 %v547, %v547
      %v709 = vpack.c.bf16 %v548, %v548
      %v710 = vpack.c.bf16 %v549, %v549
      %v711 = vpack.c.bf16 %v550, %v550
      %v712 = vpack.c.bf16 %v551, %v551
      %v713 = vpack.c.bf16 %v552, %v552
      %v714 = vpack.c.bf16 %v553, %v553
      %v715 = vpack.c.bf16 %v554, %v554
      %v716 = vpack.c.bf16 %v555, %v555
      %v717 = vpack.c.bf16 %v556, %v556
      %v718 = vpack.c.bf16 %v557, %v557
      %v719 = vpack.c.bf16 %v558, %v558
      %v720 = vpack.c.bf16 %v559, %v559
      %v721 = vpack.c.bf16 %v560, %v560
      %v722 = vpack.c.bf16 %v561, %v561
      %v723 = vpack.c.bf16 %v562, %v562
      %v724 = vpack.c.bf16 %v563, %v563
      %v725 = vpack.c.bf16 %v564, %v564
      %v726 = vpack.c.bf16 %v565, %v565
      %v727 = vpack.c.bf16 %v566, %v566
      %v728 = vpack.c.bf16 %v567, %v567
      %v729 = vpack.c.bf16 %v568, %v568
      %v730 = vpack.c.bf16 %v569, %v569
      %v731 = vpack.c.bf16 %v570, %v570
      %v732 = vpack.c.bf16 %v571, %v571
      %v733 = vpack.c.bf16 %v572, %v572
      %v734 = vpack.c.bf16 %v573, %v573
      %vm735 = vsmask.f32 4368
      %vm736 = vmor %vm586, %vm735
      %v738 = vshrl.u32 %v703, 16
      %v740 = vrot.slane %v738, 7
      %v741 = vshll.u32 %v703, 16
      %v743 = vor.u32 %v740, %v741
      %v744 = vrot.slane %v740, 4
      %v746 = vshrl.u32 %v704, 16
      %v748 = vrot.slane %v746, 7
      %v749 = vshll.u32 %v704, 16
      %v751 = vor.u32 %v748, %v749
      %v752 = vsel %vm736, %v744, %v751
      %v753 = vrot.slane %v748, 4
      %v755 = vshrl.u32 %v705, 16
      %v757 = vrot.slane %v755, 7
      %v758 = vshll.u32 %v705, 16
      %v760 = vor.u32 %v757, %v758
      %v761 = vrot.slane %v757, 4
      %v763 = vshrl.u32 %v706, 16
      %v765 = vrot.slane %v763, 7
      %v766 = vshll.u32 %v706, 16
      %v768 = vor.u32 %v765, %v766
      %v769 = vsel %vm736, %v761, %v768
      %v770 = vrot.slane %v765, 4
      %v772 = vshrl.u32 %v707, 16
      %v774 = vrot.slane %v772, 7
      %v775 = vshll.u32 %v707, 16
      %v777 = vor.u32 %v774, %v775
      %v778 = vrot.slane %v774, 4
      %v780 = vshrl.u32 %v708, 16
      %v782 = vrot.slane %v780, 7
      %v783 = vshll.u32 %v708, 16
      %v785 = vor.u32 %v782, %v783
      %v786 = vsel %vm736, %v778, %v785
      %v787 = vrot.slane %v782, 4
      %v789 = vshrl.u32 %v709, 16
      %v791 = vrot.slane %v789, 7
      %v792 = vshll.u32 %v709, 16
      %v794 = vor.u32 %v791, %v792
      %v795 = vrot.slane %v791, 4
      %v797 = vshrl.u32 %v710, 16
      %v799 = vrot.slane %v797, 7
      %v800 = vshll.u32 %v710, 16
      %v802 = vor.u32 %v799, %v800
      %v803 = vsel %vm736, %v795, %v802
      %v804 = vrot.slane %v799, 4
      %v806 = vshrl.u32 %v711, 16
      %v808 = vrot.slane %v806, 7
      %v809 = vshll.u32 %v711, 16
      %v811 = vor.u32 %v808, %v809
      %v812 = vrot.slane %v808, 4
      %v814 = vshrl.u32 %v712, 16
      %v816 = vrot.slane %v814, 7
      %v817 = vshll.u32 %v712, 16
      %v819 = vor.u32 %v816, %v817
      %v820 = vsel %vm736, %v812, %v819
      %v821 = vrot.slane %v816, 4
      %v823 = vshrl.u32 %v713, 16
      %v825 = vrot.slane %v823, 7
      %v826 = vshll.u32 %v713, 16
      %v828 = vor.u32 %v825, %v826
      %v829 = vrot.slane %v825, 4
      %v831 = vshrl.u32 %v714, 16
      %v833 = vrot.slane %v831, 7
      %v834 = vshll.u32 %v714, 16
      %v836 = vor.u32 %v833, %v834
      %v837 = vsel %vm736, %v829, %v836
      %v838 = vrot.slane %v833, 4
      %v840 = vshrl.u32 %v715, 16
      %v842 = vrot.slane %v840, 7
      %v843 = vshll.u32 %v715, 16
      %v845 = vor.u32 %v842, %v843
      %v846 = vrot.slane %v842, 4
      %v848 = vshrl.u32 %v716, 16
      %v850 = vrot.slane %v848, 7
      %v851 = vshll.u32 %v716, 16
      %v853 = vor.u32 %v850, %v851
      %v854 = vsel %vm736, %v846, %v853
      %v855 = vrot.slane %v850, 4
      %v857 = vshrl.u32 %v717, 16
      %v859 = vrot.slane %v857, 7
      %v860 = vshll.u32 %v717, 16
      %v862 = vor.u32 %v859, %v860
      %v863 = vrot.slane %v859, 4
      %v865 = vshrl.u32 %v718, 16
      %v867 = vrot.slane %v865, 7
      %v868 = vshll.u32 %v718, 16
      %v870 = vor.u32 %v867, %v868
      %v871 = vsel %vm736, %v863, %v870
      %v872 = vrot.slane %v867, 4
      %v874 = vshrl.u32 %v719, 16
      %v876 = vrot.slane %v874, 7
      %v877 = vshll.u32 %v719, 16
      %v879 = vor.u32 %v876, %v877
      %v880 = vrot.slane %v876, 4
      %v882 = vshrl.u32 %v720, 16
      %v884 = vrot.slane %v882, 7
      %v885 = vshll.u32 %v720, 16
      %v887 = vor.u32 %v884, %v885
      %v888 = vsel %vm736, %v880, %v887
      %v889 = vrot.slane %v884, 4
      %v891 = vshrl.u32 %v721, 16
      %v893 = vrot.slane %v891, 7
      %v894 = vshll.u32 %v721, 16
      %v896 = vor.u32 %v893, %v894
      %v897 = vrot.slane %v893, 4
      %v899 = vshrl.u32 %v722, 16
      %v901 = vrot.slane %v899, 7
      %v902 = vshll.u32 %v722, 16
      %v904 = vor.u32 %v901, %v902
      %v905 = vsel %vm736, %v897, %v904
      %v906 = vrot.slane %v901, 4
      %v908 = vshrl.u32 %v723, 16
      %v910 = vrot.slane %v908, 7
      %v911 = vshll.u32 %v723, 16
      %v913 = vor.u32 %v910, %v911
      %v914 = vrot.slane %v910, 4
      %v916 = vshrl.u32 %v724, 16
      %v918 = vrot.slane %v916, 7
      %v919 = vshll.u32 %v724, 16
      %v921 = vor.u32 %v918, %v919
      %v922 = vsel %vm736, %v914, %v921
      %v923 = vrot.slane %v918, 4
      %v925 = vshrl.u32 %v725, 16
      %v927 = vrot.slane %v925, 7
      %v928 = vshll.u32 %v725, 16
      %v930 = vor.u32 %v927, %v928
      %v931 = vrot.slane %v927, 4
      %v933 = vshrl.u32 %v726, 16
      %v935 = vrot.slane %v933, 7
      %v936 = vshll.u32 %v726, 16
      %v938 = vor.u32 %v935, %v936
      %v939 = vsel %vm736, %v931, %v938
      %v940 = vrot.slane %v935, 4
      %v942 = vshrl.u32 %v727, 16
      %v944 = vrot.slane %v942, 7
      %v945 = vshll.u32 %v727, 16
      %v947 = vor.u32 %v944, %v945
      %v948 = vrot.slane %v944, 4
      %v950 = vshrl.u32 %v728, 16
      %v952 = vrot.slane %v950, 7
      %v953 = vshll.u32 %v728, 16
      %v955 = vor.u32 %v952, %v953
      %v956 = vsel %vm736, %v948, %v955
      %v957 = vrot.slane %v952, 4
      %v959 = vshrl.u32 %v729, 16
      %v961 = vrot.slane %v959, 7
      %v962 = vshll.u32 %v729, 16
      %v964 = vor.u32 %v961, %v962
      %v965 = vrot.slane %v961, 4
      %v967 = vshrl.u32 %v730, 16
      %v969 = vrot.slane %v967, 7
      %v970 = vshll.u32 %v730, 16
      %v972 = vor.u32 %v969, %v970
      %v973 = vsel %vm736, %v965, %v972
      %v974 = vrot.slane %v969, 4
      %v976 = vshrl.u32 %v731, 16
      %v978 = vrot.slane %v976, 7
      %v979 = vshll.u32 %v731, 16
      %v981 = vor.u32 %v978, %v979
      %v982 = vrot.slane %v978, 4
      %v984 = vshrl.u32 %v732, 16
      %v986 = vrot.slane %v984, 7
      %v987 = vshll.u32 %v732, 16
      %v989 = vor.u32 %v986, %v987
      %v990 = vsel %vm736, %v982, %v989
      %v991 = vrot.slane %v986, 4
      %v993 = vshrl.u32 %v733, 16
      %v995 = vrot.slane %v993, 7
      %v996 = vshll.u32 %v733, 16
      %v998 = vor.u32 %v995, %v996
      %v999 = vrot.slane %v995, 4
      %v1001 = vshrl.u32 %v734, 16
      %v1003 = vrot.slane %v1001, 7
      %v1004 = vshll.u32 %v734, 16
      %v1006 = vor.u32 %v1003, %v1004
      %v1007 = vsel %vm736, %v999, %v1006
      %v1008 = vrot.slane %v1003, 4
      %v1057 = vld [vmem:[%s584] sm:$0xf]
      %v1058 = vsel %vm638, %v743, %v1057
      %1059 = vst [vmem:[%s584] sm:$0xf] %v1058
      %1060 = vst.msk [vmem:[%s584 + $0x4] sm:$0xf] %vm574, %v752
      %v1061 = vld [vmem:[%s584 + $0x8] sm:$0x1]
      %v1062 = vsel %vm587, %v753, %v1061
      %1063 = vst [vmem:[%s584 + $0x8] sm:$0x1] %v1062
      %v1064 = vld [vmem:[%s584 + $0x10] sm:$0xf]
      %v1065 = vsel %vm638, %v760, %v1064
      %1066 = vst [vmem:[%s584 + $0x10] sm:$0xf] %v1065
      %1067 = vst.msk [vmem:[%s584 + $0x14] sm:$0xf] %vm574, %v769
      %v1068 = vld [vmem:[%s584 + $0x18] sm:$0x1]
      %v1069 = vsel %vm587, %v770, %v1068
      %1070 = vst [vmem:[%s584 + $0x18] sm:$0x1] %v1069
      %v1071 = vld [vmem:[%s584 + $0x20] sm:$0xf]
      %v1072 = vsel %vm638, %v777, %v1071
      %1073 = vst [vmem:[%s584 + $0x20] sm:$0xf] %v1072
      %1074 = vst.msk [vmem:[%s584 + $0x24] sm:$0xf] %vm574, %v786
      %v1075 = vld [vmem:[%s584 + $0x28] sm:$0x1]
      %v1076 = vsel %vm587, %v787, %v1075
      %1077 = vst [vmem:[%s584 + $0x28] sm:$0x1] %v1076
      %v1078 = vld [vmem:[%s584 + $0x30] sm:$0xf]
      %v1079 = vsel %vm638, %v794, %v1078
      %1080 = vst [vmem:[%s584 + $0x30] sm:$0xf] %v1079
      %1081 = vst.msk [vmem:[%s584 + $0x34] sm:$0xf] %vm574, %v803
      %v1082 = vld [vmem:[%s584 + $0x38] sm:$0x1]
      %v1083 = vsel %vm587, %v804, %v1082
      %1084 = vst [vmem:[%s584 + $0x38] sm:$0x1] %v1083
      %v1085 = vld [vmem:[%s584 + $0x40] sm:$0xf]
      %v1086 = vsel %vm638, %v811, %v1085
      %1087 = vst [vmem:[%s584 + $0x40] sm:$0xf] %v1086
      %1088 = vst.msk [vmem:[%s584 + $0x44] sm:$0xf] %vm574, %v820
      %v1089 = vld [vmem:[%s584 + $0x48] sm:$0x1]
      %v1090 = vsel %vm587, %v821, %v1089
      %1091 = vst [vmem:[%s584 + $0x48] sm:$0x1] %v1090
      %v1092 = vld [vmem:[%s584 + $0x50] sm:$0xf]
      %v1093 = vsel %vm638, %v828, %v1092
      %1094 = vst [vmem:[%s584 + $0x50] sm:$0xf] %v1093
      %1095 = vst.msk [vmem:[%s584 + $0x54] sm:$0xf] %vm574, %v837
      %v1096 = vld [vmem:[%s584 + $0x58] sm:$0x1]
      %v1097 = vsel %vm587, %v838, %v1096
      %1098 = vst [vmem:[%s584 + $0x58] sm:$0x1] %v1097
      %v1099 = vld [vmem:[%s584 + $0x60] sm:$0xf]
      %v1100 = vsel %vm638, %v845, %v1099
      %1101 = vst [vmem:[%s584 + $0x60] sm:$0xf] %v1100
      %1102 = vst.msk [vmem:[%s584 + $0x64] sm:$0xf] %vm574, %v854
      %v1103 = vld [vmem:[%s584 + $0x68] sm:$0x1]
      %v1104 = vsel %vm587, %v855, %v1103
      %1105 = vst [vmem:[%s584 + $0x68] sm:$0x1] %v1104
      %v1106 = vld [vmem:[%s584 + $0x70] sm:$0xf]
      %v1107 = vsel %vm638, %v862, %v1106
      %1108 = vst [vmem:[%s584 + $0x70] sm:$0xf] %v1107
      %1109 = vst.msk [vmem:[%s584 + $0x74] sm:$0xf] %vm574, %v871
      %v1110 = vld [vmem:[%s584 + $0x78] sm:$0x1]
      %v1111 = vsel %vm587, %v872, %v1110
      %1112 = vst [vmem:[%s584 + $0x78] sm:$0x1] %v1111
      %v1113 = vld [vmem:[%s584 + $0x80] sm:$0xf]
      %v1114 = vsel %vm638, %v879, %v1113
      %1115 = vst [vmem:[%s584 + $0x80] sm:$0xf] %v1114
      %1116 = vst.msk [vmem:[%s584 + $0x84] sm:$0xf] %vm574, %v888
      %v1117 = vld [vmem:[%s584 + $0x88] sm:$0x1]
      %v1118 = vsel %vm587, %v889, %v1117
      %1119 = vst [vmem:[%s584 + $0x88] sm:$0x1] %v1118
      %v1120 = vld [vmem:[%s584 + $0x90] sm:$0xf]
      %v1121 = vsel %vm638, %v896, %v1120
      %1122 = vst [vmem:[%s584 + $0x90] sm:$0xf] %v1121
      %1123 = vst.msk [vmem:[%s584 + $0x94] sm:$0xf] %vm574, %v905
      %v1124 = vld [vmem:[%s584 + $0x98] sm:$0x1]
      %v1125 = vsel %vm587, %v906, %v1124
      %1126 = vst [vmem:[%s584 + $0x98] sm:$0x1] %v1125
      %v1127 = vld [vmem:[%s584 + $0xa0] sm:$0xf]
      %v1128 = vsel %vm638, %v913, %v1127
      %1129 = vst [vmem:[%s584 + $0xa0] sm:$0xf] %v1128
      %1130 = vst.msk [vmem:[%s584 + $0xa4] sm:$0xf] %vm574, %v922
      %v1131 = vld [vmem:[%s584 + $0xa8] sm:$0x1]
      %v1132 = vsel %vm587, %v923, %v1131
      %1133 = vst [vmem:[%s584 + $0xa8] sm:$0x1] %v1132
      %v1134 = vld [vmem:[%s584 + $0xb0] sm:$0xf]
      %v1135 = vsel %vm638, %v930, %v1134
      %1136 = vst [vmem:[%s584 + $0xb0] sm:$0xf] %v1135
      %1137 = vst.msk [vmem:[%s584 + $0xb4] sm:$0xf] %vm574, %v939
      %v1138 = vld [vmem:[%s584 + $0xb8] sm:$0x1]
      %v1139 = vsel %vm587, %v940, %v1138
      %1140 = vst [vmem:[%s584 + $0xb8] sm:$0x1] %v1139
      %v1141 = vld [vmem:[%s584 + $0xc0] sm:$0xf]
      %v1142 = vsel %vm638, %v947, %v1141
      %1143 = vst [vmem:[%s584 + $0xc0] sm:$0xf] %v1142
      %1144 = vst.msk [vmem:[%s584 + $0xc4] sm:$0xf] %vm574, %v956
      %v1145 = vld [vmem:[%s584 + $0xc8] sm:$0x1]
      %v1146 = vsel %vm587, %v957, %v1145
      %1147 = vst [vmem:[%s584 + $0xc8] sm:$0x1] %v1146
      %v1148 = vld [vmem:[%s584 + $0xd0] sm:$0xf]
      %v1149 = vsel %vm638, %v964, %v1148
      %1150 = vst [vmem:[%s584 + $0xd0] sm:$0xf] %v1149
      %1151 = vst.msk [vmem:[%s584 + $0xd4] sm:$0xf] %vm574, %v973
      %v1152 = vld [vmem:[%s584 + $0xd8] sm:$0x1]
      %v1153 = vsel %vm587, %v974, %v1152
      %1154 = vst [vmem:[%s584 + $0xd8] sm:$0x1] %v1153
      %v1155 = vld [vmem:[%s584 + $0xe0] sm:$0xf]
      %v1156 = vsel %vm638, %v981, %v1155
      %1157 = vst [vmem:[%s584 + $0xe0] sm:$0xf] %v1156
      %1158 = vst.msk [vmem:[%s584 + $0xe4] sm:$0xf] %vm574, %v990
      %v1159 = vld [vmem:[%s584 + $0xe8] sm:$0x1]
      %v1160 = vsel %vm587, %v991, %v1159
      %1161 = vst [vmem:[%s584 + $0xe8] sm:$0x1] %v1160
      %v1162 = vld [vmem:[%s584 + $0xf0] sm:$0xf]
      %v1163 = vsel %vm638, %v998, %v1162
      %1164 = vst [vmem:[%s584 + $0xf0] sm:$0xf] %v1163
      %1165 = vst.msk [vmem:[%s584 + $0xf4] sm:$0xf] %vm574, %v1007
      %v1166 = vld [vmem:[%s584 + $0xf8] sm:$0x1]
      %v1167 = vsel %vm587, %v1008, %v1166
      %1168 = vst [vmem:[%s584 + $0xf8] sm:$0x1] %v1167
      %v1169 = vld [vmem:[#allocation2] sm:$0xf]
      %v1170 = vld [vmem:[#allocation2 + $0x4] sm:$0xf]
      %v1171 = vld [vmem:[#allocation2 + $0x8] sm:$0xf]
      %v1172 = vld [vmem:[#allocation2 + $0x10] sm:$0xf]
      %v1173 = vld [vmem:[#allocation2 + $0x14] sm:$0xf]
      %v1174 = vld [vmem:[#allocation2 + $0x18] sm:$0xf]
      %v1175 = vld [vmem:[#allocation2 + $0x20] sm:$0xf]
      %v1176 = vld [vmem:[#allocation2 + $0x24] sm:$0xf]
      %v1177 = vld [vmem:[#allocation2 + $0x28] sm:$0xf]
      %v1178 = vld [vmem:[#allocation2 + $0x30] sm:$0xf]
      %v1179 = vld [vmem:[#allocation2 + $0x34] sm:$0xf]
      %v1180 = vld [vmem:[#allocation2 + $0x38] sm:$0xf]
      %v1181 = vld [vmem:[#allocation2 + $0x40] sm:$0xf]
      %v1182 = vld [vmem:[#allocation2 + $0x44] sm:$0xf]
      %v1183 = vld [vmem:[#allocation2 + $0x48] sm:$0xf]
      %v1184 = vld [vmem:[#allocation2 + $0x50] sm:$0xf]
      %v1185 = vld [vmem:[#allocation2 + $0x54] sm:$0xf]
      %v1186 = vld [vmem:[#allocation2 + $0x58] sm:$0xf]
      %v1187 = vld [vmem:[#allocation2 + $0x60] sm:$0xf]
      %v1188 = vld [vmem:[#allocation2 + $0x64] sm:$0xf]
      %v1189 = vld [vmem:[#allocation2 + $0x68] sm:$0xf]
      %v1190 = vld [vmem:[#allocation2 + $0x70] sm:$0xf]
      %v1191 = vld [vmem:[#allocation2 + $0x74] sm:$0xf]
      %v1192 = vld [vmem:[#allocation2 + $0x78] sm:$0xf]
      %v1193 = vld [vmem:[#allocation2 + $0x80] sm:$0xf]
      %v1194 = vld [vmem:[#allocation2 + $0x84] sm:$0xf]
      %v1195 = vld [vmem:[#allocation2 + $0x88] sm:$0xf]
      %v1196 = vld [vmem:[#allocation2 + $0x90] sm:$0xf]
      %v1197 = vld [vmem:[#allocation2 + $0x94] sm:$0xf]
      %v1198 = vld [vmem:[#allocation2 + $0x98] sm:$0xf]
      %v1199 = vld [vmem:[#allocation2 + $0xa0] sm:$0xf]
      %v1200 = vld [vmem:[#allocation2 + $0xa4] sm:$0xf]
      %v1201 = vld [vmem:[#allocation2 + $0xa8] sm:$0xf]
      %v1202 = vld [vmem:[#allocation2 + $0xb0] sm:$0xf]
      %v1203 = vld [vmem:[#allocation2 + $0xb4] sm:$0xf]
      %v1204 = vld [vmem:[#allocation2 + $0xb8] sm:$0xf]
      %v1205 = vld [vmem:[#allocation2 + $0xc0] sm:$0xf]
      %v1206 = vld [vmem:[#allocation2 + $0xc4] sm:$0xf]
      %v1207 = vld [vmem:[#allocation2 + $0xc8] sm:$0xf]
      %v1208 = vld [vmem:[#allocation2 + $0xd0] sm:$0xf]
      %v1209 = vld [vmem:[#allocation2 + $0xd4] sm:$0xf]
      %v1210 = vld [vmem:[#allocation2 + $0xd8] sm:$0xf]
      %v1211 = vld [vmem:[#allocation2 + $0xe0] sm:$0xf]
      %v1212 = vld [vmem:[#allocation2 + $0xe4] sm:$0xf]
      %v1213 = vld [vmem:[#allocation2 + $0xe8] sm:$0xf]
      %v1214 = vld [vmem:[#allocation2 + $0xf0] sm:$0xf]
      %v1215 = vld [vmem:[#allocation2 + $0xf4] sm:$0xf]
      %v1216 = vld [vmem:[#allocation2 + $0xf8] sm:$0xf]
      %v1249 = vunpack.c.l.b16 %v1169
      %v1250 = vunpack.c.l.b16 %v1170
      %v1251 = vunpack.c.l.b16 %v1172
      %v1252 = vunpack.c.l.b16 %v1173
      %v1253 = vunpack.c.l.b16 %v1175
      %v1254 = vunpack.c.l.b16 %v1176
      %v1255 = vunpack.c.l.b16 %v1178
      %v1256 = vunpack.c.l.b16 %v1179
      %v1257 = vunpack.c.l.b16 %v1181
      %v1258 = vunpack.c.l.b16 %v1182
      %v1259 = vunpack.c.l.b16 %v1184
      %v1260 = vunpack.c.l.b16 %v1185
      %v1261 = vunpack.c.l.b16 %v1187
      %v1262 = vunpack.c.l.b16 %v1188
      %v1263 = vunpack.c.l.b16 %v1190
      %v1264 = vunpack.c.l.b16 %v1191
      %v1265 = vunpack.c.l.b16 %v1193
      %v1266 = vunpack.c.l.b16 %v1194
      %v1267 = vunpack.c.l.b16 %v1196
      %v1268 = vunpack.c.l.b16 %v1197
      %v1269 = vunpack.c.l.b16 %v1199
      %v1270 = vunpack.c.l.b16 %v1200
      %v1271 = vunpack.c.l.b16 %v1202
      %v1272 = vunpack.c.l.b16 %v1203
      %v1273 = vunpack.c.l.b16 %v1205
      %v1274 = vunpack.c.l.b16 %v1206
      %v1275 = vunpack.c.l.b16 %v1208
      %v1276 = vunpack.c.l.b16 %v1209
      %v1277 = vunpack.c.l.b16 %v1211
      %v1278 = vunpack.c.l.b16 %v1212
      %v1279 = vunpack.c.l.b16 %v1214
      %v1280 = vunpack.c.l.b16 %v1215
      %v1281 = vpack.c.b16 %v1250, %v1249
      %v1282 = vpack.c.b16 %v1252, %v1251
      %v1283 = vpack.c.b16 %v1254, %v1253
      %v1284 = vpack.c.b16 %v1256, %v1255
      %v1285 = vpack.c.b16 %v1258, %v1257
      %v1286 = vpack.c.b16 %v1260, %v1259
      %v1287 = vpack.c.b16 %v1262, %v1261
      %v1288 = vpack.c.b16 %v1264, %v1263
      %v1289 = vpack.c.b16 %v1266, %v1265
      %v1290 = vpack.c.b16 %v1268, %v1267
      %v1291 = vpack.c.b16 %v1270, %v1269
      %v1292 = vpack.c.b16 %v1272, %v1271
      %v1293 = vpack.c.b16 %v1274, %v1273
      %v1294 = vpack.c.b16 %v1276, %v1275
      %v1295 = vpack.c.b16 %v1278, %v1277
      %v1296 = vpack.c.b16 %v1280, %v1279
      %v1313 = vunpack.c.l.b16 %v1171
      %v1314 = vunpack.c.l.b16 %v1174
      %v1315 = vunpack.c.l.b16 %v1177
      %v1316 = vunpack.c.l.b16 %v1180
      %v1317 = vunpack.c.l.b16 %v1183
      %v1318 = vunpack.c.l.b16 %v1186
      %v1319 = vunpack.c.l.b16 %v1189
      %v1320 = vunpack.c.l.b16 %v1192
      %v1321 = vunpack.c.l.b16 %v1195
      %v1322 = vunpack.c.l.b16 %v1198
      %v1323 = vunpack.c.l.b16 %v1201
      %v1324 = vunpack.c.l.b16 %v1204
      %v1325 = vunpack.c.l.b16 %v1207
      %v1326 = vunpack.c.l.b16 %v1210
      %v1327 = vunpack.c.l.b16 %v1213
      %v1328 = vunpack.c.l.b16 %v1216
      %v1329 = vpack.c.b16 %v1313, %v1313
      %v1330 = vpack.c.b16 %v1314, %v1314
      %v1331 = vpack.c.b16 %v1315, %v1315
      %v1332 = vpack.c.b16 %v1316, %v1316
      %v1333 = vpack.c.b16 %v1317, %v1317
      %v1334 = vpack.c.b16 %v1318, %v1318
      %v1335 = vpack.c.b16 %v1319, %v1319
      %v1336 = vpack.c.b16 %v1320, %v1320
      %v1337 = vpack.c.b16 %v1321, %v1321
      %v1338 = vpack.c.b16 %v1322, %v1322
      %v1339 = vpack.c.b16 %v1323, %v1323
      %v1340 = vpack.c.b16 %v1324, %v1324
      %v1341 = vpack.c.b16 %v1325, %v1325
      %v1342 = vpack.c.b16 %v1326, %v1326
      %v1343 = vpack.c.b16 %v1327, %v1327
      %v1344 = vpack.c.b16 %v1328, %v1328
      %vm1345 = vsmask.f32 7424
      %v1347 = vshrl.u32 %v1281, 16
      %v1349 = vshll.u32 %v1281, 16
      %v1351 = vrot.slane %v1349, 1
      %v1352 = vor.u32 %v1347, %v1351
      %v1354 = vshll.u32 %v1329, 16
      %v1356 = vrot.slane %v1354, 1
      %v1357 = vsel %vm1345, %v1352, %v1356
      %v1359 = vshrl.u32 %v1282, 16
      %v1361 = vshll.u32 %v1282, 16
      %v1363 = vrot.slane %v1361, 1
      %v1364 = vor.u32 %v1359, %v1363
      %v1366 = vshll.u32 %v1330, 16
      %v1368 = vrot.slane %v1366, 1
      %v1369 = vsel %vm1345, %v1364, %v1368
      %v1371 = vshrl.u32 %v1283, 16
      %v1373 = vshll.u32 %v1283, 16
      %v1375 = vrot.slane %v1373, 1
      %v1376 = vor.u32 %v1371, %v1375
      %v1378 = vshll.u32 %v1331, 16
      %v1380 = vrot.slane %v1378, 1
      %v1381 = vsel %vm1345, %v1376, %v1380
      %v1383 = vshrl.u32 %v1284, 16
      %v1385 = vshll.u32 %v1284, 16
      %v1387 = vrot.slane %v1385, 1
      %v1388 = vor.u32 %v1383, %v1387
      %v1390 = vshll.u32 %v1332, 16
      %v1392 = vrot.slane %v1390, 1
      %v1393 = vsel %vm1345, %v1388, %v1392
      %v1395 = vshrl.u32 %v1285, 16
      %v1397 = vshll.u32 %v1285, 16
      %v1399 = vrot.slane %v1397, 1
      %v1400 = vor.u32 %v1395, %v1399
      %v1402 = vshll.u32 %v1333, 16
      %v1404 = vrot.slane %v1402, 1
      %v1405 = vsel %vm1345, %v1400, %v1404
      %v1407 = vshrl.u32 %v1286, 16
      %v1409 = vshll.u32 %v1286, 16
      %v1411 = vrot.slane %v1409, 1
      %v1412 = vor.u32 %v1407, %v1411
      %v1414 = vshll.u32 %v1334, 16
      %v1416 = vrot.slane %v1414, 1
      %v1417 = vsel %vm1345, %v1412, %v1416
      %v1419 = vshrl.u32 %v1287, 16
      %v1421 = vshll.u32 %v1287, 16
      %v1423 = vrot.slane %v1421, 1
      %v1424 = vor.u32 %v1419, %v1423
      %v1426 = vshll.u32 %v1335, 16
      %v1428 = vrot.slane %v1426, 1
      %v1429 = vsel %vm1345, %v1424, %v1428
      %v1431 = vshrl.u32 %v1288, 16
      %v1433 = vshll.u32 %v1288, 16
      %v1435 = vrot.slane %v1433, 1
      %v1436 = vor.u32 %v1431, %v1435
      %v1438 = vshll.u32 %v1336, 16
      %v1440 = vrot.slane %v1438, 1
      %v1441 = vsel %vm1345, %v1436, %v1440
      %v1443 = vshrl.u32 %v1289, 16
      %v1445 = vshll.u32 %v1289, 16
      %v1447 = vrot.slane %v1445, 1
      %v1448 = vor.u32 %v1443, %v1447
      %v1450 = vshll.u32 %v1337, 16
      %v1452 = vrot.slane %v1450, 1
      %v1453 = vsel %vm1345, %v1448, %v1452
      %v1455 = vshrl.u32 %v1290, 16
      %v1457 = vshll.u32 %v1290, 16
      %v1459 = vrot.slane %v1457, 1
      %v1460 = vor.u32 %v1455, %v1459
      %v1462 = vshll.u32 %v1338, 16
      %v1464 = vrot.slane %v1462, 1
      %v1465 = vsel %vm1345, %v1460, %v1464
      %v1467 = vshrl.u32 %v1291, 16
      %v1469 = vshll.u32 %v1291, 16
      %v1471 = vrot.slane %v1469, 1
      %v1472 = vor.u32 %v1467, %v1471
      %v1474 = vshll.u32 %v1339, 16
      %v1476 = vrot.slane %v1474, 1
      %v1477 = vsel %vm1345, %v1472, %v1476
      %v1479 = vshrl.u32 %v1292, 16
      %v1481 = vshll.u32 %v1292, 16
      %v1483 = vrot.slane %v1481, 1
      %v1484 = vor.u32 %v1479, %v1483
      %v1486 = vshll.u32 %v1340, 16
      %v1488 = vrot.slane %v1486, 1
      %v1489 = vsel %vm1345, %v1484, %v1488
      %v1491 = vshrl.u32 %v1293, 16
      %v1493 = vshll.u32 %v1293, 16
      %v1495 = vrot.slane %v1493, 1
      %v1496 = vor.u32 %v1491, %v1495
      %v1498 = vshll.u32 %v1341, 16
      %v1500 = vrot.slane %v1498, 1
      %v1501 = vsel %vm1345, %v1496, %v1500
      %v1503 = vshrl.u32 %v1294, 16
      %v1505 = vshll.u32 %v1294, 16
      %v1507 = vrot.slane %v1505, 1
      %v1508 = vor.u32 %v1503, %v1507
      %v1510 = vshll.u32 %v1342, 16
      %v1512 = vrot.slane %v1510, 1
      %v1513 = vsel %vm1345, %v1508, %v1512
      %v1515 = vshrl.u32 %v1295, 16
      %v1517 = vshll.u32 %v1295, 16
      %v1519 = vrot.slane %v1517, 1
      %v1520 = vor.u32 %v1515, %v1519
      %v1522 = vshll.u32 %v1343, 16
      %v1524 = vrot.slane %v1522, 1
      %v1525 = vsel %vm1345, %v1520, %v1524
      %v1527 = vshrl.u32 %v1296, 16
      %v1529 = vshll.u32 %v1296, 16
      %v1531 = vrot.slane %v1529, 1
      %v1532 = vor.u32 %v1527, %v1531
      %v1534 = vshll.u32 %v1344, 16
      %v1536 = vrot.slane %v1534, 1
      %v1537 = vsel %vm1345, %v1532, %v1536
      %1538 = vrot.lane.b32.xlu0 %v1357, 4
      %v1539 = vpop.permute.xlu0 %1538
      %1540 = vrot.lane.b32.xlu0 %v1369, 4
      %v1541 = vpop.permute.xlu0 %1540
      %1542 = vrot.lane.b32.xlu0 %v1381, 4
      %v1543 = vpop.permute.xlu0 %1542
      %1544 = vrot.lane.b32.xlu0 %v1393, 4
      %v1545 = vpop.permute.xlu0 %1544
      %1546 = vrot.lane.b32.xlu0 %v1405, 4
      %v1547 = vpop.permute.xlu0 %1546
      %1548 = vrot.lane.b32.xlu0 %v1417, 4
      %v1549 = vpop.permute.xlu0 %1548
      %1550 = vrot.lane.b32.xlu0 %v1429, 4
      %v1551 = vpop.permute.xlu0 %1550
      %1552 = vrot.lane.b32.xlu0 %v1441, 4
      %v1553 = vpop.permute.xlu0 %1552
      %1554 = vrot.lane.b32.xlu0 %v1453, 4
      %v1555 = vpop.permute.xlu0 %1554
      %1556 = vrot.lane.b32.xlu0 %v1465, 4
      %v1557 = vpop.permute.xlu0 %1556
      %1558 = vrot.lane.b32.xlu0 %v1477, 4
      %v1559 = vpop.permute.xlu0 %1558
      %1560 = vrot.lane.b32.xlu0 %v1489, 4
      %v1561 = vpop.permute.xlu0 %1560
      %1562 = vrot.lane.b32.xlu0 %v1501, 4
      %v1563 = vpop.permute.xlu0 %1562
      %1564 = vrot.lane.b32.xlu0 %v1513, 4
      %v1565 = vpop.permute.xlu0 %1564
      %1566 = vrot.lane.b32.xlu0 %v1525, 4
      %v1567 = vpop.permute.xlu0 %1566
      %1568 = vrot.lane.b32.xlu0 %v1537, 4
      %v1569 = vpop.permute.xlu0 %1568
      %vm1570 = vcmask 1046528
      %v1571 = vrot.slane %v1281, 1
      %v1572 = vrot.slane %v1329, 1
      %v1573 = vsel %vm1570, %v1571, %v1572
      %v1574 = vrot.slane %v1282, 1
      %v1575 = vrot.slane %v1330, 1
      %v1576 = vsel %vm1570, %v1574, %v1575
      %v1577 = vrot.slane %v1283, 1
      %v1578 = vrot.slane %v1331, 1
      %v1579 = vsel %vm1570, %v1577, %v1578
      %v1580 = vrot.slane %v1284, 1
      %v1581 = vrot.slane %v1332, 1
      %v1582 = vsel %vm1570, %v1580, %v1581
      %v1583 = vrot.slane %v1285, 1
      %v1584 = vrot.slane %v1333, 1
      %v1585 = vsel %vm1570, %v1583, %v1584
      %v1586 = vrot.slane %v1286, 1
      %v1587 = vrot.slane %v1334, 1
      %v1588 = vsel %vm1570, %v1586, %v1587
      %v1589 = vrot.slane %v1287, 1
      %v1590 = vrot.slane %v1335, 1
      %v1591 = vsel %vm1570, %v1589, %v1590
      %v1592 = vrot.slane %v1288, 1
      %v1593 = vrot.slane %v1336, 1
      %v1594 = vsel %vm1570, %v1592, %v1593
      %v1595 = vrot.slane %v1289, 1
      %v1596 = vrot.slane %v1337, 1
      %v1597 = vsel %vm1570, %v1595, %v1596
      %v1598 = vrot.slane %v1290, 1
      %v1599 = vrot.slane %v1338, 1
      %v1600 = vsel %vm1570, %v1598, %v1599
      %v1601 = vrot.slane %v1291, 1
      %v1602 = vrot.slane %v1339, 1
      %v1603 = vsel %vm1570, %v1601, %v1602
      %v1604 = vrot.slane %v1292, 1
      %v1605 = vrot.slane %v1340, 1
      %v1606 = vsel %vm1570, %v1604, %v1605
      %v1607 = vrot.slane %v1293, 1
      %v1608 = vrot.slane %v1341, 1
      %v1609 = vsel %vm1570, %v1607, %v1608
      %v1610 = vrot.slane %v1294, 1
      %v1611 = vrot.slane %v1342, 1
      %v1612 = vsel %vm1570, %v1610, %v1611
      %v1613 = vrot.slane %v1295, 1
      %v1614 = vrot.slane %v1343, 1
      %v1615 = vsel %vm1570, %v1613, %v1614
      %v1616 = vrot.slane %v1296, 1
      %v1617 = vrot.slane %v1344, 1
      %v1618 = vsel %vm1570, %v1616, %v1617
      %1619 = vrot.lane.b32.xlu0 %v1573, 8
      %v1620 = vpop.permute.xlu0 %1619
      %1621 = vrot.lane.b32.xlu0 %v1576, 8
      %v1622 = vpop.permute.xlu0 %1621
      %1623 = vrot.lane.b32.xlu0 %v1579, 8
      %v1624 = vpop.permute.xlu0 %1623
      %1625 = vrot.lane.b32.xlu0 %v1582, 8
      %v1626 = vpop.permute.xlu0 %1625
      %1627 = vrot.lane.b32.xlu0 %v1585, 8
      %v1628 = vpop.permute.xlu0 %1627
      %1629 = vrot.lane.b32.xlu0 %v1588, 8
      %v1630 = vpop.permute.xlu0 %1629
      %1631 = vrot.lane.b32.xlu0 %v1591, 8
      %v1632 = vpop.permute.xlu0 %1631
      %1633 = vrot.lane.b32.xlu0 %v1594, 8
      %v1634 = vpop.permute.xlu0 %1633
      %1635 = vrot.lane.b32.xlu0 %v1597, 8
      %v1636 = vpop.permute.xlu0 %1635
      %1637 = vrot.lane.b32.xlu0 %v1600, 8
      %v1638 = vpop.permute.xlu0 %1637
      %1639 = vrot.lane.b32.xlu0 %v1603, 8
      %v1640 = vpop.permute.xlu0 %1639
      %1641 = vrot.lane.b32.xlu0 %v1606, 8
      %v1642 = vpop.permute.xlu0 %1641
      %1643 = vrot.lane.b32.xlu0 %v1609, 8
      %v1644 = vpop.permute.xlu0 %1643
      %1645 = vrot.lane.b32.xlu0 %v1612, 8
      %v1646 = vpop.permute.xlu0 %1645
      %1647 = vrot.lane.b32.xlu0 %v1615, 8
      %v1648 = vpop.permute.xlu0 %1647
      %1649 = vrot.lane.b32.xlu0 %v1618, 8
      %v1650 = vpop.permute.xlu0 %1649
      %vm1651 = vcmask 31744
      %v1653 = vsel %vm1651, %v1281, %v1539
      %v1655 = vsel %vm1651, %v1282, %v1541
      %v1657 = vsel %vm1651, %v1283, %v1543
      %v1659 = vsel %vm1651, %v1284, %v1545
      %v1661 = vsel %vm1651, %v1285, %v1547
      %v1663 = vsel %vm1651, %v1286, %v1549
      %v1665 = vsel %vm1651, %v1287, %v1551
      %v1667 = vsel %vm1651, %v1288, %v1553
      %v1669 = vsel %vm1651, %v1289, %v1555
      %v1671 = vsel %vm1651, %v1290, %v1557
      %v1673 = vsel %vm1651, %v1291, %v1559
      %v1675 = vsel %vm1651, %v1292, %v1561
      %v1677 = vsel %vm1651, %v1293, %v1563
      %v1679 = vsel %vm1651, %v1294, %v1565
      %v1681 = vsel %vm1651, %v1295, %v1567
      %v1683 = vsel %vm1651, %v1296, %v1569
      %vm1684 = vcmask 64512
      %v1686 = vsel %vm1684, %v1653, %v1620
      %v1688 = vsel %vm1684, %v1655, %v1622
      %v1690 = vsel %vm1684, %v1657, %v1624
      %v1692 = vsel %vm1684, %v1659, %v1626
      %v1694 = vsel %vm1684, %v1661, %v1628
      %v1696 = vsel %vm1684, %v1663, %v1630
      %v1698 = vsel %vm1684, %v1665, %v1632
      %v1700 = vsel %vm1684, %v1667, %v1634
      %v1702 = vsel %vm1684, %v1669, %v1636
      %v1704 = vsel %vm1684, %v1671, %v1638
      %v1706 = vsel %vm1684, %v1673, %v1640
      %v1708 = vsel %vm1684, %v1675, %v1642
      %v1710 = vsel %vm1684, %v1677, %v1644
      %v1712 = vsel %vm1684, %v1679, %v1646
      %v1714 = vsel %vm1684, %v1681, %v1648
      %v1716 = vsel %vm1684, %v1683, %v1650
      %v1717 = vld [vmem:[%s3] sm:$0xf]
      %v1718 = vld [vmem:[%s3 + $0x4] sm:$0x3]
      %v1719 = vld [vmem:[%s584] sm:$0xf]
      %v1720 = vld [vmem:[%s584 + $0x4] sm:$0xf]
      %v1721 = vld [vmem:[%s584 + $0x8] sm:$0xf]
      %v1722 = vld [vmem:[%s584 + $0x10] sm:$0xf]
      %v1723 = vld [vmem:[%s584 + $0x14] sm:$0xf]
      %v1724 = vld [vmem:[%s584 + $0x18] sm:$0xf]
      %v1725 = vld [vmem:[%s584 + $0x20] sm:$0xf]
      %v1726 = vld [vmem:[%s584 + $0x24] sm:$0xf]
      %v1727 = vld [vmem:[%s584 + $0x28] sm:$0xf]
      %v1728 = vld [vmem:[%s584 + $0x30] sm:$0xf]
      %v1729 = vld [vmem:[%s584 + $0x34] sm:$0xf]
      %v1730 = vld [vmem:[%s584 + $0x38] sm:$0xf]
      %v1731 = vld [vmem:[%s584 + $0x40] sm:$0xf]
      %v1732 = vld [vmem:[%s584 + $0x44] sm:$0xf]
      %v1733 = vld [vmem:[%s584 + $0x48] sm:$0xf]
      %v1734 = vld [vmem:[%s584 + $0x50] sm:$0xf]
      %v1735 = vld [vmem:[%s584 + $0x54] sm:$0xf]
      %v1736 = vld [vmem:[%s584 + $0x58] sm:$0xf]
      %v1737 = vld [vmem:[%s584 + $0x60] sm:$0xf]
      %v1738 = vld [vmem:[%s584 + $0x64] sm:$0xf]
      %v1739 = vld [vmem:[%s584 + $0x68] sm:$0xf]
      %v1740 = vld [vmem:[%s584 + $0x70] sm:$0xf]
      %v1741 = vld [vmem:[%s584 + $0x74] sm:$0xf]
      %v1742 = vld [vmem:[%s584 + $0x78] sm:$0xf]
      %v1743 = vld [vmem:[%s584 + $0x80] sm:$0xf]
      %v1744 = vld [vmem:[%s584 + $0x84] sm:$0xf]
      %v1745 = vld [vmem:[%s584 + $0x88] sm:$0xf]
      %v1746 = vld [vmem:[%s584 + $0x90] sm:$0xf]
      %v1747 = vld [vmem:[%s584 + $0x94] sm:$0xf]
      %v1748 = vld [vmem:[%s584 + $0x98] sm:$0xf]
      %v1749 = vld [vmem:[%s584 + $0xa0] sm:$0xf]
      %v1750 = vld [vmem:[%s584 + $0xa4] sm:$0xf]
      %v1751 = vld [vmem:[%s584 + $0xa8] sm:$0xf]
      %v1752 = vld [vmem:[%s584 + $0xb0] sm:$0xf]
      %v1753 = vld [vmem:[%s584 + $0xb4] sm:$0xf]
      %v1754 = vld [vmem:[%s584 + $0xb8] sm:$0xf]
      %v1755 = vld [vmem:[%s584 + $0xc0] sm:$0xf]
      %v1756 = vld [vmem:[%s584 + $0xc4] sm:$0xf]
      %v1757 = vld [vmem:[%s584 + $0xc8] sm:$0xf]
      %v1758 = vld [vmem:[%s584 + $0xd0] sm:$0xf]
      %v1759 = vld [vmem:[%s584 + $0xd4] sm:$0xf]
      %v1760 = vld [vmem:[%s584 + $0xd8] sm:$0xf]
      %v1761 = vld [vmem:[%s584 + $0xe0] sm:$0xf]
      %v1762 = vld [vmem:[%s584 + $0xe4] sm:$0xf]
      %v1763 = vld [vmem:[%s584 + $0xe8] sm:$0xf]
      %v1764 = vld [vmem:[%s584 + $0xf0] sm:$0xf]
      %v1765 = vld [vmem:[%s584 + $0xf4] sm:$0xf]
      %v1766 = vld [vmem:[%s584 + $0xf8] sm:$0xf]
      %v1799 = vunpack.c.l.b16 %v1719
      %v1800 = vunpack.c.l.b16 %v1720
      %v1801 = vunpack.c.l.b16 %v1722
      %v1802 = vunpack.c.l.b16 %v1723
      %v1803 = vunpack.c.l.b16 %v1725
      %v1804 = vunpack.c.l.b16 %v1726
      %v1805 = vunpack.c.l.b16 %v1728
      %v1806 = vunpack.c.l.b16 %v1729
      %v1807 = vunpack.c.l.b16 %v1731
      %v1808 = vunpack.c.l.b16 %v1732
      %v1809 = vunpack.c.l.b16 %v1734
      %v1810 = vunpack.c.l.b16 %v1735
      %v1811 = vunpack.c.l.b16 %v1737
      %v1812 = vunpack.c.l.b16 %v1738
      %v1813 = vunpack.c.l.b16 %v1740
      %v1814 = vunpack.c.l.b16 %v1741
      %v1815 = vunpack.c.l.b16 %v1743
      %v1816 = vunpack.c.l.b16 %v1744
      %v1817 = vunpack.c.l.b16 %v1746
      %v1818 = vunpack.c.l.b16 %v1747
      %v1819 = vunpack.c.l.b16 %v1749
      %v1820 = vunpack.c.l.b16 %v1750
      %v1821 = vunpack.c.l.b16 %v1752
      %v1822 = vunpack.c.l.b16 %v1753
      %v1823 = vunpack.c.l.b16 %v1755
      %v1824 = vunpack.c.l.b16 %v1756
      %v1825 = vunpack.c.l.b16 %v1758
      %v1826 = vunpack.c.l.b16 %v1759
      %v1827 = vunpack.c.l.b16 %v1761
      %v1828 = vunpack.c.l.b16 %v1762
      %v1829 = vunpack.c.l.b16 %v1764
      %v1830 = vunpack.c.l.b16 %v1765
      %v1831 = vpack.c.b16 %v1800, %v1799
      %v1832 = vpack.c.b16 %v1802, %v1801
      %v1833 = vpack.c.b16 %v1804, %v1803
      %v1834 = vpack.c.b16 %v1806, %v1805
      %v1835 = vpack.c.b16 %v1808, %v1807
      %v1836 = vpack.c.b16 %v1810, %v1809
      %v1837 = vpack.c.b16 %v1812, %v1811
      %v1838 = vpack.c.b16 %v1814, %v1813
      %v1839 = vpack.c.b16 %v1816, %v1815
      %v1840 = vpack.c.b16 %v1818, %v1817
      %v1841 = vpack.c.b16 %v1820, %v1819
      %v1842 = vpack.c.b16 %v1822, %v1821
      %v1843 = vpack.c.b16 %v1824, %v1823
      %v1844 = vpack.c.b16 %v1826, %v1825
      %v1845 = vpack.c.b16 %v1828, %v1827
      %v1846 = vpack.c.b16 %v1830, %v1829
      %v1863 = vunpack.c.l.b16 %v1721
      %v1864 = vunpack.c.l.b16 %v1724
      %v1865 = vunpack.c.l.b16 %v1727
      %v1866 = vunpack.c.l.b16 %v1730
      %v1867 = vunpack.c.l.b16 %v1733
      %v1868 = vunpack.c.l.b16 %v1736
      %v1869 = vunpack.c.l.b16 %v1739
      %v1870 = vunpack.c.l.b16 %v1742
      %v1871 = vunpack.c.l.b16 %v1745
      %v1872 = vunpack.c.l.b16 %v1748
      %v1873 = vunpack.c.l.b16 %v1751
      %v1874 = vunpack.c.l.b16 %v1754
      %v1875 = vunpack.c.l.b16 %v1757
      %v1876 = vunpack.c.l.b16 %v1760
      %v1877 = vunpack.c.l.b16 %v1763
      %v1878 = vunpack.c.l.b16 %v1766
      %v1879 = vpack.c.b16 %v1863, %v1863
      %v1880 = vpack.c.b16 %v1864, %v1864
      %v1881 = vpack.c.b16 %v1865, %v1865
      %v1882 = vpack.c.b16 %v1866, %v1866
      %v1883 = vpack.c.b16 %v1867, %v1867
      %v1884 = vpack.c.b16 %v1868, %v1868
      %v1885 = vpack.c.b16 %v1869, %v1869
      %v1886 = vpack.c.b16 %v1870, %v1870
      %v1887 = vpack.c.b16 %v1871, %v1871
      %v1888 = vpack.c.b16 %v1872, %v1872
      %v1889 = vpack.c.b16 %v1873, %v1873
      %v1890 = vpack.c.b16 %v1874, %v1874
      %v1891 = vpack.c.b16 %v1875, %v1875
      %v1892 = vpack.c.b16 %v1876, %v1876
      %v1893 = vpack.c.b16 %v1877, %v1877
      %v1894 = vpack.c.b16 %v1878, %v1878
      %v1896 = vshrl.u32 %v1831, 16
      %v1898 = vshll.u32 %v1831, 16
      %v1900 = vrot.slane %v1898, 1
      %v1901 = vor.u32 %v1896, %v1900
      %v1903 = vshll.u32 %v1879, 16
      %v1905 = vrot.slane %v1903, 1
      %v1906 = vsel %vm1345, %v1901, %v1905
      %v1908 = vshrl.u32 %v1832, 16
      %v1910 = vshll.u32 %v1832, 16
      %v1912 = vrot.slane %v1910, 1
      %v1913 = vor.u32 %v1908, %v1912
      %v1915 = vshll.u32 %v1880, 16
      %v1917 = vrot.slane %v1915, 1
      %v1918 = vsel %vm1345, %v1913, %v1917
      %v1920 = vshrl.u32 %v1833, 16
      %v1922 = vshll.u32 %v1833, 16
      %v1924 = vrot.slane %v1922, 1
      %v1925 = vor.u32 %v1920, %v1924
      %v1927 = vshll.u32 %v1881, 16
      %v1929 = vrot.slane %v1927, 1
      %v1930 = vsel %vm1345, %v1925, %v1929
      %v1932 = vshrl.u32 %v1834, 16
      %v1934 = vshll.u32 %v1834, 16
      %v1936 = vrot.slane %v1934, 1
      %v1937 = vor.u32 %v1932, %v1936
      %v1939 = vshll.u32 %v1882, 16
      %v1941 = vrot.slane %v1939, 1
      %v1942 = vsel %vm1345, %v1937, %v1941
      %v1944 = vshrl.u32 %v1835, 16
      %v1946 = vshll.u32 %v1835, 16
      %v1948 = vrot.slane %v1946, 1
      %v1949 = vor.u32 %v1944, %v1948
      %v1951 = vshll.u32 %v1883, 16
      %v1953 = vrot.slane %v1951, 1
      %v1954 = vsel %vm1345, %v1949, %v1953
      %v1956 = vshrl.u32 %v1836, 16
      %v1958 = vshll.u32 %v1836, 16
      %v1960 = vrot.slane %v1958, 1
      %v1961 = vor.u32 %v1956, %v1960
      %v1963 = vshll.u32 %v1884, 16
      %v1965 = vrot.slane %v1963, 1
      %v1966 = vsel %vm1345, %v1961, %v1965
      %v1968 = vshrl.u32 %v1837, 16
      %v1970 = vshll.u32 %v1837, 16
      %v1972 = vrot.slane %v1970, 1
      %v1973 = vor.u32 %v1968, %v1972
      %v1975 = vshll.u32 %v1885, 16
      %v1977 = vrot.slane %v1975, 1
      %v1978 = vsel %vm1345, %v1973, %v1977
      %v1980 = vshrl.u32 %v1838, 16
      %v1982 = vshll.u32 %v1838, 16
      %v1984 = vrot.slane %v1982, 1
      %v1985 = vor.u32 %v1980, %v1984
      %v1987 = vshll.u32 %v1886, 16
      %v1989 = vrot.slane %v1987, 1
      %v1990 = vsel %vm1345, %v1985, %v1989
      %v1992 = vshrl.u32 %v1839, 16
      %v1994 = vshll.u32 %v1839, 16
      %v1996 = vrot.slane %v1994, 1
      %v1997 = vor.u32 %v1992, %v1996
      %v1999 = vshll.u32 %v1887, 16
      %v2001 = vrot.slane %v1999, 1
      %v2002 = vsel %vm1345, %v1997, %v2001
      %v2004 = vshrl.u32 %v1840, 16
      %v2006 = vshll.u32 %v1840, 16
      %v2008 = vrot.slane %v2006, 1
      %v2009 = vor.u32 %v2004, %v2008
      %v2011 = vshll.u32 %v1888, 16
      %v2013 = vrot.slane %v2011, 1
      %v2014 = vsel %vm1345, %v2009, %v2013
      %v2016 = vshrl.u32 %v1841, 16
      %v2018 = vshll.u32 %v1841, 16
      %v2020 = vrot.slane %v2018, 1
      %v2021 = vor.u32 %v2016, %v2020
      %v2023 = vshll.u32 %v1889, 16
      %v2025 = vrot.slane %v2023, 1
      %v2026 = vsel %vm1345, %v2021, %v2025
      %v2028 = vshrl.u32 %v1842, 16
      %v2030 = vshll.u32 %v1842, 16
      %v2032 = vrot.slane %v2030, 1
      %v2033 = vor.u32 %v2028, %v2032
      %v2035 = vshll.u32 %v1890, 16
      %v2037 = vrot.slane %v2035, 1
      %v2038 = vsel %vm1345, %v2033, %v2037
      %v2040 = vshrl.u32 %v1843, 16
      %v2042 = vshll.u32 %v1843, 16
      %v2044 = vrot.slane %v2042, 1
      %v2045 = vor.u32 %v2040, %v2044
      %v2047 = vshll.u32 %v1891, 16
      %v2049 = vrot.slane %v2047, 1
      %v2050 = vsel %vm1345, %v2045, %v2049
      %v2052 = vshrl.u32 %v1844, 16
      %v2054 = vshll.u32 %v1844, 16
      %v2056 = vrot.slane %v2054, 1
      %v2057 = vor.u32 %v2052, %v2056
      %v2059 = vshll.u32 %v1892, 16
      %v2061 = vrot.slane %v2059, 1
      %v2062 = vsel %vm1345, %v2057, %v2061
      %v2064 = vshrl.u32 %v1845, 16
      %v2066 = vshll.u32 %v1845, 16
      %v2068 = vrot.slane %v2066, 1
      %v2069 = vor.u32 %v2064, %v2068
      %v2071 = vshll.u32 %v1893, 16
      %v2073 = vrot.slane %v2071, 1
      %v2074 = vsel %vm1345, %v2069, %v2073
      %v2076 = vshrl.u32 %v1846, 16
      %v2078 = vshll.u32 %v1846, 16
      %v2080 = vrot.slane %v2078, 1
      %v2081 = vor.u32 %v2076, %v2080
      %v2083 = vshll.u32 %v1894, 16
      %v2085 = vrot.slane %v2083, 1
      %v2086 = vsel %vm1345, %v2081, %v2085
      %2087 = vrot.lane.b32.xlu0 %v1906, 4
      %v2088 = vpop.permute.xlu0 %2087
      %2089 = vrot.lane.b32.xlu0 %v1918, 4
      %v2090 = vpop.permute.xlu0 %2089
      %2091 = vrot.lane.b32.xlu0 %v1930, 4
      %v2092 = vpop.permute.xlu0 %2091
      %2093 = vrot.lane.b32.xlu0 %v1942, 4
      %v2094 = vpop.permute.xlu0 %2093
      %2095 = vrot.lane.b32.xlu0 %v1954, 4
      %v2096 = vpop.permute.xlu0 %2095
      %2097 = vrot.lane.b32.xlu0 %v1966, 4
      %v2098 = vpop.permute.xlu0 %2097
      %2099 = vrot.lane.b32.xlu0 %v1978, 4
      %v2100 = vpop.permute.xlu0 %2099
      %2101 = vrot.lane.b32.xlu0 %v1990, 4
      %v2102 = vpop.permute.xlu0 %2101
      %2103 = vrot.lane.b32.xlu0 %v2002, 4
      %v2104 = vpop.permute.xlu0 %2103
      %2105 = vrot.lane.b32.xlu0 %v2014, 4
      %v2106 = vpop.permute.xlu0 %2105
      %2107 = vrot.lane.b32.xlu0 %v2026, 4
      %v2108 = vpop.permute.xlu0 %2107
      %2109 = vrot.lane.b32.xlu0 %v2038, 4
      %v2110 = vpop.permute.xlu0 %2109
      %2111 = vrot.lane.b32.xlu0 %v2050, 4
      %v2112 = vpop.permute.xlu0 %2111
      %2113 = vrot.lane.b32.xlu0 %v2062, 4
      %v2114 = vpop.permute.xlu0 %2113
      %2115 = vrot.lane.b32.xlu0 %v2074, 4
      %v2116 = vpop.permute.xlu0 %2115
      %2117 = vrot.lane.b32.xlu0 %v2086, 4
      %v2118 = vpop.permute.xlu0 %2117
      %v2119 = vrot.slane %v1831, 1
      %v2120 = vrot.slane %v1879, 1
      %v2121 = vsel %vm1570, %v2119, %v2120
      %v2122 = vrot.slane %v1832, 1
      %v2123 = vrot.slane %v1880, 1
      %v2124 = vsel %vm1570, %v2122, %v2123
      %v2125 = vrot.slane %v1833, 1
      %v2126 = vrot.slane %v1881, 1
      %v2127 = vsel %vm1570, %v2125, %v2126
      %v2128 = vrot.slane %v1834, 1
      %v2129 = vrot.slane %v1882, 1
      %v2130 = vsel %vm1570, %v2128, %v2129
      %v2131 = vrot.slane %v1835, 1
      %v2132 = vrot.slane %v1883, 1
      %v2133 = vsel %vm1570, %v2131, %v2132
      %v2134 = vrot.slane %v1836, 1
      %v2135 = vrot.slane %v1884, 1
      %v2136 = vsel %vm1570, %v2134, %v2135
      %v2137 = vrot.slane %v1837, 1
      %v2138 = vrot.slane %v1885, 1
      %v2139 = vsel %vm1570, %v2137, %v2138
      %v2140 = vrot.slane %v1838, 1
      %v2141 = vrot.slane %v1886, 1
      %v2142 = vsel %vm1570, %v2140, %v2141
      %v2143 = vrot.slane %v1839, 1
      %v2144 = vrot.slane %v1887, 1
      %v2145 = vsel %vm1570, %v2143, %v2144
      %v2146 = vrot.slane %v1840, 1
      %v2147 = vrot.slane %v1888, 1
      %v2148 = vsel %vm1570, %v2146, %v2147
      %v2149 = vrot.slane %v1841, 1
      %v2150 = vrot.slane %v1889, 1
      %v2151 = vsel %vm1570, %v2149, %v2150
      %v2152 = vrot.slane %v1842, 1
      %v2153 = vrot.slane %v1890, 1
      %v2154 = vsel %vm1570, %v2152, %v2153
      %v2155 = vrot.slane %v1843, 1
      %v2156 = vrot.slane %v1891, 1
      %v2157 = vsel %vm1570, %v2155, %v2156
      %v2158 = vrot.slane %v1844, 1
      %v2159 = vrot.slane %v1892, 1
      %v2160 = vsel %vm1570, %v2158, %v2159
      %v2161 = vrot.slane %v1845, 1
      %v2162 = vrot.slane %v1893, 1
      %v2163 = vsel %vm1570, %v2161, %v2162
      %v2164 = vrot.slane %v1846, 1
      %v2165 = vrot.slane %v1894, 1
      %v2166 = vsel %vm1570, %v2164, %v2165
      %2167 = vrot.lane.b32.xlu0 %v2121, 8
      %v2168 = vpop.permute.xlu0 %2167
      %2169 = vrot.lane.b32.xlu0 %v2124, 8
      %v2170 = vpop.permute.xlu0 %2169
      %2171 = vrot.lane.b32.xlu0 %v2127, 8
      %v2172 = vpop.permute.xlu0 %2171
      %2173 = vrot.lane.b32.xlu0 %v2130, 8
      %v2174 = vpop.permute.xlu0 %2173
      %2175 = vrot.lane.b32.xlu0 %v2133, 8
      %v2176 = vpop.permute.xlu0 %2175
      %2177 = vrot.lane.b32.xlu0 %v2136, 8
      %v2178 = vpop.permute.xlu0 %2177
      %2179 = vrot.lane.b32.xlu0 %v2139, 8
      %v2180 = vpop.permute.xlu0 %2179
      %2181 = vrot.lane.b32.xlu0 %v2142, 8
      %v2182 = vpop.permute.xlu0 %2181
      %2183 = vrot.lane.b32.xlu0 %v2145, 8
      %v2184 = vpop.permute.xlu0 %2183
      %2185 = vrot.lane.b32.xlu0 %v2148, 8
      %v2186 = vpop.permute.xlu0 %2185
      %2187 = vrot.lane.b32.xlu0 %v2151, 8
      %v2188 = vpop.permute.xlu0 %2187
      %2189 = vrot.lane.b32.xlu0 %v2154, 8
      %v2190 = vpop.permute.xlu0 %2189
      %2191 = vrot.lane.b32.xlu0 %v2157, 8
      %v2192 = vpop.permute.xlu0 %2191
      %2193 = vrot.lane.b32.xlu0 %v2160, 8
      %v2194 = vpop.permute.xlu0 %2193
      %2195 = vrot.lane.b32.xlu0 %v2163, 8
      %v2196 = vpop.permute.xlu0 %2195
      %2197 = vrot.lane.b32.xlu0 %v2166, 8
      %v2198 = vpop.permute.xlu0 %2197
      %v2200 = vsel %vm1651, %v1831, %v2088
      %v2202 = vsel %vm1651, %v1832, %v2090
      %v2204 = vsel %vm1651, %v1833, %v2092
      %v2206 = vsel %vm1651, %v1834, %v2094
      %v2208 = vsel %vm1651, %v1835, %v2096
      %v2210 = vsel %vm1651, %v1836, %v2098
      %v2212 = vsel %vm1651, %v1837, %v2100
      %v2214 = vsel %vm1651, %v1838, %v2102
      %v2216 = vsel %vm1651, %v1839, %v2104
      %v2218 = vsel %vm1651, %v1840, %v2106
      %v2220 = vsel %vm1651, %v1841, %v2108
      %v2222 = vsel %vm1651, %v1842, %v2110
      %v2224 = vsel %vm1651, %v1843, %v2112
      %v2226 = vsel %vm1651, %v1844, %v2114
      %v2228 = vsel %vm1651, %v1845, %v2116
      %v2230 = vsel %vm1651, %v1846, %v2118
      %v2232 = vsel %vm1684, %v2200, %v2168
      %v2234 = vsel %vm1684, %v2202, %v2170
      %v2236 = vsel %vm1684, %v2204, %v2172
      %v2238 = vsel %vm1684, %v2206, %v2174
      %v2240 = vsel %vm1684, %v2208, %v2176
      %v2242 = vsel %vm1684, %v2210, %v2178
      %v2244 = vsel %vm1684, %v2212, %v2180
      %v2246 = vsel %vm1684, %v2214, %v2182
      %v2248 = vsel %vm1684, %v2216, %v2184
      %v2250 = vsel %vm1684, %v2218, %v2186
      %v2252 = vsel %vm1684, %v2220, %v2188
      %v2254 = vsel %vm1684, %v2222, %v2190
      %v2256 = vsel %vm1684, %v2224, %v2192
      %v2258 = vsel %vm1684, %v2226, %v2194
      %v2260 = vsel %vm1684, %v2228, %v2196
      %v2262 = vsel %vm1684, %v2230, %v2198
      %s2263 = scalar_lea.vmem %s3, 8
      %v2264 = vld [vmem:[%s2263] sm:$0xf]
      %v2265 = vld [vmem:[%s2263 + $0x4] sm:$0x3]
      %v2268 = vunpack.c.l.b16 %v2264
      %v2269 = vunpack.c.l.b16 %v2265
      %v2270 = vpack.c.b16 %v2269, %v2268
      %vm2271 = vcmask 97280
      %v2272 = vsel %vm2271, %v2232, 0
      %v2274 = vsel %vm2271, %v2234, 0
      %v2276 = vsel %vm2271, %v2236, 0
      %v2278 = vsel %vm2271, %v2238, 0
      %v2280 = vsel %vm2271, %v2240, 0
      %v2282 = vsel %vm2271, %v2242, 0
      %v2284 = vsel %vm2271, %v2244, 0
      %v2286 = vsel %vm2271, %v2246, 0
      %v2288 = vsel %vm2271, %v2248, 0
      %v2290 = vsel %vm2271, %v2250, 0
      %v2292 = vsel %vm2271, %v2252, 0
      %v2294 = vsel %vm2271, %v2254, 0
      %v2296 = vsel %vm2271, %v2256, 0
      %v2298 = vsel %vm2271, %v2258, 0
      %v2300 = vsel %vm2271, %v2260, 0
      %v2302 = vsel %vm2271, %v2262, 0
      %vm2304 = vcmask 1045504
      %v2306 = vsel %vm2304, %v2270, 0
      %2308 = vmatpush.bf16.msra.mxu0 0
      %2309 = vmatpush.bf16.msra.mxu0 0
      %2310 = vmatpush.bf16.msra.mxu0 0
      %2311 = vmatpush.bf16.msra.mxu0 0
      %2312 = vmatpush.bf16.msra.mxu0 0
      %2313 = vmatpush.bf16.msra.mxu0 0
      %2314 = vmatpush.bf16.msra.mxu0 0
      %2315 = vmatpush.bf16.msra.mxu0 %v2306
      %2316 = vmatmul.bf16.gmra.mxu0 %v2272
      %v2317 = vpop.f32.mrf.mxu0
      %v2318 = vadd.f32 0.0, %v2317
      %v2319 = vpop.f32.mrf.mxu0
      %v2320 = vadd.f32 0.0, %v2319
      %2321 = vmatmul.bf16.gmra.mxu0 %v2274
      %v2322 = vpop.f32.mrf.mxu0
      %v2323 = vadd.f32 0.0, %v2322
      %v2324 = vpop.f32.mrf.mxu0
      %v2325 = vadd.f32 0.0, %v2324
      %2326 = vmatmul.bf16.gmra.mxu0 %v2276
      %v2327 = vpop.f32.mrf.mxu0
      %v2328 = vadd.f32 0.0, %v2327
      %v2329 = vpop.f32.mrf.mxu0
      %v2330 = vadd.f32 0.0, %v2329
      %2331 = vmatmul.bf16.gmra.mxu0 %v2278
      %v2332 = vpop.f32.mrf.mxu0
      %v2333 = vadd.f32 0.0, %v2332
      %v2334 = vpop.f32.mrf.mxu0
      %v2335 = vadd.f32 0.0, %v2334
      %2336 = vmatmul.bf16.gmra.mxu0 %v2280
      %v2337 = vpop.f32.mrf.mxu0
      %v2338 = vadd.f32 0.0, %v2337
      %v2339 = vpop.f32.mrf.mxu0
      %v2340 = vadd.f32 0.0, %v2339
      %2341 = vmatmul.bf16.gmra.mxu0 %v2282
      %v2342 = vpop.f32.mrf.mxu0
      %v2343 = vadd.f32 0.0, %v2342
      %v2344 = vpop.f32.mrf.mxu0
      %v2345 = vadd.f32 0.0, %v2344
      %2346 = vmatmul.bf16.gmra.mxu0 %v2284
      %v2347 = vpop.f32.mrf.mxu0
      %v2348 = vadd.f32 0.0, %v2347
      %v2349 = vpop.f32.mrf.mxu0
      %v2350 = vadd.f32 0.0, %v2349
      %2351 = vmatmul.bf16.gmra.mxu0 %v2286
      %v2352 = vpop.f32.mrf.mxu0
      %v2353 = vadd.f32 0.0, %v2352
      %v2354 = vpop.f32.mrf.mxu0
      %v2355 = vadd.f32 0.0, %v2354
      %2356 = vmatmul.bf16.gmra.mxu0 %v2288
      %v2357 = vpop.f32.mrf.mxu0
      %v2358 = vadd.f32 0.0, %v2357
      %v2359 = vpop.f32.mrf.mxu0
      %v2360 = vadd.f32 0.0, %v2359
      %2361 = vmatmul.bf16.gmra.mxu0 %v2290
      %v2362 = vpop.f32.mrf.mxu0
      %v2363 = vadd.f32 0.0, %v2362
      %v2364 = vpop.f32.mrf.mxu0
      %v2365 = vadd.f32 0.0, %v2364
      %2366 = vmatmul.bf16.gmra.mxu0 %v2292
      %v2367 = vpop.f32.mrf.mxu0
      %v2368 = vadd.f32 0.0, %v2367
      %v2369 = vpop.f32.mrf.mxu0
      %v2370 = vadd.f32 0.0, %v2369
      %2371 = vmatmul.bf16.gmra.mxu0 %v2294
      %v2372 = vpop.f32.mrf.mxu0
      %v2373 = vadd.f32 0.0, %v2372
      %v2374 = vpop.f32.mrf.mxu0
      %v2375 = vadd.f32 0.0, %v2374
      %2376 = vmatmul.bf16.gmra.mxu0 %v2296
      %v2377 = vpop.f32.mrf.mxu0
      %v2378 = vadd.f32 0.0, %v2377
      %v2379 = vpop.f32.mrf.mxu0
      %v2380 = vadd.f32 0.0, %v2379
      %2381 = vmatmul.bf16.gmra.mxu0 %v2298
      %v2382 = vpop.f32.mrf.mxu0
      %v2383 = vadd.f32 0.0, %v2382
      %v2384 = vpop.f32.mrf.mxu0
      %v2385 = vadd.f32 0.0, %v2384
      %2386 = vmatmul.bf16.gmra.mxu0 %v2300
      %v2387 = vpop.f32.mrf.mxu0
      %v2388 = vadd.f32 0.0, %v2387
      %v2389 = vpop.f32.mrf.mxu0
      %v2390 = vadd.f32 0.0, %v2389
      %2391 = vmatmul.bf16.gmra.mxu0 %v2302
      %v2392 = vpop.f32.mrf.mxu0
      %v2393 = vadd.f32 0.0, %v2392
      %v2394 = vpop.f32.mrf.mxu0
      %v2395 = vadd.f32 0.0, %v2394
      %2396 = vdwg.mxu0
      %v2399 = vunpack.c.l.b16 %v1717
      %v2400 = vunpack.c.l.b16 %v1718
      %v2401 = vpack.c.b16 %v2400, %v2399
      %v2402 = vsel %vm2271, %v1686, 0
      %v2404 = vsel %vm2271, %v1688, 0
      %v2406 = vsel %vm2271, %v1690, 0
      %v2408 = vsel %vm2271, %v1692, 0
      %v2410 = vsel %vm2271, %v1694, 0
      %v2412 = vsel %vm2271, %v1696, 0
      %v2414 = vsel %vm2271, %v1698, 0
      %v2416 = vsel %vm2271, %v1700, 0
      %v2418 = vsel %vm2271, %v1702, 0
      %v2420 = vsel %vm2271, %v1704, 0
      %v2422 = vsel %vm2271, %v1706, 0
      %v2424 = vsel %vm2271, %v1708, 0
      %v2426 = vsel %vm2271, %v1710, 0
      %v2428 = vsel %vm2271, %v1712, 0
      %v2430 = vsel %vm2271, %v1714, 0
      %v2432 = vsel %vm2271, %v1716, 0
      %v2435 = vsel %vm2304, %v2401, 0
      %2437 = vmatpush.bf16.msra.mxu0 0
      %2438 = vmatpush.bf16.msra.mxu0 0
      %2439 = vmatpush.bf16.msra.mxu0 0
      %2440 = vmatpush.bf16.msra.mxu0 0
      %2441 = vmatpush.bf16.msra.mxu0 0
      %2442 = vmatpush.bf16.msra.mxu0 0
      %2443 = vmatpush.bf16.msra.mxu0 0
      %2444 = vmatpush.bf16.msra.mxu0 %v2435
      %2445 = vmatmul.bf16.gmra.mxu0 %v2402
      %v2446 = vpop.f32.mrf.mxu0
      %v2447 = vadd.f32 %v2318, %v2446
      %v2448 = vpop.f32.mrf.mxu0
      %v2449 = vadd.f32 %v2320, %v2448
      %2450 = vmatmul.bf16.gmra.mxu0 %v2404
      %v2451 = vpop.f32.mrf.mxu0
      %v2452 = vadd.f32 %v2323, %v2451
      %v2453 = vpop.f32.mrf.mxu0
      %v2454 = vadd.f32 %v2325, %v2453
      %2455 = vmatmul.bf16.gmra.mxu0 %v2406
      %v2456 = vpop.f32.mrf.mxu0
      %v2457 = vadd.f32 %v2328, %v2456
      %v2458 = vpop.f32.mrf.mxu0
      %v2459 = vadd.f32 %v2330, %v2458
      %2460 = vmatmul.bf16.gmra.mxu0 %v2408
      %v2461 = vpop.f32.mrf.mxu0
      %v2462 = vadd.f32 %v2333, %v2461
      %v2463 = vpop.f32.mrf.mxu0
      %v2464 = vadd.f32 %v2335, %v2463
      %2465 = vmatmul.bf16.gmra.mxu0 %v2410
      %v2466 = vpop.f32.mrf.mxu0
      %v2467 = vadd.f32 %v2338, %v2466
      %v2468 = vpop.f32.mrf.mxu0
      %v2469 = vadd.f32 %v2340, %v2468
      %2470 = vmatmul.bf16.gmra.mxu0 %v2412
      %v2471 = vpop.f32.mrf.mxu0
      %v2472 = vadd.f32 %v2343, %v2471
      %v2473 = vpop.f32.mrf.mxu0
      %v2474 = vadd.f32 %v2345, %v2473
      %2475 = vmatmul.bf16.gmra.mxu0 %v2414
      %v2476 = vpop.f32.mrf.mxu0
      %v2477 = vadd.f32 %v2348, %v2476
      %v2478 = vpop.f32.mrf.mxu0
      %v2479 = vadd.f32 %v2350, %v2478
      %2480 = vmatmul.bf16.gmra.mxu0 %v2416
      %v2481 = vpop.f32.mrf.mxu0
      %v2482 = vadd.f32 %v2353, %v2481
      %v2483 = vpop.f32.mrf.mxu0
      %v2484 = vadd.f32 %v2355, %v2483
      %2485 = vmatmul.bf16.gmra.mxu0 %v2418
      %v2486 = vpop.f32.mrf.mxu0
      %v2487 = vadd.f32 %v2358, %v2486
      %v2488 = vpop.f32.mrf.mxu0
      %v2489 = vadd.f32 %v2360, %v2488
      %2490 = vmatmul.bf16.gmra.mxu0 %v2420
      %v2491 = vpop.f32.mrf.mxu0
      %v2492 = vadd.f32 %v2363, %v2491
      %v2493 = vpop.f32.mrf.mxu0
      %v2494 = vadd.f32 %v2365, %v2493
      %2495 = vmatmul.bf16.gmra.mxu0 %v2422
      %v2496 = vpop.f32.mrf.mxu0
      %v2497 = vadd.f32 %v2368, %v2496
      %v2498 = vpop.f32.mrf.mxu0
      %v2499 = vadd.f32 %v2370, %v2498
      %2500 = vmatmul.bf16.gmra.mxu0 %v2424
      %v2501 = vpop.f32.mrf.mxu0
      %v2502 = vadd.f32 %v2373, %v2501
      %v2503 = vpop.f32.mrf.mxu0
      %v2504 = vadd.f32 %v2375, %v2503
      %2505 = vmatmul.bf16.gmra.mxu0 %v2426
      %v2506 = vpop.f32.mrf.mxu0
      %v2507 = vadd.f32 %v2378, %v2506
      %v2508 = vpop.f32.mrf.mxu0
      %v2509 = vadd.f32 %v2380, %v2508
      %2510 = vmatmul.bf16.gmra.mxu0 %v2428
      %v2511 = vpop.f32.mrf.mxu0
      %v2512 = vadd.f32 %v2383, %v2511
      %v2513 = vpop.f32.mrf.mxu0
      %v2514 = vadd.f32 %v2385, %v2513
      %2515 = vmatmul.bf16.gmra.mxu0 %v2430
      %v2516 = vpop.f32.mrf.mxu0
      %v2517 = vadd.f32 %v2388, %v2516
      %v2518 = vpop.f32.mrf.mxu0
      %v2519 = vadd.f32 %v2390, %v2518
      %2520 = vmatmul.bf16.gmra.mxu0 %v2432
      %v2521 = vpop.f32.mrf.mxu0
      %v2522 = vadd.f32 %v2393, %v2521
      %v2523 = vpop.f32.mrf.mxu0
      %v2524 = vadd.f32 %v2395, %v2523
      %2525 = vdwg.mxu0
      %s2526 = scalar_lea.vmem [#allocation2], 32
      %v2527 = vld [vmem:[%s2526] sm:$0xf]
      %v2528 = vld [vmem:[%s2526 + $0x4] sm:$0xf]
      %v2529 = vld [vmem:[%s2526 + $0x8] sm:$0xf]
      %v2530 = vld [vmem:[%s2526 + $0x10] sm:$0xf]
      %v2531 = vld [vmem:[%s2526 + $0x14] sm:$0xf]
      %v2532 = vld [vmem:[%s2526 + $0x18] sm:$0xf]
      %v2533 = vld [vmem:[%s2526 + $0x20] sm:$0xf]
      %v2534 = vld [vmem:[%s2526 + $0x24] sm:$0xf]
      %v2535 = vld [vmem:[%s2526 + $0x28] sm:$0xf]
      %v2536 = vld [vmem:[%s2526 + $0x30] sm:$0xf]
      %v2537 = vld [vmem:[%s2526 + $0x34] sm:$0xf]
      %v2538 = vld [vmem:[%s2526 + $0x38] sm:$0xf]
      %v2539 = vld [vmem:[%s2526 + $0x40] sm:$0xf]
      %v2540 = vld [vmem:[%s2526 + $0x44] sm:$0xf]
      %v2541 = vld [vmem:[%s2526 + $0x48] sm:$0xf]
      %v2542 = vld [vmem:[%s2526 + $0x50] sm:$0xf]
      %v2543 = vld [vmem:[%s2526 + $0x54] sm:$0xf]
      %v2544 = vld [vmem:[%s2526 + $0x58] sm:$0xf]
      %v2545 = vld [vmem:[%s2526 + $0x60] sm:$0xf]
      %v2546 = vld [vmem:[%s2526 + $0x64] sm:$0xf]
      %v2547 = vld [vmem:[%s2526 + $0x68] sm:$0xf]
      %v2548 = vld [vmem:[%s2526 + $0x70] sm:$0xf]
      %v2549 = vld [vmem:[%s2526 + $0x74] sm:$0xf]
      %v2550 = vld [vmem:[%s2526 + $0x78] sm:$0xf]
      %v2551 = vld [vmem:[%s2526 + $0x80] sm:$0xf]
      %v2552 = vld [vmem:[%s2526 + $0x84] sm:$0xf]
      %v2553 = vld [vmem:[%s2526 + $0x88] sm:$0xf]
      %v2554 = vld [vmem:[%s2526 + $0x90] sm:$0xf]
      %v2555 = vld [vmem:[%s2526 + $0x94] sm:$0xf]
      %v2556 = vld [vmem:[%s2526 + $0x98] sm:$0xf]
      %v2557 = vld [vmem:[%s2526 + $0xa0] sm:$0xf]
      %v2558 = vld [vmem:[%s2526 + $0xa4] sm:$0xf]
      %v2559 = vld [vmem:[%s2526 + $0xa8] sm:$0xf]
      %v2560 = vld [vmem:[%s2526 + $0xb0] sm:$0xf]
      %v2561 = vld [vmem:[%s2526 + $0xb4] sm:$0xf]
      %v2562 = vld [vmem:[%s2526 + $0xb8] sm:$0xf]
      %v2563 = vld [vmem:[%s2526 + $0xc0] sm:$0xf]
      %v2564 = vld [vmem:[%s2526 + $0xc4] sm:$0xf]
      %v2565 = vld [vmem:[%s2526 + $0xc8] sm:$0xf]
      %v2566 = vld [vmem:[%s2526 + $0xd0] sm:$0xf]
      %v2567 = vld [vmem:[%s2526 + $0xd4] sm:$0xf]
      %v2568 = vld [vmem:[%s2526 + $0xd8] sm:$0xf]
      %v2569 = vld [vmem:[%s2526 + $0xe0] sm:$0xf]
      %v2570 = vld [vmem:[%s2526 + $0xe4] sm:$0xf]
      %v2571 = vld [vmem:[%s2526 + $0xe8] sm:$0xf]
      %v2572 = vld [vmem:[%s2526 + $0xf0] sm:$0xf]
      %v2573 = vld [vmem:[%s2526 + $0xf4] sm:$0xf]
      %v2574 = vld [vmem:[%s2526 + $0xf8] sm:$0xf]
      %v2607 = vunpack.c.l.b16 %v2527
      %v2608 = vunpack.c.l.b16 %v2528
      %v2609 = vunpack.c.l.b16 %v2530
      %v2610 = vunpack.c.l.b16 %v2531
      %v2611 = vunpack.c.l.b16 %v2533
      %v2612 = vunpack.c.l.b16 %v2534
      %v2613 = vunpack.c.l.b16 %v2536
      %v2614 = vunpack.c.l.b16 %v2537
      %v2615 = vunpack.c.l.b16 %v2539
      %v2616 = vunpack.c.l.b16 %v2540
      %v2617 = vunpack.c.l.b16 %v2542
      %v2618 = vunpack.c.l.b16 %v2543
      %v2619 = vunpack.c.l.b16 %v2545
      %v2620 = vunpack.c.l.b16 %v2546
      %v2621 = vunpack.c.l.b16 %v2548
      %v2622 = vunpack.c.l.b16 %v2549
      %v2623 = vunpack.c.l.b16 %v2551
      %v2624 = vunpack.c.l.b16 %v2552
      %v2625 = vunpack.c.l.b16 %v2554
      %v2626 = vunpack.c.l.b16 %v2555
      %v2627 = vunpack.c.l.b16 %v2557
      %v2628 = vunpack.c.l.b16 %v2558
      %v2629 = vunpack.c.l.b16 %v2560
      %v2630 = vunpack.c.l.b16 %v2561
      %v2631 = vunpack.c.l.b16 %v2563
      %v2632 = vunpack.c.l.b16 %v2564
      %v2633 = vunpack.c.l.b16 %v2566
      %v2634 = vunpack.c.l.b16 %v2567
      %v2635 = vunpack.c.l.b16 %v2569
      %v2636 = vunpack.c.l.b16 %v2570
      %v2637 = vunpack.c.l.b16 %v2572
      %v2638 = vunpack.c.l.b16 %v2573
      %v2639 = vpack.c.b16 %v2608, %v2607
      %v2640 = vpack.c.b16 %v2610, %v2609
      %v2641 = vpack.c.b16 %v2612, %v2611
      %v2642 = vpack.c.b16 %v2614, %v2613
      %v2643 = vpack.c.b16 %v2616, %v2615
      %v2644 = vpack.c.b16 %v2618, %v2617
      %v2645 = vpack.c.b16 %v2620, %v2619
      %v2646 = vpack.c.b16 %v2622, %v2621
      %v2647 = vpack.c.b16 %v2624, %v2623
      %v2648 = vpack.c.b16 %v2626, %v2625
      %v2649 = vpack.c.b16 %v2628, %v2627
      %v2650 = vpack.c.b16 %v2630, %v2629
      %v2651 = vpack.c.b16 %v2632, %v2631
      %v2652 = vpack.c.b16 %v2634, %v2633
      %v2653 = vpack.c.b16 %v2636, %v2635
      %v2654 = vpack.c.b16 %v2638, %v2637
      %v2671 = vunpack.c.l.b16 %v2529
      %v2672 = vunpack.c.l.b16 %v2532
      %v2673 = vunpack.c.l.b16 %v2535
      %v2674 = vunpack.c.l.b16 %v2538
      %v2675 = vunpack.c.l.b16 %v2541
      %v2676 = vunpack.c.l.b16 %v2544
      %v2677 = vunpack.c.l.b16 %v2547
      %v2678 = vunpack.c.l.b16 %v2550
      %v2679 = vunpack.c.l.b16 %v2553
      %v2680 = vunpack.c.l.b16 %v2556
      %v2681 = vunpack.c.l.b16 %v2559
      %v2682 = vunpack.c.l.b16 %v2562
      %v2683 = vunpack.c.l.b16 %v2565
      %v2684 = vunpack.c.l.b16 %v2568
      %v2685 = vunpack.c.l.b16 %v2571
      %v2686 = vunpack.c.l.b16 %v2574
      %v2687 = vpack.c.b16 %v2671, %v2671
      %v2688 = vpack.c.b16 %v2672, %v2672
      %v2689 = vpack.c.b16 %v2673, %v2673
      %v2690 = vpack.c.b16 %v2674, %v2674
      %v2691 = vpack.c.b16 %v2675, %v2675
      %v2692 = vpack.c.b16 %v2676, %v2676
      %v2693 = vpack.c.b16 %v2677, %v2677
      %v2694 = vpack.c.b16 %v2678, %v2678
      %v2695 = vpack.c.b16 %v2679, %v2679
      %v2696 = vpack.c.b16 %v2680, %v2680
      %v2697 = vpack.c.b16 %v2681, %v2681
      %v2698 = vpack.c.b16 %v2682, %v2682
      %v2699 = vpack.c.b16 %v2683, %v2683
      %v2700 = vpack.c.b16 %v2684, %v2684
      %v2701 = vpack.c.b16 %v2685, %v2685
      %v2702 = vpack.c.b16 %v2686, %v2686
      %v2704 = vshrl.u32 %v2639, 16
      %v2706 = vshll.u32 %v2639, 16
      %v2708 = vrot.slane %v2706, 1
      %v2709 = vor.u32 %v2704, %v2708
      %v2711 = vshll.u32 %v2687, 16
      %v2713 = vrot.slane %v2711, 1
      %v2714 = vsel %vm1345, %v2709, %v2713
      %v2716 = vshrl.u32 %v2640, 16
      %v2718 = vshll.u32 %v2640, 16
      %v2720 = vrot.slane %v2718, 1
      %v2721 = vor.u32 %v2716, %v2720
      %v2723 = vshll.u32 %v2688, 16
      %v2725 = vrot.slane %v2723, 1
      %v2726 = vsel %vm1345, %v2721, %v2725
      %v2728 = vshrl.u32 %v2641, 16
      %v2730 = vshll.u32 %v2641, 16
      %v2732 = vrot.slane %v2730, 1
      %v2733 = vor.u32 %v2728, %v2732
      %v2735 = vshll.u32 %v2689, 16
      %v2737 = vrot.slane %v2735, 1
      %v2738 = vsel %vm1345, %v2733, %v2737
      %v2740 = vshrl.u32 %v2642, 16
      %v2742 = vshll.u32 %v2642, 16
      %v2744 = vrot.slane %v2742, 1
      %v2745 = vor.u32 %v2740, %v2744
      %v2747 = vshll.u32 %v2690, 16
      %v2749 = vrot.slane %v2747, 1
      %v2750 = vsel %vm1345, %v2745, %v2749
      %v2752 = vshrl.u32 %v2643, 16
      %v2754 = vshll.u32 %v2643, 16
      %v2756 = vrot.slane %v2754, 1
      %v2757 = vor.u32 %v2752, %v2756
      %v2759 = vshll.u32 %v2691, 16
      %v2761 = vrot.slane %v2759, 1
      %v2762 = vsel %vm1345, %v2757, %v2761
      %v2764 = vshrl.u32 %v2644, 16
      %v2766 = vshll.u32 %v2644, 16
      %v2768 = vrot.slane %v2766, 1
      %v2769 = vor.u32 %v2764, %v2768
      %v2771 = vshll.u32 %v2692, 16
      %v2773 = vrot.slane %v2771, 1
      %v2774 = vsel %vm1345, %v2769, %v2773
      %v2776 = vshrl.u32 %v2645, 16
      %v2778 = vshll.u32 %v2645, 16
      %v2780 = vrot.slane %v2778, 1
      %v2781 = vor.u32 %v2776, %v2780
      %v2783 = vshll.u32 %v2693, 16
      %v2785 = vrot.slane %v2783, 1
      %v2786 = vsel %vm1345, %v2781, %v2785
      %v2788 = vshrl.u32 %v2646, 16
      %v2790 = vshll.u32 %v2646, 16
      %v2792 = vrot.slane %v2790, 1
      %v2793 = vor.u32 %v2788, %v2792
      %v2795 = vshll.u32 %v2694, 16
      %v2797 = vrot.slane %v2795, 1
      %v2798 = vsel %vm1345, %v2793, %v2797
      %v2800 = vshrl.u32 %v2647, 16
      %v2802 = vshll.u32 %v2647, 16
      %v2804 = vrot.slane %v2802, 1
      %v2805 = vor.u32 %v2800, %v2804
      %v2807 = vshll.u32 %v2695, 16
      %v2809 = vrot.slane %v2807, 1
      %v2810 = vsel %vm1345, %v2805, %v2809
      %v2812 = vshrl.u32 %v2648, 16
      %v2814 = vshll.u32 %v2648, 16
      %v2816 = vrot.slane %v2814, 1
      %v2817 = vor.u32 %v2812, %v2816
      %v2819 = vshll.u32 %v2696, 16
      %v2821 = vrot.slane %v2819, 1
      %v2822 = vsel %vm1345, %v2817, %v2821
      %v2824 = vshrl.u32 %v2649, 16
      %v2826 = vshll.u32 %v2649, 16
      %v2828 = vrot.slane %v2826, 1
      %v2829 = vor.u32 %v2824, %v2828
      %v2831 = vshll.u32 %v2697, 16
      %v2833 = vrot.slane %v2831, 1
      %v2834 = vsel %vm1345, %v2829, %v2833
      %v2836 = vshrl.u32 %v2650, 16
      %v2838 = vshll.u32 %v2650, 16
      %v2840 = vrot.slane %v2838, 1
      %v2841 = vor.u32 %v2836, %v2840
      %v2843 = vshll.u32 %v2698, 16
      %v2845 = vrot.slane %v2843, 1
      %v2846 = vsel %vm1345, %v2841, %v2845
      %v2848 = vshrl.u32 %v2651, 16
      %v2850 = vshll.u32 %v2651, 16
      %v2852 = vrot.slane %v2850, 1
      %v2853 = vor.u32 %v2848, %v2852
      %v2855 = vshll.u32 %v2699, 16
      %v2857 = vrot.slane %v2855, 1
      %v2858 = vsel %vm1345, %v2853, %v2857
      %v2860 = vshrl.u32 %v2652, 16
      %v2862 = vshll.u32 %v2652, 16
      %v2864 = vrot.slane %v2862, 1
      %v2865 = vor.u32 %v2860, %v2864
      %v2867 = vshll.u32 %v2700, 16
      %v2869 = vrot.slane %v2867, 1
      %v2870 = vsel %vm1345, %v2865, %v2869
      %v2872 = vshrl.u32 %v2653, 16
      %v2874 = vshll.u32 %v2653, 16
      %v2876 = vrot.slane %v2874, 1
      %v2877 = vor.u32 %v2872, %v2876
      %v2879 = vshll.u32 %v2701, 16
      %v2881 = vrot.slane %v2879, 1
      %v2882 = vsel %vm1345, %v2877, %v2881
      %v2884 = vshrl.u32 %v2654, 16
      %v2886 = vshll.u32 %v2654, 16
      %v2888 = vrot.slane %v2886, 1
      %v2889 = vor.u32 %v2884, %v2888
      %v2891 = vshll.u32 %v2702, 16
      %v2893 = vrot.slane %v2891, 1
      %v2894 = vsel %vm1345, %v2889, %v2893
      %2895 = vrot.lane.b32.xlu0 %v2714, 4
      %v2896 = vpop.permute.xlu0 %2895
      %2897 = vrot.lane.b32.xlu0 %v2726, 4
      %v2898 = vpop.permute.xlu0 %2897
      %2899 = vrot.lane.b32.xlu0 %v2738, 4
      %v2900 = vpop.permute.xlu0 %2899
      %2901 = vrot.lane.b32.xlu0 %v2750, 4
      %v2902 = vpop.permute.xlu0 %2901
      %2903 = vrot.lane.b32.xlu0 %v2762, 4
      %v2904 = vpop.permute.xlu0 %2903
      %2905 = vrot.lane.b32.xlu0 %v2774, 4
      %v2906 = vpop.permute.xlu0 %2905
      %2907 = vrot.lane.b32.xlu0 %v2786, 4
      %v2908 = vpop.permute.xlu0 %2907
      %2909 = vrot.lane.b32.xlu0 %v2798, 4
      %v2910 = vpop.permute.xlu0 %2909
      %2911 = vrot.lane.b32.xlu0 %v2810, 4
      %v2912 = vpop.permute.xlu0 %2911
      %2913 = vrot.lane.b32.xlu0 %v2822, 4
      %v2914 = vpop.permute.xlu0 %2913
      %2915 = vrot.lane.b32.xlu0 %v2834, 4
      %v2916 = vpop.permute.xlu0 %2915
      %2917 = vrot.lane.b32.xlu0 %v2846, 4
      %v2918 = vpop.permute.xlu0 %2917
      %2919 = vrot.lane.b32.xlu0 %v2858, 4
      %v2920 = vpop.permute.xlu0 %2919
      %2921 = vrot.lane.b32.xlu0 %v2870, 4
      %v2922 = vpop.permute.xlu0 %2921
      %2923 = vrot.lane.b32.xlu0 %v2882, 4
      %v2924 = vpop.permute.xlu0 %2923
      %2925 = vrot.lane.b32.xlu0 %v2894, 4
      %v2926 = vpop.permute.xlu0 %2925
      %v2927 = vrot.slane %v2639, 1
      %v2928 = vrot.slane %v2687, 1
      %v2929 = vsel %vm1570, %v2927, %v2928
      %v2930 = vrot.slane %v2640, 1
      %v2931 = vrot.slane %v2688, 1
      %v2932 = vsel %vm1570, %v2930, %v2931
      %v2933 = vrot.slane %v2641, 1
      %v2934 = vrot.slane %v2689, 1
      %v2935 = vsel %vm1570, %v2933, %v2934
      %v2936 = vrot.slane %v2642, 1
      %v2937 = vrot.slane %v2690, 1
      %v2938 = vsel %vm1570, %v2936, %v2937
      %v2939 = vrot.slane %v2643, 1
      %v2940 = vrot.slane %v2691, 1
      %v2941 = vsel %vm1570, %v2939, %v2940
      %v2942 = vrot.slane %v2644, 1
      %v2943 = vrot.slane %v2692, 1
      %v2944 = vsel %vm1570, %v2942, %v2943
      %v2945 = vrot.slane %v2645, 1
      %v2946 = vrot.slane %v2693, 1
      %v2947 = vsel %vm1570, %v2945, %v2946
      %v2948 = vrot.slane %v2646, 1
      %v2949 = vrot.slane %v2694, 1
      %v2950 = vsel %vm1570, %v2948, %v2949
      %v2951 = vrot.slane %v2647, 1
      %v2952 = vrot.slane %v2695, 1
      %v2953 = vsel %vm1570, %v2951, %v2952
      %v2954 = vrot.slane %v2648, 1
      %v2955 = vrot.slane %v2696, 1
      %v2956 = vsel %vm1570, %v2954, %v2955
      %v2957 = vrot.slane %v2649, 1
      %v2958 = vrot.slane %v2697, 1
      %v2959 = vsel %vm1570, %v2957, %v2958
      %v2960 = vrot.slane %v2650, 1
      %v2961 = vrot.slane %v2698, 1
      %v2962 = vsel %vm1570, %v2960, %v2961
      %v2963 = vrot.slane %v2651, 1
      %v2964 = vrot.slane %v2699, 1
      %v2965 = vsel %vm1570, %v2963, %v2964
      %v2966 = vrot.slane %v2652, 1
      %v2967 = vrot.slane %v2700, 1
      %v2968 = vsel %vm1570, %v2966, %v2967
      %v2969 = vrot.slane %v2653, 1
      %v2970 = vrot.slane %v2701, 1
      %v2971 = vsel %vm1570, %v2969, %v2970
      %v2972 = vrot.slane %v2654, 1
      %v2973 = vrot.slane %v2702, 1
      %v2974 = vsel %vm1570, %v2972, %v2973
      %2975 = vrot.lane.b32.xlu0 %v2929, 8
      %v2976 = vpop.permute.xlu0 %2975
      %2977 = vrot.lane.b32.xlu0 %v2932, 8
      %v2978 = vpop.permute.xlu0 %2977
      %2979 = vrot.lane.b32.xlu0 %v2935, 8
      %v2980 = vpop.permute.xlu0 %2979
      %2981 = vrot.lane.b32.xlu0 %v2938, 8
      %v2982 = vpop.permute.xlu0 %2981
      %2983 = vrot.lane.b32.xlu0 %v2941, 8
      %v2984 = vpop.permute.xlu0 %2983
      %2985 = vrot.lane.b32.xlu0 %v2944, 8
      %v2986 = vpop.permute.xlu0 %2985
      %2987 = vrot.lane.b32.xlu0 %v2947, 8
      %v2988 = vpop.permute.xlu0 %2987
      %2989 = vrot.lane.b32.xlu0 %v2950, 8
      %v2990 = vpop.permute.xlu0 %2989
      %2991 = vrot.lane.b32.xlu0 %v2953, 8
      %v2992 = vpop.permute.xlu0 %2991
      %2993 = vrot.lane.b32.xlu0 %v2956, 8
      %v2994 = vpop.permute.xlu0 %2993
      %2995 = vrot.lane.b32.xlu0 %v2959, 8
      %v2996 = vpop.permute.xlu0 %2995
      %2997 = vrot.lane.b32.xlu0 %v2962, 8
      %v2998 = vpop.permute.xlu0 %2997
      %2999 = vrot.lane.b32.xlu0 %v2965, 8
      %v3000 = vpop.permute.xlu0 %2999
      %3001 = vrot.lane.b32.xlu0 %v2968, 8
      %v3002 = vpop.permute.xlu0 %3001
      %3003 = vrot.lane.b32.xlu0 %v2971, 8
      %v3004 = vpop.permute.xlu0 %3003
      %3005 = vrot.lane.b32.xlu0 %v2974, 8
      %v3006 = vpop.permute.xlu0 %3005
      %v3008 = vsel %vm1651, %v2639, %v2896
      %v3010 = vsel %vm1651, %v2640, %v2898
      %v3012 = vsel %vm1651, %v2641, %v2900
      %v3014 = vsel %vm1651, %v2642, %v2902
      %v3016 = vsel %vm1651, %v2643, %v2904
      %v3018 = vsel %vm1651, %v2644, %v2906
      %v3020 = vsel %vm1651, %v2645, %v2908
      %v3022 = vsel %vm1651, %v2646, %v2910
      %v3024 = vsel %vm1651, %v2647, %v2912
      %v3026 = vsel %vm1651, %v2648, %v2914
      %v3028 = vsel %vm1651, %v2649, %v2916
      %v3030 = vsel %vm1651, %v2650, %v2918
      %v3032 = vsel %vm1651, %v2651, %v2920
      %v3034 = vsel %vm1651, %v2652, %v2922
      %v3036 = vsel %vm1651, %v2653, %v2924
      %v3038 = vsel %vm1651, %v2654, %v2926
      %v3040 = vsel %vm1684, %v3008, %v2976
      %v3042 = vsel %vm1684, %v3010, %v2978
      %v3044 = vsel %vm1684, %v3012, %v2980
      %v3046 = vsel %vm1684, %v3014, %v2982
      %v3048 = vsel %vm1684, %v3016, %v2984
      %v3050 = vsel %vm1684, %v3018, %v2986
      %v3052 = vsel %vm1684, %v3020, %v2988
      %v3054 = vsel %vm1684, %v3022, %v2990
      %v3056 = vsel %vm1684, %v3024, %v2992
      %v3058 = vsel %vm1684, %v3026, %v2994
      %v3060 = vsel %vm1684, %v3028, %v2996
      %v3062 = vsel %vm1684, %v3030, %v2998
      %v3064 = vsel %vm1684, %v3032, %v3000
      %v3066 = vsel %vm1684, %v3034, %v3002
      %v3068 = vsel %vm1684, %v3036, %v3004
      %v3070 = vsel %vm1684, %v3038, %v3006
      %s3071 = scalar_lea.vmem %s3, 16
      %v3072 = vld [vmem:[%s3071] sm:$0xf]
      %v3073 = vld [vmem:[%s3071 + $0x4] sm:$0x3]
      %v3076 = vunpack.c.l.b16 %v3072
      %v3077 = vunpack.c.l.b16 %v3073
      %v3078 = vpack.c.b16 %v3077, %v3076
      %v3079 = vsel %vm2271, %v3040, 0
      %v3081 = vsel %vm2271, %v3042, 0
      %v3083 = vsel %vm2271, %v3044, 0
      %v3085 = vsel %vm2271, %v3046, 0
      %v3087 = vsel %vm2271, %v3048, 0
      %v3089 = vsel %vm2271, %v3050, 0
      %v3091 = vsel %vm2271, %v3052, 0
      %v3093 = vsel %vm2271, %v3054, 0
      %v3095 = vsel %vm2271, %v3056, 0
      %v3097 = vsel %vm2271, %v3058, 0
      %v3099 = vsel %vm2271, %v3060, 0
      %v3101 = vsel %vm2271, %v3062, 0
      %v3103 = vsel %vm2271, %v3064, 0
      %v3105 = vsel %vm2271, %v3066, 0
      %v3107 = vsel %vm2271, %v3068, 0
      %v3109 = vsel %vm2271, %v3070, 0
      %v3112 = vsel %vm2304, %v3078, 0
      %3114 = vmatpush.bf16.msra.mxu0 0
      %3115 = vmatpush.bf16.msra.mxu0 0
      %3116 = vmatpush.bf16.msra.mxu0 0
      %3117 = vmatpush.bf16.msra.mxu0 0
      %3118 = vmatpush.bf16.msra.mxu0 0
      %3119 = vmatpush.bf16.msra.mxu0 0
      %3120 = vmatpush.bf16.msra.mxu0 0
      %3121 = vmatpush.bf16.msra.mxu0 %v3112
      %3122 = vmatmul.bf16.gmra.mxu0 %v3079
      %v3123 = vpop.f32.mrf.mxu0
      %v3124 = vadd.f32 0.0, %v3123
      %v3125 = vpop.f32.mrf.mxu0
      %v3126 = vadd.f32 0.0, %v3125
      %3127 = vmatmul.bf16.gmra.mxu0 %v3081
      %v3128 = vpop.f32.mrf.mxu0
      %v3129 = vadd.f32 0.0, %v3128
      %v3130 = vpop.f32.mrf.mxu0
      %v3131 = vadd.f32 0.0, %v3130
      %3132 = vmatmul.bf16.gmra.mxu0 %v3083
      %v3133 = vpop.f32.mrf.mxu0
      %v3134 = vadd.f32 0.0, %v3133
      %v3135 = vpop.f32.mrf.mxu0
      %v3136 = vadd.f32 0.0, %v3135
      %3137 = vmatmul.bf16.gmra.mxu0 %v3085
      %v3138 = vpop.f32.mrf.mxu0
      %v3139 = vadd.f32 0.0, %v3138
      %v3140 = vpop.f32.mrf.mxu0
      %v3141 = vadd.f32 0.0, %v3140
      %3142 = vmatmul.bf16.gmra.mxu0 %v3087
      %v3143 = vpop.f32.mrf.mxu0
      %v3144 = vadd.f32 0.0, %v3143
      %v3145 = vpop.f32.mrf.mxu0
      %v3146 = vadd.f32 0.0, %v3145
      %3147 = vmatmul.bf16.gmra.mxu0 %v3089
      %v3148 = vpop.f32.mrf.mxu0
      %v3149 = vadd.f32 0.0, %v3148
      %v3150 = vpop.f32.mrf.mxu0
      %v3151 = vadd.f32 0.0, %v3150
      %3152 = vmatmul.bf16.gmra.mxu0 %v3091
      %v3153 = vpop.f32.mrf.mxu0
      %v3154 = vadd.f32 0.0, %v3153
      %v3155 = vpop.f32.mrf.mxu0
      %v3156 = vadd.f32 0.0, %v3155
      %3157 = vmatmul.bf16.gmra.mxu0 %v3093
      %v3158 = vpop.f32.mrf.mxu0
      %v3159 = vadd.f32 0.0, %v3158
      %v3160 = vpop.f32.mrf.mxu0
      %v3161 = vadd.f32 0.0, %v3160
      %3162 = vmatmul.bf16.gmra.mxu0 %v3095
      %v3163 = vpop.f32.mrf.mxu0
      %v3164 = vadd.f32 0.0, %v3163
      %v3165 = vpop.f32.mrf.mxu0
      %v3166 = vadd.f32 0.0, %v3165
      %3167 = vmatmul.bf16.gmra.mxu0 %v3097
      %v3168 = vpop.f32.mrf.mxu0
      %v3169 = vadd.f32 0.0, %v3168
      %v3170 = vpop.f32.mrf.mxu0
      %v3171 = vadd.f32 0.0, %v3170
      %3172 = vmatmul.bf16.gmra.mxu0 %v3099
      %v3173 = vpop.f32.mrf.mxu0
      %v3174 = vadd.f32 0.0, %v3173
      %v3175 = vpop.f32.mrf.mxu0
      %v3176 = vadd.f32 0.0, %v3175
      %3177 = vmatmul.bf16.gmra.mxu0 %v3101
      %v3178 = vpop.f32.mrf.mxu0
      %v3179 = vadd.f32 0.0, %v3178
      %v3180 = vpop.f32.mrf.mxu0
      %v3181 = vadd.f32 0.0, %v3180
      %3182 = vmatmul.bf16.gmra.mxu0 %v3103
      %v3183 = vpop.f32.mrf.mxu0
      %v3184 = vadd.f32 0.0, %v3183
      %v3185 = vpop.f32.mrf.mxu0
      %v3186 = vadd.f32 0.0, %v3185
      %3187 = vmatmul.bf16.gmra.mxu0 %v3105
      %v3188 = vpop.f32.mrf.mxu0
      %v3189 = vadd.f32 0.0, %v3188
      %v3190 = vpop.f32.mrf.mxu0
      %v3191 = vadd.f32 0.0, %v3190
      %3192 = vmatmul.bf16.gmra.mxu0 %v3107
      %v3193 = vpop.f32.mrf.mxu0
      %v3194 = vadd.f32 0.0, %v3193
      %v3195 = vpop.f32.mrf.mxu0
      %v3196 = vadd.f32 0.0, %v3195
      %3197 = vmatmul.bf16.gmra.mxu0 %v3109
      %v3198 = vpop.f32.mrf.mxu0
      %v3199 = vadd.f32 0.0, %v3198
      %v3200 = vpop.f32.mrf.mxu0
      %v3201 = vadd.f32 0.0, %v3200
      %3202 = vdwg.mxu0
      %v3203 = vadd.f32 %v2447, %v3124
      %v3204 = vadd.f32 %v2449, %v3126
      %v3205 = vadd.f32 %v2452, %v3129
      %v3206 = vadd.f32 %v2454, %v3131
      %v3207 = vadd.f32 %v2457, %v3134
      %v3208 = vadd.f32 %v2459, %v3136
      %v3209 = vadd.f32 %v2462, %v3139
      %v3210 = vadd.f32 %v2464, %v3141
      %v3211 = vadd.f32 %v2467, %v3144
      %v3212 = vadd.f32 %v2469, %v3146
      %v3213 = vadd.f32 %v2472, %v3149
      %v3214 = vadd.f32 %v2474, %v3151
      %v3215 = vadd.f32 %v2477, %v3154
      %v3216 = vadd.f32 %v2479, %v3156
      %v3217 = vadd.f32 %v2482, %v3159
      %v3218 = vadd.f32 %v2484, %v3161
      %v3219 = vadd.f32 %v2487, %v3164
      %v3220 = vadd.f32 %v2489, %v3166
      %v3221 = vadd.f32 %v2492, %v3169
      %v3222 = vadd.f32 %v2494, %v3171
      %v3223 = vadd.f32 %v2497, %v3174
      %v3224 = vadd.f32 %v2499, %v3176
      %v3225 = vadd.f32 %v2502, %v3179
      %v3226 = vadd.f32 %v2504, %v3181
      %v3227 = vadd.f32 %v2507, %v3184
      %v3228 = vadd.f32 %v2509, %v3186
      %v3229 = vadd.f32 %v2512, %v3189
      %v3230 = vadd.f32 %v2514, %v3191
      %v3231 = vadd.f32 %v2517, %v3194
      %v3232 = vadd.f32 %v2519, %v3196
      %v3233 = vadd.f32 %v2522, %v3199
      %v3234 = vadd.f32 %v2524, %v3201
      %v3235 = vld [vmem:[%s4] sm:$0x1]
      %v3237 = vperm.slane %v3235, 0
      %v3239 = vadd.f32 %v3203, %v3237
      %v3240 = vadd.f32 %v3204, %v3237
      %v3241 = vadd.f32 %v3205, %v3237
      %v3242 = vadd.f32 %v3206, %v3237
      %v3243 = vadd.f32 %v3207, %v3237
      %v3244 = vadd.f32 %v3208, %v3237
      %v3245 = vadd.f32 %v3209, %v3237
      %v3246 = vadd.f32 %v3210, %v3237
      %v3247 = vadd.f32 %v3211, %v3237
      %v3248 = vadd.f32 %v3212, %v3237
      %v3249 = vadd.f32 %v3213, %v3237
      %v3250 = vadd.f32 %v3214, %v3237
      %v3251 = vadd.f32 %v3215, %v3237
      %v3252 = vadd.f32 %v3216, %v3237
      %v3253 = vadd.f32 %v3217, %v3237
      %v3254 = vadd.f32 %v3218, %v3237
      %v3255 = vadd.f32 %v3219, %v3237
      %v3256 = vadd.f32 %v3220, %v3237
      %v3257 = vadd.f32 %v3221, %v3237
      %v3258 = vadd.f32 %v3222, %v3237
      %v3259 = vadd.f32 %v3223, %v3237
      %v3260 = vadd.f32 %v3224, %v3237
      %v3261 = vadd.f32 %v3225, %v3237
      %v3262 = vadd.f32 %v3226, %v3237
      %v3263 = vadd.f32 %v3227, %v3237
      %v3264 = vadd.f32 %v3228, %v3237
      %v3265 = vadd.f32 %v3229, %v3237
      %v3266 = vadd.f32 %v3230, %v3237
      %v3267 = vadd.f32 %v3231, %v3237
      %v3268 = vadd.f32 %v3232, %v3237
      %v3269 = vadd.f32 %v3233, %v3237
      %v3270 = vadd.f32 %v3234, %v3237
      %v3271 = vmax.f32 %v3239, 0.0
      %v3272 = vmax.f32 %v3240, 0.0
      %v3273 = vmax.f32 %v3241, 0.0
      %v3274 = vmax.f32 %v3242, 0.0
      %v3275 = vmax.f32 %v3243, 0.0
      %v3276 = vmax.f32 %v3244, 0.0
      %v3277 = vmax.f32 %v3245, 0.0
      %v3278 = vmax.f32 %v3246, 0.0
      %v3279 = vmax.f32 %v3247, 0.0
      %v3280 = vmax.f32 %v3248, 0.0
      %v3281 = vmax.f32 %v3249, 0.0
      %v3282 = vmax.f32 %v3250, 0.0
      %v3283 = vmax.f32 %v3251, 0.0
      %v3284 = vmax.f32 %v3252, 0.0
      %v3285 = vmax.f32 %v3253, 0.0
      %v3286 = vmax.f32 %v3254, 0.0
      %v3287 = vmax.f32 %v3255, 0.0
      %v3288 = vmax.f32 %v3256, 0.0
      %v3289 = vmax.f32 %v3257, 0.0
      %v3290 = vmax.f32 %v3258, 0.0
      %v3291 = vmax.f32 %v3259, 0.0
      %v3292 = vmax.f32 %v3260, 0.0
      %v3293 = vmax.f32 %v3261, 0.0
      %v3294 = vmax.f32 %v3262, 0.0
      %v3295 = vmax.f32 %v3263, 0.0
      %v3296 = vmax.f32 %v3264, 0.0
      %v3297 = vmax.f32 %v3265, 0.0
      %v3298 = vmax.f32 %v3266, 0.0
      %v3299 = vmax.f32 %v3267, 0.0
      %v3300 = vmax.f32 %v3268, 0.0
      %v3301 = vmax.f32 %v3269, 0.0
      %v3302 = vmax.f32 %v3270, 0.0
      %v3303 = vpack.c.bf16 %v3272, %v3271
      %v3304 = vpack.c.bf16 %v3274, %v3273
      %v3305 = vpack.c.bf16 %v3276, %v3275
      %v3306 = vpack.c.bf16 %v3278, %v3277
      %v3307 = vpack.c.bf16 %v3280, %v3279
      %v3308 = vpack.c.bf16 %v3282, %v3281
      %v3309 = vpack.c.bf16 %v3284, %v3283
      %v3310 = vpack.c.bf16 %v3286, %v3285
      %v3311 = vpack.c.bf16 %v3288, %v3287
      %v3312 = vpack.c.bf16 %v3290, %v3289
      %v3313 = vpack.c.bf16 %v3292, %v3291
      %v3314 = vpack.c.bf16 %v3294, %v3293
      %v3315 = vpack.c.bf16 %v3296, %v3295
      %v3316 = vpack.c.bf16 %v3298, %v3297
      %v3317 = vpack.c.bf16 %v3300, %v3299
      %v3318 = vpack.c.bf16 %v3302, %v3301
      %v3319 = vld [vmem:[%s5] sm:$0x3]
      %v3320 = vld [vmem:[%s6] sm:$0x1]
      %v3322 = vperm.slane %v3320, 0
      %v3325 = vsel %vm1651, %v3303, 0
      %v3328 = vsel %vm1651, %v3304, 0
      %v3331 = vsel %vm1651, %v3305, 0
      %v3334 = vsel %vm1651, %v3306, 0
      %v3337 = vsel %vm1651, %v3307, 0
      %v3340 = vsel %vm1651, %v3308, 0
      %v3343 = vsel %vm1651, %v3309, 0
      %v3346 = vsel %vm1651, %v3310, 0
      %v3349 = vsel %vm1651, %v3311, 0
      %v3352 = vsel %vm1651, %v3312, 0
      %v3355 = vsel %vm1651, %v3313, 0
      %v3358 = vsel %vm1651, %v3314, 0
      %v3361 = vsel %vm1651, %v3315, 0
      %v3364 = vsel %vm1651, %v3316, 0
      %v3367 = vsel %vm1651, %v3317, 0
      %v3370 = vsel %vm1651, %v3318, 0
      %vm3372 = vcmask 1041408
      %v3374 = vsel %vm3372, %v3319, 0
      %3376 = vmatpush.bf16.msra.mxu0 0
      %3377 = vmatpush.bf16.msra.mxu0 0
      %3378 = vmatpush.bf16.msra.mxu0 0
      %3379 = vmatpush.bf16.msra.mxu0 0
      %3380 = vmatpush.bf16.msra.mxu0 0
      %3381 = vmatpush.bf16.msra.mxu0 0
      %3382 = vmatpush.bf16.msra.mxu0 0
      %3383 = vmatpush.bf16.msra.mxu0 %v3374
      %3384 = vmatmul.bf16.gmra.mxu0 %v3325
      %v3385 = vpop.f32.mrf.mxu0
      %v3386 = vadd.f32 %v3322, %v3385
      %v3387 = vpop.f32.mrf.mxu0
      %v3388 = vadd.f32 %v3322, %v3387
      %3389 = vmatmul.bf16.gmra.mxu0 %v3328
      %v3390 = vpop.f32.mrf.mxu0
      %v3391 = vadd.f32 %v3322, %v3390
      %v3392 = vpop.f32.mrf.mxu0
      %v3393 = vadd.f32 %v3322, %v3392
      %3394 = vmatmul.bf16.gmra.mxu0 %v3331
      %v3395 = vpop.f32.mrf.mxu0
      %v3396 = vadd.f32 %v3322, %v3395
      %v3397 = vpop.f32.mrf.mxu0
      %v3398 = vadd.f32 %v3322, %v3397
      %3399 = vmatmul.bf16.gmra.mxu0 %v3334
      %v3400 = vpop.f32.mrf.mxu0
      %v3401 = vadd.f32 %v3322, %v3400
      %v3402 = vpop.f32.mrf.mxu0
      %v3403 = vadd.f32 %v3322, %v3402
      %3404 = vmatmul.bf16.gmra.mxu0 %v3337
      %v3405 = vpop.f32.mrf.mxu0
      %v3406 = vadd.f32 %v3322, %v3405
      %v3407 = vpop.f32.mrf.mxu0
      %v3408 = vadd.f32 %v3322, %v3407
      %3409 = vmatmul.bf16.gmra.mxu0 %v3340
      %v3410 = vpop.f32.mrf.mxu0
      %v3411 = vadd.f32 %v3322, %v3410
      %v3412 = vpop.f32.mrf.mxu0
      %v3413 = vadd.f32 %v3322, %v3412
      %3414 = vmatmul.bf16.gmra.mxu0 %v3343
      %v3415 = vpop.f32.mrf.mxu0
      %v3416 = vadd.f32 %v3322, %v3415
      %v3417 = vpop.f32.mrf.mxu0
      %v3418 = vadd.f32 %v3322, %v3417
      %3419 = vmatmul.bf16.gmra.mxu0 %v3346
      %v3420 = vpop.f32.mrf.mxu0
      %v3421 = vadd.f32 %v3322, %v3420
      %v3422 = vpop.f32.mrf.mxu0
      %v3423 = vadd.f32 %v3322, %v3422
      %3424 = vmatmul.bf16.gmra.mxu0 %v3349
      %v3425 = vpop.f32.mrf.mxu0
      %v3426 = vadd.f32 %v3322, %v3425
      %v3427 = vpop.f32.mrf.mxu0
      %v3428 = vadd.f32 %v3322, %v3427
      %3429 = vmatmul.bf16.gmra.mxu0 %v3352
      %v3430 = vpop.f32.mrf.mxu0
      %v3431 = vadd.f32 %v3322, %v3430
      %v3432 = vpop.f32.mrf.mxu0
      %v3433 = vadd.f32 %v3322, %v3432
      %3434 = vmatmul.bf16.gmra.mxu0 %v3355
      %v3435 = vpop.f32.mrf.mxu0
      %v3436 = vadd.f32 %v3322, %v3435
      %v3437 = vpop.f32.mrf.mxu0
      %v3438 = vadd.f32 %v3322, %v3437
      %3439 = vmatmul.bf16.gmra.mxu0 %v3358
      %v3440 = vpop.f32.mrf.mxu0
      %v3441 = vadd.f32 %v3322, %v3440
      %v3442 = vpop.f32.mrf.mxu0
      %v3443 = vadd.f32 %v3322, %v3442
      %3444 = vmatmul.bf16.gmra.mxu0 %v3361
      %v3445 = vpop.f32.mrf.mxu0
      %v3446 = vadd.f32 %v3322, %v3445
      %v3447 = vpop.f32.mrf.mxu0
      %v3448 = vadd.f32 %v3322, %v3447
      %3449 = vmatmul.bf16.gmra.mxu0 %v3364
      %v3450 = vpop.f32.mrf.mxu0
      %v3451 = vadd.f32 %v3322, %v3450
      %v3452 = vpop.f32.mrf.mxu0
      %v3453 = vadd.f32 %v3322, %v3452
      %3454 = vmatmul.bf16.gmra.mxu0 %v3367
      %v3455 = vpop.f32.mrf.mxu0
      %v3456 = vadd.f32 %v3322, %v3455
      %v3457 = vpop.f32.mrf.mxu0
      %v3458 = vadd.f32 %v3322, %v3457
      %3459 = vmatmul.bf16.gmra.mxu0 %v3370
      %v3460 = vpop.f32.mrf.mxu0
      %v3461 = vadd.f32 %v3322, %v3460
      %v3462 = vpop.f32.mrf.mxu0
      %v3463 = vadd.f32 %v3322, %v3462
      %3464 = vdwg.mxu0
      %v3465 = vld [vmem:[%s273] sm:$0xf]
      %v3466 = vld [vmem:[%s273 + $0x4] sm:$0xf]
      %v3467 = vld [vmem:[%s273 + $0x8] sm:$0xf]
      %v3468 = vld [vmem:[%s273 + $0xc] sm:$0xf]
      %v3469 = vld [vmem:[%s273 + $0x10] sm:$0xf]
      %v3470 = vld [vmem:[%s273 + $0x14] sm:$0xf]
      %v3471 = vld [vmem:[%s273 + $0x18] sm:$0xf]
      %v3472 = vld [vmem:[%s273 + $0x1c] sm:$0xf]
      %v3473 = vld [vmem:[%s273 + $0x20] sm:$0xf]
      %v3474 = vld [vmem:[%s273 + $0x24] sm:$0xf]
      %v3475 = vld [vmem:[%s273 + $0x28] sm:$0xf]
      %v3476 = vld [vmem:[%s273 + $0x2c] sm:$0xf]
      %v3477 = vld [vmem:[%s273 + $0x30] sm:$0xf]
      %v3478 = vld [vmem:[%s273 + $0x34] sm:$0xf]
      %v3479 = vld [vmem:[%s273 + $0x38] sm:$0xf]
      %v3480 = vld [vmem:[%s273 + $0x3c] sm:$0xf]
      %v3481 = vld [vmem:[%s273 + $0x40] sm:$0xf]
      %v3482 = vld [vmem:[%s273 + $0x44] sm:$0xf]
      %v3483 = vld [vmem:[%s273 + $0x48] sm:$0xf]
      %v3484 = vld [vmem:[%s273 + $0x4c] sm:$0xf]
      %v3485 = vld [vmem:[%s273 + $0x50] sm:$0xf]
      %v3486 = vld [vmem:[%s273 + $0x54] sm:$0xf]
      %v3487 = vld [vmem:[%s273 + $0x58] sm:$0xf]
      %v3488 = vld [vmem:[%s273 + $0x5c] sm:$0xf]
      %v3489 = vld [vmem:[%s273 + $0x60] sm:$0xf]
      %v3490 = vld [vmem:[%s273 + $0x64] sm:$0xf]
      %v3491 = vld [vmem:[%s273 + $0x68] sm:$0xf]
      %v3492 = vld [vmem:[%s273 + $0x6c] sm:$0xf]
      %v3493 = vld [vmem:[%s273 + $0x70] sm:$0xf]
      %v3494 = vld [vmem:[%s273 + $0x74] sm:$0xf]
      %v3495 = vld [vmem:[%s273 + $0x78] sm:$0xf]
      %v3496 = vld [vmem:[%s273 + $0x7c] sm:$0xf]
      %v3497 = vunpack.c.l.bf16 %v3465
      %v3498 = vunpack.c.l.bf16 %v3466
      %v3499 = vunpack.c.l.bf16 %v3467
      %v3500 = vunpack.c.l.bf16 %v3468
      %v3501 = vunpack.c.l.bf16 %v3469
      %v3502 = vunpack.c.l.bf16 %v3470
      %v3503 = vunpack.c.l.bf16 %v3471
      %v3504 = vunpack.c.l.bf16 %v3472
      %v3505 = vunpack.c.l.bf16 %v3473
      %v3506 = vunpack.c.l.bf16 %v3474
      %v3507 = vunpack.c.l.bf16 %v3475
      %v3508 = vunpack.c.l.bf16 %v3476
      %v3509 = vunpack.c.l.bf16 %v3477
      %v3510 = vunpack.c.l.bf16 %v3478
      %v3511 = vunpack.c.l.bf16 %v3479
      %v3512 = vunpack.c.l.bf16 %v3480
      %v3513 = vunpack.c.l.bf16 %v3481
      %v3514 = vunpack.c.l.bf16 %v3482
      %v3515 = vunpack.c.l.bf16 %v3483
      %v3516 = vunpack.c.l.bf16 %v3484
      %v3517 = vunpack.c.l.bf16 %v3485
      %v3518 = vunpack.c.l.bf16 %v3486
      %v3519 = vunpack.c.l.bf16 %v3487
      %v3520 = vunpack.c.l.bf16 %v3488
      %v3521 = vunpack.c.l.bf16 %v3489
      %v3522 = vunpack.c.l.bf16 %v3490
      %v3523 = vunpack.c.l.bf16 %v3491
      %v3524 = vunpack.c.l.bf16 %v3492
      %v3525 = vunpack.c.l.bf16 %v3493
      %v3526 = vunpack.c.l.bf16 %v3494
      %v3527 = vunpack.c.l.bf16 %v3495
      %v3528 = vunpack.c.l.bf16 %v3496
      %v3529 = vadd.f32 %v3386, %v3497
      %v3530 = vadd.f32 %v3388, %v3498
      %v3531 = vadd.f32 %v3391, %v3499
      %v3532 = vadd.f32 %v3393, %v3500
      %v3533 = vadd.f32 %v3396, %v3501
      %v3534 = vadd.f32 %v3398, %v3502
      %v3535 = vadd.f32 %v3401, %v3503
      %v3536 = vadd.f32 %v3403, %v3504
      %v3537 = vadd.f32 %v3406, %v3505
      %v3538 = vadd.f32 %v3408, %v3506
      %v3539 = vadd.f32 %v3411, %v3507
      %v3540 = vadd.f32 %v3413, %v3508
      %v3541 = vadd.f32 %v3416, %v3509
      %v3542 = vadd.f32 %v3418, %v3510
      %v3543 = vadd.f32 %v3421, %v3511
      %v3544 = vadd.f32 %v3423, %v3512
      %v3545 = vadd.f32 %v3426, %v3513
      %v3546 = vadd.f32 %v3428, %v3514
      %v3547 = vadd.f32 %v3431, %v3515
      %v3548 = vadd.f32 %v3433, %v3516
      %v3549 = vadd.f32 %v3436, %v3517
      %v3550 = vadd.f32 %v3438, %v3518
      %v3551 = vadd.f32 %v3441, %v3519
      %v3552 = vadd.f32 %v3443, %v3520
      %v3553 = vadd.f32 %v3446, %v3521
      %v3554 = vadd.f32 %v3448, %v3522
      %v3555 = vadd.f32 %v3451, %v3523
      %v3556 = vadd.f32 %v3453, %v3524
      %v3557 = vadd.f32 %v3456, %v3525
      %v3558 = vadd.f32 %v3458, %v3526
      %v3559 = vadd.f32 %v3461, %v3527
      %v3560 = vadd.f32 %v3463, %v3528
      %v3561 = vmax.f32 %v3529, 0.0
      %v3562 = vmax.f32 %v3530, 0.0
      %v3563 = vmax.f32 %v3531, 0.0
      %v3564 = vmax.f32 %v3532, 0.0
      %v3565 = vmax.f32 %v3533, 0.0
      %v3566 = vmax.f32 %v3534, 0.0
      %v3567 = vmax.f32 %v3535, 0.0
      %v3568 = vmax.f32 %v3536, 0.0
      %v3569 = vmax.f32 %v3537, 0.0
      %v3570 = vmax.f32 %v3538, 0.0
      %v3571 = vmax.f32 %v3539, 0.0
      %v3572 = vmax.f32 %v3540, 0.0
      %v3573 = vmax.f32 %v3541, 0.0
      %v3574 = vmax.f32 %v3542, 0.0
      %v3575 = vmax.f32 %v3543, 0.0
      %v3576 = vmax.f32 %v3544, 0.0
      %v3577 = vmax.f32 %v3545, 0.0
      %v3578 = vmax.f32 %v3546, 0.0
      %v3579 = vmax.f32 %v3547, 0.0
      %v3580 = vmax.f32 %v3548, 0.0
      %v3581 = vmax.f32 %v3549, 0.0
      %v3582 = vmax.f32 %v3550, 0.0
      %v3583 = vmax.f32 %v3551, 0.0
      %v3584 = vmax.f32 %v3552, 0.0
      %v3585 = vmax.f32 %v3553, 0.0
      %v3586 = vmax.f32 %v3554, 0.0
      %v3587 = vmax.f32 %v3555, 0.0
      %v3588 = vmax.f32 %v3556, 0.0
      %v3589 = vmax.f32 %v3557, 0.0
      %v3590 = vmax.f32 %v3558, 0.0
      %v3591 = vmax.f32 %v3559, 0.0
      %v3592 = vmax.f32 %v3560, 0.0
      %v3593 = vpack.c.bf16 %v3561, %v3561
      %v3594 = vpack.c.bf16 %v3562, %v3562
      %v3595 = vpack.c.bf16 %v3563, %v3563
      %v3596 = vpack.c.bf16 %v3564, %v3564
      %v3597 = vpack.c.bf16 %v3565, %v3565
      %v3598 = vpack.c.bf16 %v3566, %v3566
      %v3599 = vpack.c.bf16 %v3567, %v3567
      %v3600 = vpack.c.bf16 %v3568, %v3568
      %v3601 = vpack.c.bf16 %v3569, %v3569
      %v3602 = vpack.c.bf16 %v3570, %v3570
      %v3603 = vpack.c.bf16 %v3571, %v3571
      %v3604 = vpack.c.bf16 %v3572, %v3572
      %v3605 = vpack.c.bf16 %v3573, %v3573
      %v3606 = vpack.c.bf16 %v3574, %v3574
      %v3607 = vpack.c.bf16 %v3575, %v3575
      %v3608 = vpack.c.bf16 %v3576, %v3576
      %v3609 = vpack.c.bf16 %v3577, %v3577
      %v3610 = vpack.c.bf16 %v3578, %v3578
      %v3611 = vpack.c.bf16 %v3579, %v3579
      %v3612 = vpack.c.bf16 %v3580, %v3580
      %v3613 = vpack.c.bf16 %v3581, %v3581
      %v3614 = vpack.c.bf16 %v3582, %v3582
      %v3615 = vpack.c.bf16 %v3583, %v3583
      %v3616 = vpack.c.bf16 %v3584, %v3584
      %v3617 = vpack.c.bf16 %v3585, %v3585
      %v3618 = vpack.c.bf16 %v3586, %v3586
      %v3619 = vpack.c.bf16 %v3587, %v3587
      %v3620 = vpack.c.bf16 %v3588, %v3588
      %v3621 = vpack.c.bf16 %v3589, %v3589
      %v3622 = vpack.c.bf16 %v3590, %v3590
      %v3623 = vpack.c.bf16 %v3591, %v3591
      %v3624 = vpack.c.bf16 %v3592, %v3592
      %vm3625 = vcmask 125952
      %3626 = vst.msk [vmem:[%s278] sm:$0xf] %vm3625, %v3593
      %3627 = vst.msk [vmem:[%s278 + $0x4] sm:$0xf] %vm3625, %v3594
      %3628 = vst.msk [vmem:[%s278 + $0x8] sm:$0xf] %vm3625, %v3595
      %3629 = vst.msk [vmem:[%s278 + $0xc] sm:$0xf] %vm3625, %v3596
      %3630 = vst.msk [vmem:[%s278 + $0x10] sm:$0xf] %vm3625, %v3597
      %3631 = vst.msk [vmem:[%s278 + $0x14] sm:$0xf] %vm3625, %v3598
      %3632 = vst.msk [vmem:[%s278 + $0x18] sm:$0xf] %vm3625, %v3599
      %3633 = vst.msk [vmem:[%s278 + $0x1c] sm:$0xf] %vm3625, %v3600
      %3634 = vst.msk [vmem:[%s278 + $0x20] sm:$0xf] %vm3625, %v3601
      %3635 = vst.msk [vmem:[%s278 + $0x24] sm:$0xf] %vm3625, %v3602
      %3636 = vst.msk [vmem:[%s278 + $0x28] sm:$0xf] %vm3625, %v3603
      %3637 = vst.msk [vmem:[%s278 + $0x2c] sm:$0xf] %vm3625, %v3604
      %3638 = vst.msk [vmem:[%s278 + $0x30] sm:$0xf] %vm3625, %v3605
      %3639 = vst.msk [vmem:[%s278 + $0x34] sm:$0xf] %vm3625, %v3606
      %3640 = vst.msk [vmem:[%s278 + $0x38] sm:$0xf] %vm3625, %v3607
      %3641 = vst.msk [vmem:[%s278 + $0x3c] sm:$0xf] %vm3625, %v3608
      %3642 = vst.msk [vmem:[%s278 + $0x40] sm:$0xf] %vm3625, %v3609
      %3643 = vst.msk [vmem:[%s278 + $0x44] sm:$0xf] %vm3625, %v3610
      %3644 = vst.msk [vmem:[%s278 + $0x48] sm:$0xf] %vm3625, %v3611
      %3645 = vst.msk [vmem:[%s278 + $0x4c] sm:$0xf] %vm3625, %v3612
      %3646 = vst.msk [vmem:[%s278 + $0x50] sm:$0xf] %vm3625, %v3613
      %3647 = vst.msk [vmem:[%s278 + $0x54] sm:$0xf] %vm3625, %v3614
      %3648 = vst.msk [vmem:[%s278 + $0x58] sm:$0xf] %vm3625, %v3615
      %3649 = vst.msk [vmem:[%s278 + $0x5c] sm:$0xf] %vm3625, %v3616
      %3650 = vst.msk [vmem:[%s278 + $0x60] sm:$0xf] %vm3625, %v3617
      %3651 = vst.msk [vmem:[%s278 + $0x64] sm:$0xf] %vm3625, %v3618
      %3652 = vst.msk [vmem:[%s278 + $0x68] sm:$0xf] %vm3625, %v3619
      %3653 = vst.msk [vmem:[%s278 + $0x6c] sm:$0xf] %vm3625, %v3620
      %3654 = vst.msk [vmem:[%s278 + $0x70] sm:$0xf] %vm3625, %v3621
      %3655 = vst.msk [vmem:[%s278 + $0x74] sm:$0xf] %vm3625, %v3622
      %3656 = vst.msk [vmem:[%s278 + $0x78] sm:$0xf] %vm3625, %v3623
      %3657 = vst.msk [vmem:[%s278 + $0x7c] sm:$0xf] %vm3625, %v3624
      %p3658 = scmp.lt.s32.totalorder %s18, 1
      %s3659 = scalar_select %p3658, %s18, 1
      %s3660 = smul.addr %s3659, 32
      %s3661 = smul.addr %s3660, 4
      %s3662 = scalar_lea.vmem %s7, %s3661
      // Predicated region
      $region49: #{tpu_custom_call.1} parent=47 // pred_check
        %p3663 = pneg %p188
      $region50: #{tpu_custom_call.1} parent=47 // pred_check_branch
        %3665 = sbr.rel (%p3663) target = $region52
      $region51: #{tpu_custom_call.1} parent=47 // pred_region
        _
      $region52: #{tpu_custom_call.1} parent=47 // pred_fallthru
        _
    $region48: #{tpu_custom_call.1} parent=5 // pred_fallthru
      _
    %p3666 = scmp.le.s32.totalorder 2, %s13
    // Predicated region
    $region53: #{tpu_custom_call.1} parent=5 // pred_check
      %p3667 = pneg %p3666
    $region54: #{tpu_custom_call.1} parent=5 // pred_check_branch
      %3669 = sbr.rel (%p3667) target = $region56
    $region55: #{tpu_custom_call.1} parent=5 // pred_region
      %s3670 = ssub.s32 %s13, 2
      // Predicated region
      $region57: #{tpu_custom_call.1} parent=55 // pred_check
        %p3671 = pneg %p194
      $region58: #{tpu_custom_call.1} parent=55 // pred_check_branch
        %3673 = sbr.rel (%p3671) target = $region60
      $region59: #{tpu_custom_call.1} parent=55 // pred_region
        %p3674 = scmp.lt.s32.totalorder %s19, 1
        %s3675 = scalar_select %p3674, %s19, 1
        %s3676 = smul.addr %s3675, 32
        %s3677 = smul.addr %s3676, 4
        %s3678 = scalar_lea.vmem %s7, %s3677
      $region60: #{tpu_custom_call.1} parent=55 // pred_fallthru
        _
    $region56: #{tpu_custom_call.1} parent=5 // pred_fallthru
      _
  $region6: #{tpu_custom_call.1} parent=0 // loop_footer
    %s17 = sadd.s32 1, %s13
  $region7: #{tpu_custom_call.1} parent=0 // loop_footer_branch
    %12 = sbr.rel target = $region3
  $region8: #{tpu_custom_call.1} parent=0 // loop_exit
    _

</llo_original>
